<compile_context>
chip_gen: v5e
topology: v5e:2x2
jax: 0.10.0
libtpu: 0.0.40
codegen_flags: <defaults>
</compile_context>

<pallas_src>
import jax
import jax.numpy as jnp
from jax.experimental import pallas as pl


def _lstm_fc_kernel(x_ref,      # (T*B, I)  f32, time-major rows: step t = rows [t*B, (t+1)*B)
                    wih0_ref,   # (I, 4H)   bf16
                    whh0_ref,   # (H, 4H)   bf16
                    b0_ref,     # (1, 4H)   f32   (b_ih0 + b_hh0)
                    w1_ref,     # (2H, 4H)  bf16  [[wih1^T]; [whh1^T]]
                    b1_ref,     # (1, 4H)   f32   (b_ih1 + b_hh1)
                    wfc_ref,    # (H, C)    bf16
                    bfc_ref,    # (1, C)    f32
                    out_ref):   # (B, C)    f32
    H = whh0_ref.shape[0]
    B = out_ref.shape[0]
    T = x_ref.shape[0] // B

    # ---- hoisted layer-0 input projection (+ bias): one MXU pass for all T ----
    xp = (jnp.dot(x_ref[...].astype(jnp.bfloat16), wih0_ref[...],
                  preferred_element_type=jnp.float32)
          + b0_ref[...])                                      # (T*B, 4H) f32

    # Load weights / pre-broadcast bias once, outside the unrolled loop.
    whh0 = whh0_ref[...]
    w1 = w1_ref[...]
    b1 = jnp.broadcast_to(b1_ref[...], (B, 4 * H))

    def gates_to_hc(gates, c_prev):
        # PyTorch gate order [i, f, g, o]; all gate math stays f32 (VPU/EUP).
        i = jax.nn.sigmoid(gates[:, 0 * H:1 * H])
        f = jax.nn.sigmoid(gates[:, 1 * H:2 * H])
        g = jnp.tanh(gates[:, 2 * H:3 * H])
        o = jax.nn.sigmoid(gates[:, 3 * H:4 * H])
        c_new = f * c_prev + i * g
        h_new = o * jnp.tanh(c_new)
        return h_new, c_new

    h0 = jnp.zeros((B, H), jnp.float32)
    c0 = jnp.zeros((B, H), jnp.float32)
    h1 = jnp.zeros((B, H), jnp.float32)
    c1 = jnp.zeros((B, H), jnp.float32)

    # Fully unrolled time loop (T static & small): same codegen as
    # lax.fori_loop(..., unroll=True) but with concrete slice offsets.
    for t in range(T):
        # layer 0: only the recurrent matmul sits on the serial chain.
        g0 = xp[t * B:(t + 1) * B, :] + jnp.dot(
            h0.astype(jnp.bfloat16), whh0, preferred_element_type=jnp.float32)
        h0, c0 = gates_to_hc(g0, c0)

        # layer 1: single fused matmul over the concatenated (x=h0, h=h1) input.
        hcat = jnp.concatenate([h0, h1], axis=-1).astype(jnp.bfloat16)  # (B, 2H)
        g1 = jnp.dot(hcat, w1, preferred_element_type=jnp.float32) + b1
        h1, c1 = gates_to_hc(g1, c1)

    # fc(out[:, -1, :]) — written once at the end.
    out_ref[...] = (jnp.dot(h1.astype(jnp.bfloat16), wfc_ref[...],
                            preferred_element_type=jnp.float32)
                    + bfc_ref[...]).astype(out_ref.dtype)


def lstm_model_forward(x, params):
    """x: (B, T, I) float32 (batch_first, like the PyTorch module). Returns (B, C)."""
    B, T, I = x.shape
    H = params["whh0_t"].shape[0]
    C = params["wfc_t"].shape[1]

    # Pad batch to a full f32 sublane group (8 rows); padded rows run a valid
    # LSTM over zero inputs and are discarded below.
    B_pad = ((B + 7) // 8) * 8
    if B_pad != B:
        x = jnp.pad(x, ((0, B_pad - B), (0, 0), (0, 0)))

    # Time-major 2D layout so the hoisted input projection is a single
    # (T*B, I) @ (I, 4H) matmul and per-step slices are contiguous row blocks.
    # (One-time layout plumbing on a few-KB tensor; x is DMA'd to VMEM once.)
    x2d = jnp.transpose(x, (1, 0, 2)).reshape(T * B_pad, I)

    out = pl.pallas_call(
        _lstm_fc_kernel,
        out_shape=jax.ShapeDtypeStruct((B_pad, C), jnp.float32),
    )(x2d,
      params["wih0_t"], params["whh0_t"], params["b0"],
      params["w1_t"], params["b1"],
      params["wfc_t"], params["bfc"])
    return out[:B]


def init_params(key, input_size, hidden_size, num_classes):
    """Deterministic init (uniform +-1/sqrt(H), like PyTorch's default), pre-laid-out
    for the kernel: weights transposed, layer-1 ih/hh concatenated, weights bf16."""
    H = hidden_size
    k = 1.0 / jnp.sqrt(jnp.float32(H))
    keys = jax.random.split(key, 10)
    u = lambda kk, shape: jax.random.uniform(kk, shape, jnp.float32, -k, k)

    # PyTorch shapes: weight_ih_l0 (4H, I), weight_hh_l0 (4H, H), biases (4H,)
    wih0 = u(keys[0], (4 * H, input_size))
    whh0 = u(keys[1], (4 * H, H))
    bih0 = u(keys[2], (4 * H,))
    bhh0 = u(keys[3], (4 * H,))
    wih1 = u(keys[4], (4 * H, H))
    whh1 = u(keys[5], (4 * H, H))
    bih1 = u(keys[6], (4 * H,))
    bhh1 = u(keys[7], (4 * H,))
    wfc = u(keys[8], (num_classes, H))
    bfc = u(keys[9], (num_classes,))

    return {
        # bf16 MXU operands; biases / gate math stay f32.
        "wih0_t": wih0.T.astype(jnp.bfloat16),                               # (I, 4H)
        "whh0_t": whh0.T.astype(jnp.bfloat16),                               # (H, 4H)
        "b0": (bih0 + bhh0)[None, :],                                        # (1, 4H) f32
        "w1_t": jnp.concatenate([wih1.T, whh1.T], axis=0).astype(jnp.bfloat16),  # (2H, 4H)
        "b1": (bih1 + bhh1)[None, :],                                        # (1, 4H) f32
        "wfc_t": wfc.T.astype(jnp.bfloat16),                                 # (H, C)
        "bfc": bfc[None, :],                                                 # (1, C) f32
    }


def reference_forward(x, params):
    """Pure-JAX f32 reference (lax.scan), PyTorch nn.LSTM semantics, using the same
    (bf16-rounded, upcast to f32) weights as the kernel."""
    B, T, I = x.shape
    H = params["whh0_t"].shape[0]

    wih0 = params["wih0_t"].astype(jnp.float32)
    whh0 = params["whh0_t"].astype(jnp.float32)
    w1 = params["w1_t"].astype(jnp.float32)
    wfc = params["wfc_t"].astype(jnp.float32)
    b0, b1, bfc = params["b0"], params["b1"], params["bfc"]

    def gates_to_hc(gates, c_prev):
        i = jax.nn.sigmoid(gates[:, 0 * H:1 * H])
        f = jax.nn.sigmoid(gates[:, 1 * H:2 * H])
        g = jnp.tanh(gates[:, 2 * H:3 * H])
        o = jax.nn.sigmoid(gates[:, 3 * H:4 * H])
        c_new = f * c_prev + i * g
        return o * jnp.tanh(c_new), c_new

    def step(carry, x_t):
        h0, c0, h1, c1 = carry
        h0, c0 = gates_to_hc(x_t @ wih0 + h0 @ whh0 + b0, c0)
        h1, c1 = gates_to_hc(jnp.concatenate([h0, h1], axis=-1) @ w1 + b1, c1)
        return (h0, c0, h1, c1), None

    z = jnp.zeros((B, H), jnp.float32)
    (h0, c0, h1, c1), _ = jax.lax.scan(step, (z, z, z, z),
                                       jnp.transpose(x, (1, 0, 2)))
    return h1 @ wfc + bfc


if __name__ == "__main__":
    input_size = 22
    hidden_size = 128
    num_classes = 10
    batch = 2
    seq = 8

    key = jax.random.PRNGKey(0)
    kx, kp = jax.random.split(key)
    x = jax.random.normal(kx, (batch, seq, input_size), jnp.float32)
    params = init_params(kp, input_size, hidden_size, num_classes)

    out = jax.block_until_ready(lstm_model_forward(x, params))
    ref = jax.block_until_ready(reference_forward(x, params))

    assert out.shape == (batch, num_classes)
    # bf16 MXU operands (f32 accumulation) vs f32 reference math with the same
    # bf16-rounded weights -> loosened tolerance.
    assert jnp.allclose(out, ref, atol=2e-2, rtol=2e-2), (out, ref)
    print("KERNEL_OK")
</pallas_src>

<mosaic_0001>
module attributes {stable_mosaic.version = 11 : i64} {
  func.func @_lstm_fc_kernel(%arg0: memref<64x22xf32, #tpu.memory_space<vmem>>, %arg1: memref<22x512xbf16, #tpu.memory_space<vmem>>, %arg2: memref<128x512xbf16, #tpu.memory_space<vmem>>, %arg3: memref<1x512xf32, #tpu.memory_space<vmem>>, %arg4: memref<256x512xbf16, #tpu.memory_space<vmem>>, %arg5: memref<1x512xf32, #tpu.memory_space<vmem>>, %arg6: memref<128x10xbf16, #tpu.memory_space<vmem>>, %arg7: memref<1x10xf32, #tpu.memory_space<vmem>>, %arg8: memref<8x10xf32, #tpu.memory_space<vmem>>) attributes {dimension_semantics = [], scalar_prefetch = 0 : i64, scratch_operands = 0 : i64, tpu.core_type = #tpu.core_type<tc>} {
    %c0 = arith.constant 0 : index
    %c0_0 = arith.constant 0 : index
    %0 = vector.load %arg0[%c0, %c0_0] : memref<64x22xf32, #tpu.memory_space<vmem>>, vector<64x22xf32>
    %1 = arith.truncf %0 : vector<64x22xf32> to vector<64x22xbf16>
    %c0_1 = arith.constant 0 : index
    %c0_2 = arith.constant 0 : index
    %2 = vector.load %arg1[%c0_1, %c0_2] : memref<22x512xbf16, #tpu.memory_space<vmem>>, vector<22x512xbf16>
    %cst = arith.constant dense<0.000000e+00> : vector<64x512xf32>
    %3 = tpu.matmul %1, %2, %cst {dimension_numbers = #tpu.dot_dimension_numbers<[1], [0], [0], [1], [0, 0, 1, 1], [], []>} : vector<64x22xbf16>, vector<22x512xbf16>, vector<64x512xf32> -> vector<64x512xf32>
    %c0_3 = arith.constant 0 : index
    %c0_4 = arith.constant 0 : index
    %4 = vector.load %arg3[%c0_3, %c0_4] : memref<1x512xf32, #tpu.memory_space<vmem>>, vector<1x512xf32>
    %5 = vector.broadcast %4 : vector<1x512xf32> to vector<64x512xf32>
    %6 = arith.addf %3, %5 : vector<64x512xf32>
    %c0_5 = arith.constant 0 : index
    %c0_6 = arith.constant 0 : index
    %7 = vector.load %arg2[%c0_5, %c0_6] : memref<128x512xbf16, #tpu.memory_space<vmem>>, vector<128x512xbf16>
    %c0_7 = arith.constant 0 : index
    %c0_8 = arith.constant 0 : index
    %8 = vector.load %arg4[%c0_7, %c0_8] : memref<256x512xbf16, #tpu.memory_space<vmem>>, vector<256x512xbf16>
    %c0_9 = arith.constant 0 : index
    %c0_10 = arith.constant 0 : index
    %9 = vector.load %arg5[%c0_9, %c0_10] : memref<1x512xf32, #tpu.memory_space<vmem>>, vector<1x512xf32>
    %10 = vector.shape_cast %9 : vector<1x512xf32> to vector<1x512xf32>
    %11 = vector.broadcast %10 : vector<1x512xf32> to vector<8x512xf32>
    %cst_11 = arith.constant 0.000000e+00 : f32
    %12 = vector.broadcast %cst_11 : f32 to vector<8x128xf32>
    %cst_12 = arith.constant 0.000000e+00 : f32
    %13 = vector.broadcast %cst_12 : f32 to vector<8x128xf32>
    %cst_13 = arith.constant 0.000000e+00 : f32
    %14 = vector.broadcast %cst_13 : f32 to vector<8x128xf32>
    %cst_14 = arith.constant 0.000000e+00 : f32
    %15 = vector.broadcast %cst_14 : f32 to vector<8x128xf32>
    %16 = vector.extract_strided_slice %6 {offsets = [0, 0], sizes = [8, 512], strides = [1, 1]} : vector<64x512xf32> to vector<8x512xf32>
    %17 = arith.truncf %12 : vector<8x128xf32> to vector<8x128xbf16>
    %cst_15 = arith.constant dense<0.000000e+00> : vector<8x512xf32>
    %18 = tpu.matmul %17, %7, %cst_15 {dimension_numbers = #tpu.dot_dimension_numbers<[1], [0], [0], [1], [0, 0, 1, 1], [], []>} : vector<8x128xbf16>, vector<128x512xbf16>, vector<8x512xf32> -> vector<8x512xf32>
    %19 = arith.addf %16, %18 : vector<8x512xf32>
    %20 = vector.extract_strided_slice %19 {offsets = [0, 0], sizes = [8, 128], strides = [1, 1]} : vector<8x512xf32> to vector<8x128xf32>
    %21 = arith.negf %20 : vector<8x128xf32>
    %22 = math.exp %21 : vector<8x128xf32>
    %cst_16 = arith.constant 1.000000e+00 : f32
    %23 = vector.broadcast %cst_16 : f32 to vector<8x128xf32>
    %24 = arith.addf %23, %22 : vector<8x128xf32>
    %25 = arith.divf %23, %24 : vector<8x128xf32>
    %26 = vector.extract_strided_slice %19 {offsets = [0, 128], sizes = [8, 128], strides = [1, 1]} : vector<8x512xf32> to vector<8x128xf32>
    %27 = arith.negf %26 : vector<8x128xf32>
    %28 = math.exp %27 : vector<8x128xf32>
    %cst_17 = arith.constant 1.000000e+00 : f32
    %29 = vector.broadcast %cst_17 : f32 to vector<8x128xf32>
    %30 = arith.addf %29, %28 : vector<8x128xf32>
    %31 = arith.divf %29, %30 : vector<8x128xf32>
    %32 = vector.extract_strided_slice %19 {offsets = [0, 256], sizes = [8, 128], strides = [1, 1]} : vector<8x512xf32> to vector<8x128xf32>
    %33 = math.tanh %32 : vector<8x128xf32>
    %34 = vector.extract_strided_slice %19 {offsets = [0, 384], sizes = [8, 128], strides = [1, 1]} : vector<8x512xf32> to vector<8x128xf32>
    %35 = arith.negf %34 : vector<8x128xf32>
    %36 = math.exp %35 : vector<8x128xf32>
    %cst_18 = arith.constant 1.000000e+00 : f32
    %37 = vector.broadcast %cst_18 : f32 to vector<8x128xf32>
    %38 = arith.addf %37, %36 : vector<8x128xf32>
    %39 = arith.divf %37, %38 : vector<8x128xf32>
    %40 = arith.mulf %31, %13 : vector<8x128xf32>
    %41 = arith.mulf %25, %33 : vector<8x128xf32>
    %42 = arith.addf %40, %41 : vector<8x128xf32>
    %43 = math.tanh %42 : vector<8x128xf32>
    %44 = arith.mulf %39, %43 : vector<8x128xf32>
    %45 = tpu.concatenate %44, %14 in 1 : vector<8x128xf32>, vector<8x128xf32> -> vector<8x256xf32>
    %46 = arith.truncf %45 : vector<8x256xf32> to vector<8x256xbf16>
    %cst_19 = arith.constant dense<0.000000e+00> : vector<8x512xf32>
    %47 = tpu.matmul %46, %8, %cst_19 {dimension_numbers = #tpu.dot_dimension_numbers<[1], [0], [0], [1], [0, 0, 1, 1], [], []>} : vector<8x256xbf16>, vector<256x512xbf16>, vector<8x512xf32> -> vector<8x512xf32>
    %48 = arith.addf %47, %11 : vector<8x512xf32>
    %49 = vector.extract_strided_slice %48 {offsets = [0, 0], sizes = [8, 128], strides = [1, 1]} : vector<8x512xf32> to vector<8x128xf32>
    %50 = arith.negf %49 : vector<8x128xf32>
    %51 = math.exp %50 : vector<8x128xf32>
    %cst_20 = arith.constant 1.000000e+00 : f32
    %52 = vector.broadcast %cst_20 : f32 to vector<8x128xf32>
    %53 = arith.addf %52, %51 : vector<8x128xf32>
    %54 = arith.divf %52, %53 : vector<8x128xf32>
    %55 = vector.extract_strided_slice %48 {offsets = [0, 128], sizes = [8, 128], strides = [1, 1]} : vector<8x512xf32> to vector<8x128xf32>
    %56 = arith.negf %55 : vector<8x128xf32>
    %57 = math.exp %56 : vector<8x128xf32>
    %cst_21 = arith.constant 1.000000e+00 : f32
    %58 = vector.broadcast %cst_21 : f32 to vector<8x128xf32>
    %59 = arith.addf %58, %57 : vector<8x128xf32>
    %60 = arith.divf %58, %59 : vector<8x128xf32>
    %61 = vector.extract_strided_slice %48 {offsets = [0, 256], sizes = [8, 128], strides = [1, 1]} : vector<8x512xf32> to vector<8x128xf32>
    %62 = math.tanh %61 : vector<8x128xf32>
    %63 = vector.extract_strided_slice %48 {offsets = [0, 384], sizes = [8, 128], strides = [1, 1]} : vector<8x512xf32> to vector<8x128xf32>
    %64 = arith.negf %63 : vector<8x128xf32>
    %65 = math.exp %64 : vector<8x128xf32>
    %cst_22 = arith.constant 1.000000e+00 : f32
    %66 = vector.broadcast %cst_22 : f32 to vector<8x128xf32>
    %67 = arith.addf %66, %65 : vector<8x128xf32>
    %68 = arith.divf %66, %67 : vector<8x128xf32>
    %69 = arith.mulf %60, %15 : vector<8x128xf32>
    %70 = arith.mulf %54, %62 : vector<8x128xf32>
    %71 = arith.addf %69, %70 : vector<8x128xf32>
    %72 = math.tanh %71 : vector<8x128xf32>
    %73 = arith.mulf %68, %72 : vector<8x128xf32>
    %74 = vector.extract_strided_slice %6 {offsets = [8, 0], sizes = [8, 512], strides = [1, 1]} : vector<64x512xf32> to vector<8x512xf32>
    %75 = arith.truncf %44 : vector<8x128xf32> to vector<8x128xbf16>
    %cst_23 = arith.constant dense<0.000000e+00> : vector<8x512xf32>
    %76 = tpu.matmul %75, %7, %cst_23 {dimension_numbers = #tpu.dot_dimension_numbers<[1], [0], [0], [1], [0, 0, 1, 1], [], []>} : vector<8x128xbf16>, vector<128x512xbf16>, vector<8x512xf32> -> vector<8x512xf32>
    %77 = arith.addf %74, %76 : vector<8x512xf32>
    %78 = vector.extract_strided_slice %77 {offsets = [0, 0], sizes = [8, 128], strides = [1, 1]} : vector<8x512xf32> to vector<8x128xf32>
    %79 = arith.negf %78 : vector<8x128xf32>
    %80 = math.exp %79 : vector<8x128xf32>
    %cst_24 = arith.constant 1.000000e+00 : f32
    %81 = vector.broadcast %cst_24 : f32 to vector<8x128xf32>
    %82 = arith.addf %81, %80 : vector<8x128xf32>
    %83 = arith.divf %81, %82 : vector<8x128xf32>
    %84 = vector.extract_strided_slice %77 {offsets = [0, 128], sizes = [8, 128], strides = [1, 1]} : vector<8x512xf32> to vector<8x128xf32>
    %85 = arith.negf %84 : vector<8x128xf32>
    %86 = math.exp %85 : vector<8x128xf32>
    %cst_25 = arith.constant 1.000000e+00 : f32
    %87 = vector.broadcast %cst_25 : f32 to vector<8x128xf32>
    %88 = arith.addf %87, %86 : vector<8x128xf32>
    %89 = arith.divf %87, %88 : vector<8x128xf32>
    %90 = vector.extract_strided_slice %77 {offsets = [0, 256], sizes = [8, 128], strides = [1, 1]} : vector<8x512xf32> to vector<8x128xf32>
    %91 = math.tanh %90 : vector<8x128xf32>
    %92 = vector.extract_strided_slice %77 {offsets = [0, 384], sizes = [8, 128], strides = [1, 1]} : vector<8x512xf32> to vector<8x128xf32>
    %93 = arith.negf %92 : vector<8x128xf32>
    %94 = math.exp %93 : vector<8x128xf32>
    %cst_26 = arith.constant 1.000000e+00 : f32
    %95 = vector.broadcast %cst_26 : f32 to vector<8x128xf32>
    %96 = arith.addf %95, %94 : vector<8x128xf32>
    %97 = arith.divf %95, %96 : vector<8x128xf32>
    %98 = arith.mulf %89, %42 : vector<8x128xf32>
    %99 = arith.mulf %83, %91 : vector<8x128xf32>
    %100 = arith.addf %98, %99 : vector<8x128xf32>
    %101 = math.tanh %100 : vector<8x128xf32>
    %102 = arith.mulf %97, %101 : vector<8x128xf32>
    %103 = tpu.concatenate %102, %73 in 1 : vector<8x128xf32>, vector<8x128xf32> -> vector<8x256xf32>
    %104 = arith.truncf %103 : vector<8x256xf32> to vector<8x256xbf16>
    %cst_27 = arith.constant dense<0.000000e+00> : vector<8x512xf32>
    %105 = tpu.matmul %104, %8, %cst_27 {dimension_numbers = #tpu.dot_dimension_numbers<[1], [0], [0], [1], [0, 0, 1, 1], [], []>} : vector<8x256xbf16>, vector<256x512xbf16>, vector<8x512xf32> -> vector<8x512xf32>
    %106 = arith.addf %105, %11 : vector<8x512xf32>
    %107 = vector.extract_strided_slice %106 {offsets = [0, 0], sizes = [8, 128], strides = [1, 1]} : vector<8x512xf32> to vector<8x128xf32>
    %108 = arith.negf %107 : vector<8x128xf32>
    %109 = math.exp %108 : vector<8x128xf32>
    %cst_28 = arith.constant 1.000000e+00 : f32
    %110 = vector.broadcast %cst_28 : f32 to vector<8x128xf32>
    %111 = arith.addf %110, %109 : vector<8x128xf32>
    %112 = arith.divf %110, %111 : vector<8x128xf32>
    %113 = vector.extract_strided_slice %106 {offsets = [0, 128], sizes = [8, 128], strides = [1, 1]} : vector<8x512xf32> to vector<8x128xf32>
    %114 = arith.negf %113 : vector<8x128xf32>
    %115 = math.exp %114 : vector<8x128xf32>
    %cst_29 = arith.constant 1.000000e+00 : f32
    %116 = vector.broadcast %cst_29 : f32 to vector<8x128xf32>
    %117 = arith.addf %116, %115 : vector<8x128xf32>
    %118 = arith.divf %116, %117 : vector<8x128xf32>
    %119 = vector.extract_strided_slice %106 {offsets = [0, 256], sizes = [8, 128], strides = [1, 1]} : vector<8x512xf32> to vector<8x128xf32>
    %120 = math.tanh %119 : vector<8x128xf32>
    %121 = vector.extract_strided_slice %106 {offsets = [0, 384], sizes = [8, 128], strides = [1, 1]} : vector<8x512xf32> to vector<8x128xf32>
    %122 = arith.negf %121 : vector<8x128xf32>
    %123 = math.exp %122 : vector<8x128xf32>
    %cst_30 = arith.constant 1.000000e+00 : f32
    %124 = vector.broadcast %cst_30 : f32 to vector<8x128xf32>
    %125 = arith.addf %124, %123 : vector<8x128xf32>
    %126 = arith.divf %124, %125 : vector<8x128xf32>
    %127 = arith.mulf %118, %71 : vector<8x128xf32>
    %128 = arith.mulf %112, %120 : vector<8x128xf32>
    %129 = arith.addf %127, %128 : vector<8x128xf32>
    %130 = math.tanh %129 : vector<8x128xf32>
    %131 = arith.mulf %126, %130 : vector<8x128xf32>
    %132 = vector.extract_strided_slice %6 {offsets = [16, 0], sizes = [8, 512], strides = [1, 1]} : vector<64x512xf32> to vector<8x512xf32>
    %133 = arith.truncf %102 : vector<8x128xf32> to vector<8x128xbf16>
    %cst_31 = arith.constant dense<0.000000e+00> : vector<8x512xf32>
    %134 = tpu.matmul %133, %7, %cst_31 {dimension_numbers = #tpu.dot_dimension_numbers<[1], [0], [0], [1], [0, 0, 1, 1], [], []>} : vector<8x128xbf16>, vector<128x512xbf16>, vector<8x512xf32> -> vector<8x512xf32>
    %135 = arith.addf %132, %134 : vector<8x512xf32>
    %136 = vector.extract_strided_slice %135 {offsets = [0, 0], sizes = [8, 128], strides = [1, 1]} : vector<8x512xf32> to vector<8x128xf32>
    %137 = arith.negf %136 : vector<8x128xf32>
    %138 = math.exp %137 : vector<8x128xf32>
    %cst_32 = arith.constant 1.000000e+00 : f32
    %139 = vector.broadcast %cst_32 : f32 to vector<8x128xf32>
    %140 = arith.addf %139, %138 : vector<8x128xf32>
    %141 = arith.divf %139, %140 : vector<8x128xf32>
    %142 = vector.extract_strided_slice %135 {offsets = [0, 128], sizes = [8, 128], strides = [1, 1]} : vector<8x512xf32> to vector<8x128xf32>
    %143 = arith.negf %142 : vector<8x128xf32>
    %144 = math.exp %143 : vector<8x128xf32>
    %cst_33 = arith.constant 1.000000e+00 : f32
    %145 = vector.broadcast %cst_33 : f32 to vector<8x128xf32>
    %146 = arith.addf %145, %144 : vector<8x128xf32>
    %147 = arith.divf %145, %146 : vector<8x128xf32>
    %148 = vector.extract_strided_slice %135 {offsets = [0, 256], sizes = [8, 128], strides = [1, 1]} : vector<8x512xf32> to vector<8x128xf32>
    %149 = math.tanh %148 : vector<8x128xf32>
    %150 = vector.extract_strided_slice %135 {offsets = [0, 384], sizes = [8, 128], strides = [1, 1]} : vector<8x512xf32> to vector<8x128xf32>
    %151 = arith.negf %150 : vector<8x128xf32>
    %152 = math.exp %151 : vector<8x128xf32>
    %cst_34 = arith.constant 1.000000e+00 : f32
    %153 = vector.broadcast %cst_34 : f32 to vector<8x128xf32>
    %154 = arith.addf %153, %152 : vector<8x128xf32>
    %155 = arith.divf %153, %154 : vector<8x128xf32>
    %156 = arith.mulf %147, %100 : vector<8x128xf32>
    %157 = arith.mulf %141, %149 : vector<8x128xf32>
    %158 = arith.addf %156, %157 : vector<8x128xf32>
    %159 = math.tanh %158 : vector<8x128xf32>
    %160 = arith.mulf %155, %159 : vector<8x128xf32>
    %161 = tpu.concatenate %160, %131 in 1 : vector<8x128xf32>, vector<8x128xf32> -> vector<8x256xf32>
    %162 = arith.truncf %161 : vector<8x256xf32> to vector<8x256xbf16>
    %cst_35 = arith.constant dense<0.000000e+00> : vector<8x512xf32>
    %163 = tpu.matmul %162, %8, %cst_35 {dimension_numbers = #tpu.dot_dimension_numbers<[1], [0], [0], [1], [0, 0, 1, 1], [], []>} : vector<8x256xbf16>, vector<256x512xbf16>, vector<8x512xf32> -> vector<8x512xf32>
    %164 = arith.addf %163, %11 : vector<8x512xf32>
    %165 = vector.extract_strided_slice %164 {offsets = [0, 0], sizes = [8, 128], strides = [1, 1]} : vector<8x512xf32> to vector<8x128xf32>
    %166 = arith.negf %165 : vector<8x128xf32>
    %167 = math.exp %166 : vector<8x128xf32>
    %cst_36 = arith.constant 1.000000e+00 : f32
    %168 = vector.broadcast %cst_36 : f32 to vector<8x128xf32>
    %169 = arith.addf %168, %167 : vector<8x128xf32>
    %170 = arith.divf %168, %169 : vector<8x128xf32>
    %171 = vector.extract_strided_slice %164 {offsets = [0, 128], sizes = [8, 128], strides = [1, 1]} : vector<8x512xf32> to vector<8x128xf32>
    %172 = arith.negf %171 : vector<8x128xf32>
    %173 = math.exp %172 : vector<8x128xf32>
    %cst_37 = arith.constant 1.000000e+00 : f32
    %174 = vector.broadcast %cst_37 : f32 to vector<8x128xf32>
    %175 = arith.addf %174, %173 : vector<8x128xf32>
    %176 = arith.divf %174, %175 : vector<8x128xf32>
    %177 = vector.extract_strided_slice %164 {offsets = [0, 256], sizes = [8, 128], strides = [1, 1]} : vector<8x512xf32> to vector<8x128xf32>
    %178 = math.tanh %177 : vector<8x128xf32>
    %179 = vector.extract_strided_slice %164 {offsets = [0, 384], sizes = [8, 128], strides = [1, 1]} : vector<8x512xf32> to vector<8x128xf32>
    %180 = arith.negf %179 : vector<8x128xf32>
    %181 = math.exp %180 : vector<8x128xf32>
    %cst_38 = arith.constant 1.000000e+00 : f32
    %182 = vector.broadcast %cst_38 : f32 to vector<8x128xf32>
    %183 = arith.addf %182, %181 : vector<8x128xf32>
    %184 = arith.divf %182, %183 : vector<8x128xf32>
    %185 = arith.mulf %176, %129 : vector<8x128xf32>
    %186 = arith.mulf %170, %178 : vector<8x128xf32>
    %187 = arith.addf %185, %186 : vector<8x128xf32>
    %188 = math.tanh %187 : vector<8x128xf32>
    %189 = arith.mulf %184, %188 : vector<8x128xf32>
    %190 = vector.extract_strided_slice %6 {offsets = [24, 0], sizes = [8, 512], strides = [1, 1]} : vector<64x512xf32> to vector<8x512xf32>
    %191 = arith.truncf %160 : vector<8x128xf32> to vector<8x128xbf16>
    %cst_39 = arith.constant dense<0.000000e+00> : vector<8x512xf32>
    %192 = tpu.matmul %191, %7, %cst_39 {dimension_numbers = #tpu.dot_dimension_numbers<[1], [0], [0], [1], [0, 0, 1, 1], [], []>} : vector<8x128xbf16>, vector<128x512xbf16>, vector<8x512xf32> -> vector<8x512xf32>
    %193 = arith.addf %190, %192 : vector<8x512xf32>
    %194 = vector.extract_strided_slice %193 {offsets = [0, 0], sizes = [8, 128], strides = [1, 1]} : vector<8x512xf32> to vector<8x128xf32>
    %195 = arith.negf %194 : vector<8x128xf32>
    %196 = math.exp %195 : vector<8x128xf32>
    %cst_40 = arith.constant 1.000000e+00 : f32
    %197 = vector.broadcast %cst_40 : f32 to vector<8x128xf32>
    %198 = arith.addf %197, %196 : vector<8x128xf32>
    %199 = arith.divf %197, %198 : vector<8x128xf32>
    %200 = vector.extract_strided_slice %193 {offsets = [0, 128], sizes = [8, 128], strides = [1, 1]} : vector<8x512xf32> to vector<8x128xf32>
    %201 = arith.negf %200 : vector<8x128xf32>
    %202 = math.exp %201 : vector<8x128xf32>
    %cst_41 = arith.constant 1.000000e+00 : f32
    %203 = vector.broadcast %cst_41 : f32 to vector<8x128xf32>
    %204 = arith.addf %203, %202 : vector<8x128xf32>
    %205 = arith.divf %203, %204 : vector<8x128xf32>
    %206 = vector.extract_strided_slice %193 {offsets = [0, 256], sizes = [8, 128], strides = [1, 1]} : vector<8x512xf32> to vector<8x128xf32>
    %207 = math.tanh %206 : vector<8x128xf32>
    %208 = vector.extract_strided_slice %193 {offsets = [0, 384], sizes = [8, 128], strides = [1, 1]} : vector<8x512xf32> to vector<8x128xf32>
    %209 = arith.negf %208 : vector<8x128xf32>
    %210 = math.exp %209 : vector<8x128xf32>
    %cst_42 = arith.constant 1.000000e+00 : f32
    %211 = vector.broadcast %cst_42 : f32 to vector<8x128xf32>
    %212 = arith.addf %211, %210 : vector<8x128xf32>
    %213 = arith.divf %211, %212 : vector<8x128xf32>
    %214 = arith.mulf %205, %158 : vector<8x128xf32>
    %215 = arith.mulf %199, %207 : vector<8x128xf32>
    %216 = arith.addf %214, %215 : vector<8x128xf32>
    %217 = math.tanh %216 : vector<8x128xf32>
    %218 = arith.mulf %213, %217 : vector<8x128xf32>
    %219 = tpu.concatenate %218, %189 in 1 : vector<8x128xf32>, vector<8x128xf32> -> vector<8x256xf32>
    %220 = arith.truncf %219 : vector<8x256xf32> to vector<8x256xbf16>
    %cst_43 = arith.constant dense<0.000000e+00> : vector<8x512xf32>
    %221 = tpu.matmul %220, %8, %cst_43 {dimension_numbers = #tpu.dot_dimension_numbers<[1], [0], [0], [1], [0, 0, 1, 1], [], []>} : vector<8x256xbf16>, vector<256x512xbf16>, vector<8x512xf32> -> vector<8x512xf32>
    %222 = arith.addf %221, %11 : vector<8x512xf32>
    %223 = vector.extract_strided_slice %222 {offsets = [0, 0], sizes = [8, 128], strides = [1, 1]} : vector<8x512xf32> to vector<8x128xf32>
    %224 = arith.negf %223 : vector<8x128xf32>
    %225 = math.exp %224 : vector<8x128xf32>
    %cst_44 = arith.constant 1.000000e+00 : f32
    %226 = vector.broadcast %cst_44 : f32 to vector<8x128xf32>
    %227 = arith.addf %226, %225 : vector<8x128xf32>
    %228 = arith.divf %226, %227 : vector<8x128xf32>
    %229 = vector.extract_strided_slice %222 {offsets = [0, 128], sizes = [8, 128], strides = [1, 1]} : vector<8x512xf32> to vector<8x128xf32>
    %230 = arith.negf %229 : vector<8x128xf32>
    %231 = math.exp %230 : vector<8x128xf32>
    %cst_45 = arith.constant 1.000000e+00 : f32
    %232 = vector.broadcast %cst_45 : f32 to vector<8x128xf32>
    %233 = arith.addf %232, %231 : vector<8x128xf32>
    %234 = arith.divf %232, %233 : vector<8x128xf32>
    %235 = vector.extract_strided_slice %222 {offsets = [0, 256], sizes = [8, 128], strides = [1, 1]} : vector<8x512xf32> to vector<8x128xf32>
    %236 = math.tanh %235 : vector<8x128xf32>
    %237 = vector.extract_strided_slice %222 {offsets = [0, 384], sizes = [8, 128], strides = [1, 1]} : vector<8x512xf32> to vector<8x128xf32>
    %238 = arith.negf %237 : vector<8x128xf32>
    %239 = math.exp %238 : vector<8x128xf32>
    %cst_46 = arith.constant 1.000000e+00 : f32
    %240 = vector.broadcast %cst_46 : f32 to vector<8x128xf32>
    %241 = arith.addf %240, %239 : vector<8x128xf32>
    %242 = arith.divf %240, %241 : vector<8x128xf32>
    %243 = arith.mulf %234, %187 : vector<8x128xf32>
    %244 = arith.mulf %228, %236 : vector<8x128xf32>
    %245 = arith.addf %243, %244 : vector<8x128xf32>
    %246 = math.tanh %245 : vector<8x128xf32>
    %247 = arith.mulf %242, %246 : vector<8x128xf32>
    %248 = vector.extract_strided_slice %6 {offsets = [32, 0], sizes = [8, 512], strides = [1, 1]} : vector<64x512xf32> to vector<8x512xf32>
    %249 = arith.truncf %218 : vector<8x128xf32> to vector<8x128xbf16>
    %cst_47 = arith.constant dense<0.000000e+00> : vector<8x512xf32>
    %250 = tpu.matmul %249, %7, %cst_47 {dimension_numbers = #tpu.dot_dimension_numbers<[1], [0], [0], [1], [0, 0, 1, 1], [], []>} : vector<8x128xbf16>, vector<128x512xbf16>, vector<8x512xf32> -> vector<8x512xf32>
    %251 = arith.addf %248, %250 : vector<8x512xf32>
    %252 = vector.extract_strided_slice %251 {offsets = [0, 0], sizes = [8, 128], strides = [1, 1]} : vector<8x512xf32> to vector<8x128xf32>
    %253 = arith.negf %252 : vector<8x128xf32>
    %254 = math.exp %253 : vector<8x128xf32>
    %cst_48 = arith.constant 1.000000e+00 : f32
    %255 = vector.broadcast %cst_48 : f32 to vector<8x128xf32>
    %256 = arith.addf %255, %254 : vector<8x128xf32>
    %257 = arith.divf %255, %256 : vector<8x128xf32>
    %258 = vector.extract_strided_slice %251 {offsets = [0, 128], sizes = [8, 128], strides = [1, 1]} : vector<8x512xf32> to vector<8x128xf32>
    %259 = arith.negf %258 : vector<8x128xf32>
    %260 = math.exp %259 : vector<8x128xf32>
    %cst_49 = arith.constant 1.000000e+00 : f32
    %261 = vector.broadcast %cst_49 : f32 to vector<8x128xf32>
    %262 = arith.addf %261, %260 : vector<8x128xf32>
    %263 = arith.divf %261, %262 : vector<8x128xf32>
    %264 = vector.extract_strided_slice %251 {offsets = [0, 256], sizes = [8, 128], strides = [1, 1]} : vector<8x512xf32> to vector<8x128xf32>
    %265 = math.tanh %264 : vector<8x128xf32>
    %266 = vector.extract_strided_slice %251 {offsets = [0, 384], sizes = [8, 128], strides = [1, 1]} : vector<8x512xf32> to vector<8x128xf32>
    %267 = arith.negf %266 : vector<8x128xf32>
    %268 = math.exp %267 : vector<8x128xf32>
    %cst_50 = arith.constant 1.000000e+00 : f32
    %269 = vector.broadcast %cst_50 : f32 to vector<8x128xf32>
    %270 = arith.addf %269, %268 : vector<8x128xf32>
    %271 = arith.divf %269, %270 : vector<8x128xf32>
    %272 = arith.mulf %263, %216 : vector<8x128xf32>
    %273 = arith.mulf %257, %265 : vector<8x128xf32>
    %274 = arith.addf %272, %273 : vector<8x128xf32>
    %275 = math.tanh %274 : vector<8x128xf32>
    %276 = arith.mulf %271, %275 : vector<8x128xf32>
    %277 = tpu.concatenate %276, %247 in 1 : vector<8x128xf32>, vector<8x128xf32> -> vector<8x256xf32>
    %278 = arith.truncf %277 : vector<8x256xf32> to vector<8x256xbf16>
    %cst_51 = arith.constant dense<0.000000e+00> : vector<8x512xf32>
    %279 = tpu.matmul %278, %8, %cst_51 {dimension_numbers = #tpu.dot_dimension_numbers<[1], [0], [0], [1], [0, 0, 1, 1], [], []>} : vector<8x256xbf16>, vector<256x512xbf16>, vector<8x512xf32> -> vector<8x512xf32>
    %280 = arith.addf %279, %11 : vector<8x512xf32>
    %281 = vector.extract_strided_slice %280 {offsets = [0, 0], sizes = [8, 128], strides = [1, 1]} : vector<8x512xf32> to vector<8x128xf32>
    %282 = arith.negf %281 : vector<8x128xf32>
    %283 = math.exp %282 : vector<8x128xf32>
    %cst_52 = arith.constant 1.000000e+00 : f32
    %284 = vector.broadcast %cst_52 : f32 to vector<8x128xf32>
    %285 = arith.addf %284, %283 : vector<8x128xf32>
    %286 = arith.divf %284, %285 : vector<8x128xf32>
    %287 = vector.extract_strided_slice %280 {offsets = [0, 128], sizes = [8, 128], strides = [1, 1]} : vector<8x512xf32> to vector<8x128xf32>
    %288 = arith.negf %287 : vector<8x128xf32>
    %289 = math.exp %288 : vector<8x128xf32>
    %cst_53 = arith.constant 1.000000e+00 : f32
    %290 = vector.broadcast %cst_53 : f32 to vector<8x128xf32>
    %291 = arith.addf %290, %289 : vector<8x128xf32>
    %292 = arith.divf %290, %291 : vector<8x128xf32>
    %293 = vector.extract_strided_slice %280 {offsets = [0, 256], sizes = [8, 128], strides = [1, 1]} : vector<8x512xf32> to vector<8x128xf32>
    %294 = math.tanh %293 : vector<8x128xf32>
    %295 = vector.extract_strided_slice %280 {offsets = [0, 384], sizes = [8, 128], strides = [1, 1]} : vector<8x512xf32> to vector<8x128xf32>
    %296 = arith.negf %295 : vector<8x128xf32>
    %297 = math.exp %296 : vector<8x128xf32>
    %cst_54 = arith.constant 1.000000e+00 : f32
    %298 = vector.broadcast %cst_54 : f32 to vector<8x128xf32>
    %299 = arith.addf %298, %297 : vector<8x128xf32>
    %300 = arith.divf %298, %299 : vector<8x128xf32>
    %301 = arith.mulf %292, %245 : vector<8x128xf32>
    %302 = arith.mulf %286, %294 : vector<8x128xf32>
    %303 = arith.addf %301, %302 : vector<8x128xf32>
    %304 = math.tanh %303 : vector<8x128xf32>
    %305 = arith.mulf %300, %304 : vector<8x128xf32>
    %306 = vector.extract_strided_slice %6 {offsets = [40, 0], sizes = [8, 512], strides = [1, 1]} : vector<64x512xf32> to vector<8x512xf32>
    %307 = arith.truncf %276 : vector<8x128xf32> to vector<8x128xbf16>
    %cst_55 = arith.constant dense<0.000000e+00> : vector<8x512xf32>
    %308 = tpu.matmul %307, %7, %cst_55 {dimension_numbers = #tpu.dot_dimension_numbers<[1], [0], [0], [1], [0, 0, 1, 1], [], []>} : vector<8x128xbf16>, vector<128x512xbf16>, vector<8x512xf32> -> vector<8x512xf32>
    %309 = arith.addf %306, %308 : vector<8x512xf32>
    %310 = vector.extract_strided_slice %309 {offsets = [0, 0], sizes = [8, 128], strides = [1, 1]} : vector<8x512xf32> to vector<8x128xf32>
    %311 = arith.negf %310 : vector<8x128xf32>
    %312 = math.exp %311 : vector<8x128xf32>
    %cst_56 = arith.constant 1.000000e+00 : f32
    %313 = vector.broadcast %cst_56 : f32 to vector<8x128xf32>
    %314 = arith.addf %313, %312 : vector<8x128xf32>
    %315 = arith.divf %313, %314 : vector<8x128xf32>
    %316 = vector.extract_strided_slice %309 {offsets = [0, 128], sizes = [8, 128], strides = [1, 1]} : vector<8x512xf32> to vector<8x128xf32>
    %317 = arith.negf %316 : vector<8x128xf32>
    %318 = math.exp %317 : vector<8x128xf32>
    %cst_57 = arith.constant 1.000000e+00 : f32
    %319 = vector.broadcast %cst_57 : f32 to vector<8x128xf32>
    %320 = arith.addf %319, %318 : vector<8x128xf32>
    %321 = arith.divf %319, %320 : vector<8x128xf32>
    %322 = vector.extract_strided_slice %309 {offsets = [0, 256], sizes = [8, 128], strides = [1, 1]} : vector<8x512xf32> to vector<8x128xf32>
    %323 = math.tanh %322 : vector<8x128xf32>
    %324 = vector.extract_strided_slice %309 {offsets = [0, 384], sizes = [8, 128], strides = [1, 1]} : vector<8x512xf32> to vector<8x128xf32>
    %325 = arith.negf %324 : vector<8x128xf32>
    %326 = math.exp %325 : vector<8x128xf32>
    %cst_58 = arith.constant 1.000000e+00 : f32
    %327 = vector.broadcast %cst_58 : f32 to vector<8x128xf32>
    %328 = arith.addf %327, %326 : vector<8x128xf32>
    %329 = arith.divf %327, %328 : vector<8x128xf32>
    %330 = arith.mulf %321, %274 : vector<8x128xf32>
    %331 = arith.mulf %315, %323 : vector<8x128xf32>
    %332 = arith.addf %330, %331 : vector<8x128xf32>
    %333 = math.tanh %332 : vector<8x128xf32>
    %334 = arith.mulf %329, %333 : vector<8x128xf32>
    %335 = tpu.concatenate %334, %305 in 1 : vector<8x128xf32>, vector<8x128xf32> -> vector<8x256xf32>
    %336 = arith.truncf %335 : vector<8x256xf32> to vector<8x256xbf16>
    %cst_59 = arith.constant dense<0.000000e+00> : vector<8x512xf32>
    %337 = tpu.matmul %336, %8, %cst_59 {dimension_numbers = #tpu.dot_dimension_numbers<[1], [0], [0], [1], [0, 0, 1, 1], [], []>} : vector<8x256xbf16>, vector<256x512xbf16>, vector<8x512xf32> -> vector<8x512xf32>
    %338 = arith.addf %337, %11 : vector<8x512xf32>
    %339 = vector.extract_strided_slice %338 {offsets = [0, 0], sizes = [8, 128], strides = [1, 1]} : vector<8x512xf32> to vector<8x128xf32>
    %340 = arith.negf %339 : vector<8x128xf32>
    %341 = math.exp %340 : vector<8x128xf32>
    %cst_60 = arith.constant 1.000000e+00 : f32
    %342 = vector.broadcast %cst_60 : f32 to vector<8x128xf32>
    %343 = arith.addf %342, %341 : vector<8x128xf32>
    %344 = arith.divf %342, %343 : vector<8x128xf32>
    %345 = vector.extract_strided_slice %338 {offsets = [0, 128], sizes = [8, 128], strides = [1, 1]} : vector<8x512xf32> to vector<8x128xf32>
    %346 = arith.negf %345 : vector<8x128xf32>
    %347 = math.exp %346 : vector<8x128xf32>
    %cst_61 = arith.constant 1.000000e+00 : f32
    %348 = vector.broadcast %cst_61 : f32 to vector<8x128xf32>
    %349 = arith.addf %348, %347 : vector<8x128xf32>
    %350 = arith.divf %348, %349 : vector<8x128xf32>
    %351 = vector.extract_strided_slice %338 {offsets = [0, 256], sizes = [8, 128], strides = [1, 1]} : vector<8x512xf32> to vector<8x128xf32>
    %352 = math.tanh %351 : vector<8x128xf32>
    %353 = vector.extract_strided_slice %338 {offsets = [0, 384], sizes = [8, 128], strides = [1, 1]} : vector<8x512xf32> to vector<8x128xf32>
    %354 = arith.negf %353 : vector<8x128xf32>
    %355 = math.exp %354 : vector<8x128xf32>
    %cst_62 = arith.constant 1.000000e+00 : f32
    %356 = vector.broadcast %cst_62 : f32 to vector<8x128xf32>
    %357 = arith.addf %356, %355 : vector<8x128xf32>
    %358 = arith.divf %356, %357 : vector<8x128xf32>
    %359 = arith.mulf %350, %303 : vector<8x128xf32>
    %360 = arith.mulf %344, %352 : vector<8x128xf32>
    %361 = arith.addf %359, %360 : vector<8x128xf32>
    %362 = math.tanh %361 : vector<8x128xf32>
    %363 = arith.mulf %358, %362 : vector<8x128xf32>
    %364 = vector.extract_strided_slice %6 {offsets = [48, 0], sizes = [8, 512], strides = [1, 1]} : vector<64x512xf32> to vector<8x512xf32>
    %365 = arith.truncf %334 : vector<8x128xf32> to vector<8x128xbf16>
    %cst_63 = arith.constant dense<0.000000e+00> : vector<8x512xf32>
    %366 = tpu.matmul %365, %7, %cst_63 {dimension_numbers = #tpu.dot_dimension_numbers<[1], [0], [0], [1], [0, 0, 1, 1], [], []>} : vector<8x128xbf16>, vector<128x512xbf16>, vector<8x512xf32> -> vector<8x512xf32>
    %367 = arith.addf %364, %366 : vector<8x512xf32>
    %368 = vector.extract_strided_slice %367 {offsets = [0, 0], sizes = [8, 128], strides = [1, 1]} : vector<8x512xf32> to vector<8x128xf32>
    %369 = arith.negf %368 : vector<8x128xf32>
    %370 = math.exp %369 : vector<8x128xf32>
    %cst_64 = arith.constant 1.000000e+00 : f32
    %371 = vector.broadcast %cst_64 : f32 to vector<8x128xf32>
    %372 = arith.addf %371, %370 : vector<8x128xf32>
    %373 = arith.divf %371, %372 : vector<8x128xf32>
    %374 = vector.extract_strided_slice %367 {offsets = [0, 128], sizes = [8, 128], strides = [1, 1]} : vector<8x512xf32> to vector<8x128xf32>
    %375 = arith.negf %374 : vector<8x128xf32>
    %376 = math.exp %375 : vector<8x128xf32>
    %cst_65 = arith.constant 1.000000e+00 : f32
    %377 = vector.broadcast %cst_65 : f32 to vector<8x128xf32>
    %378 = arith.addf %377, %376 : vector<8x128xf32>
    %379 = arith.divf %377, %378 : vector<8x128xf32>
    %380 = vector.extract_strided_slice %367 {offsets = [0, 256], sizes = [8, 128], strides = [1, 1]} : vector<8x512xf32> to vector<8x128xf32>
    %381 = math.tanh %380 : vector<8x128xf32>
    %382 = vector.extract_strided_slice %367 {offsets = [0, 384], sizes = [8, 128], strides = [1, 1]} : vector<8x512xf32> to vector<8x128xf32>
    %383 = arith.negf %382 : vector<8x128xf32>
    %384 = math.exp %383 : vector<8x128xf32>
    %cst_66 = arith.constant 1.000000e+00 : f32
    %385 = vector.broadcast %cst_66 : f32 to vector<8x128xf32>
    %386 = arith.addf %385, %384 : vector<8x128xf32>
    %387 = arith.divf %385, %386 : vector<8x128xf32>
    %388 = arith.mulf %379, %332 : vector<8x128xf32>
    %389 = arith.mulf %373, %381 : vector<8x128xf32>
    %390 = arith.addf %388, %389 : vector<8x128xf32>
    %391 = math.tanh %390 : vector<8x128xf32>
    %392 = arith.mulf %387, %391 : vector<8x128xf32>
    %393 = tpu.concatenate %392, %363 in 1 : vector<8x128xf32>, vector<8x128xf32> -> vector<8x256xf32>
    %394 = arith.truncf %393 : vector<8x256xf32> to vector<8x256xbf16>
    %cst_67 = arith.constant dense<0.000000e+00> : vector<8x512xf32>
    %395 = tpu.matmul %394, %8, %cst_67 {dimension_numbers = #tpu.dot_dimension_numbers<[1], [0], [0], [1], [0, 0, 1, 1], [], []>} : vector<8x256xbf16>, vector<256x512xbf16>, vector<8x512xf32> -> vector<8x512xf32>
    %396 = arith.addf %395, %11 : vector<8x512xf32>
    %397 = vector.extract_strided_slice %396 {offsets = [0, 0], sizes = [8, 128], strides = [1, 1]} : vector<8x512xf32> to vector<8x128xf32>
    %398 = arith.negf %397 : vector<8x128xf32>
    %399 = math.exp %398 : vector<8x128xf32>
    %cst_68 = arith.constant 1.000000e+00 : f32
    %400 = vector.broadcast %cst_68 : f32 to vector<8x128xf32>
    %401 = arith.addf %400, %399 : vector<8x128xf32>
    %402 = arith.divf %400, %401 : vector<8x128xf32>
    %403 = vector.extract_strided_slice %396 {offsets = [0, 128], sizes = [8, 128], strides = [1, 1]} : vector<8x512xf32> to vector<8x128xf32>
    %404 = arith.negf %403 : vector<8x128xf32>
    %405 = math.exp %404 : vector<8x128xf32>
    %cst_69 = arith.constant 1.000000e+00 : f32
    %406 = vector.broadcast %cst_69 : f32 to vector<8x128xf32>
    %407 = arith.addf %406, %405 : vector<8x128xf32>
    %408 = arith.divf %406, %407 : vector<8x128xf32>
    %409 = vector.extract_strided_slice %396 {offsets = [0, 256], sizes = [8, 128], strides = [1, 1]} : vector<8x512xf32> to vector<8x128xf32>
    %410 = math.tanh %409 : vector<8x128xf32>
    %411 = vector.extract_strided_slice %396 {offsets = [0, 384], sizes = [8, 128], strides = [1, 1]} : vector<8x512xf32> to vector<8x128xf32>
    %412 = arith.negf %411 : vector<8x128xf32>
    %413 = math.exp %412 : vector<8x128xf32>
    %cst_70 = arith.constant 1.000000e+00 : f32
    %414 = vector.broadcast %cst_70 : f32 to vector<8x128xf32>
    %415 = arith.addf %414, %413 : vector<8x128xf32>
    %416 = arith.divf %414, %415 : vector<8x128xf32>
    %417 = arith.mulf %408, %361 : vector<8x128xf32>
    %418 = arith.mulf %402, %410 : vector<8x128xf32>
    %419 = arith.addf %417, %418 : vector<8x128xf32>
    %420 = math.tanh %419 : vector<8x128xf32>
    %421 = arith.mulf %416, %420 : vector<8x128xf32>
    %422 = vector.extract_strided_slice %6 {offsets = [56, 0], sizes = [8, 512], strides = [1, 1]} : vector<64x512xf32> to vector<8x512xf32>
    %423 = arith.truncf %392 : vector<8x128xf32> to vector<8x128xbf16>
    %cst_71 = arith.constant dense<0.000000e+00> : vector<8x512xf32>
    %424 = tpu.matmul %423, %7, %cst_71 {dimension_numbers = #tpu.dot_dimension_numbers<[1], [0], [0], [1], [0, 0, 1, 1], [], []>} : vector<8x128xbf16>, vector<128x512xbf16>, vector<8x512xf32> -> vector<8x512xf32>
    %425 = arith.addf %422, %424 : vector<8x512xf32>
    %426 = vector.extract_strided_slice %425 {offsets = [0, 0], sizes = [8, 128], strides = [1, 1]} : vector<8x512xf32> to vector<8x128xf32>
    %427 = arith.negf %426 : vector<8x128xf32>
    %428 = math.exp %427 : vector<8x128xf32>
    %cst_72 = arith.constant 1.000000e+00 : f32
    %429 = vector.broadcast %cst_72 : f32 to vector<8x128xf32>
    %430 = arith.addf %429, %428 : vector<8x128xf32>
    %431 = arith.divf %429, %430 : vector<8x128xf32>
    %432 = vector.extract_strided_slice %425 {offsets = [0, 128], sizes = [8, 128], strides = [1, 1]} : vector<8x512xf32> to vector<8x128xf32>
    %433 = arith.negf %432 : vector<8x128xf32>
    %434 = math.exp %433 : vector<8x128xf32>
    %cst_73 = arith.constant 1.000000e+00 : f32
    %435 = vector.broadcast %cst_73 : f32 to vector<8x128xf32>
    %436 = arith.addf %435, %434 : vector<8x128xf32>
    %437 = arith.divf %435, %436 : vector<8x128xf32>
    %438 = vector.extract_strided_slice %425 {offsets = [0, 256], sizes = [8, 128], strides = [1, 1]} : vector<8x512xf32> to vector<8x128xf32>
    %439 = math.tanh %438 : vector<8x128xf32>
    %440 = vector.extract_strided_slice %425 {offsets = [0, 384], sizes = [8, 128], strides = [1, 1]} : vector<8x512xf32> to vector<8x128xf32>
    %441 = arith.negf %440 : vector<8x128xf32>
    %442 = math.exp %441 : vector<8x128xf32>
    %cst_74 = arith.constant 1.000000e+00 : f32
    %443 = vector.broadcast %cst_74 : f32 to vector<8x128xf32>
    %444 = arith.addf %443, %442 : vector<8x128xf32>
    %445 = arith.divf %443, %444 : vector<8x128xf32>
    %446 = arith.mulf %437, %390 : vector<8x128xf32>
    %447 = arith.mulf %431, %439 : vector<8x128xf32>
    %448 = arith.addf %446, %447 : vector<8x128xf32>
    %449 = math.tanh %448 : vector<8x128xf32>
    %450 = arith.mulf %445, %449 : vector<8x128xf32>
    %451 = tpu.concatenate %450, %421 in 1 : vector<8x128xf32>, vector<8x128xf32> -> vector<8x256xf32>
    %452 = arith.truncf %451 : vector<8x256xf32> to vector<8x256xbf16>
    %cst_75 = arith.constant dense<0.000000e+00> : vector<8x512xf32>
    %453 = tpu.matmul %452, %8, %cst_75 {dimension_numbers = #tpu.dot_dimension_numbers<[1], [0], [0], [1], [0, 0, 1, 1], [], []>} : vector<8x256xbf16>, vector<256x512xbf16>, vector<8x512xf32> -> vector<8x512xf32>
    %454 = arith.addf %453, %11 : vector<8x512xf32>
    %455 = vector.extract_strided_slice %454 {offsets = [0, 0], sizes = [8, 128], strides = [1, 1]} : vector<8x512xf32> to vector<8x128xf32>
    %456 = arith.negf %455 : vector<8x128xf32>
    %457 = math.exp %456 : vector<8x128xf32>
    %cst_76 = arith.constant 1.000000e+00 : f32
    %458 = vector.broadcast %cst_76 : f32 to vector<8x128xf32>
    %459 = arith.addf %458, %457 : vector<8x128xf32>
    %460 = arith.divf %458, %459 : vector<8x128xf32>
    %461 = vector.extract_strided_slice %454 {offsets = [0, 128], sizes = [8, 128], strides = [1, 1]} : vector<8x512xf32> to vector<8x128xf32>
    %462 = arith.negf %461 : vector<8x128xf32>
    %463 = math.exp %462 : vector<8x128xf32>
    %cst_77 = arith.constant 1.000000e+00 : f32
    %464 = vector.broadcast %cst_77 : f32 to vector<8x128xf32>
    %465 = arith.addf %464, %463 : vector<8x128xf32>
    %466 = arith.divf %464, %465 : vector<8x128xf32>
    %467 = vector.extract_strided_slice %454 {offsets = [0, 256], sizes = [8, 128], strides = [1, 1]} : vector<8x512xf32> to vector<8x128xf32>
    %468 = math.tanh %467 : vector<8x128xf32>
    %469 = vector.extract_strided_slice %454 {offsets = [0, 384], sizes = [8, 128], strides = [1, 1]} : vector<8x512xf32> to vector<8x128xf32>
    %470 = arith.negf %469 : vector<8x128xf32>
    %471 = math.exp %470 : vector<8x128xf32>
    %cst_78 = arith.constant 1.000000e+00 : f32
    %472 = vector.broadcast %cst_78 : f32 to vector<8x128xf32>
    %473 = arith.addf %472, %471 : vector<8x128xf32>
    %474 = arith.divf %472, %473 : vector<8x128xf32>
    %475 = arith.mulf %466, %419 : vector<8x128xf32>
    %476 = arith.mulf %460, %468 : vector<8x128xf32>
    %477 = arith.addf %475, %476 : vector<8x128xf32>
    %478 = math.tanh %477 : vector<8x128xf32>
    %479 = arith.mulf %474, %478 : vector<8x128xf32>
    %480 = arith.truncf %479 : vector<8x128xf32> to vector<8x128xbf16>
    %c0_79 = arith.constant 0 : index
    %c0_80 = arith.constant 0 : index
    %481 = vector.load %arg6[%c0_79, %c0_80] : memref<128x10xbf16, #tpu.memory_space<vmem>>, vector<128x10xbf16>
    %cst_81 = arith.constant dense<0.000000e+00> : vector<8x10xf32>
    %482 = tpu.matmul %480, %481, %cst_81 {dimension_numbers = #tpu.dot_dimension_numbers<[1], [0], [0], [1], [0, 0, 1, 1], [], []>} : vector<8x128xbf16>, vector<128x10xbf16>, vector<8x10xf32> -> vector<8x10xf32>
    %c0_82 = arith.constant 0 : index
    %c0_83 = arith.constant 0 : index
    %483 = vector.load %arg7[%c0_82, %c0_83] : memref<1x10xf32, #tpu.memory_space<vmem>>, vector<1x10xf32>
    %484 = vector.broadcast %483 : vector<1x10xf32> to vector<8x10xf32>
    %485 = arith.addf %482, %484 : vector<8x10xf32>
    %c0_84 = arith.constant 0 : index
    %c0_85 = arith.constant 0 : index
    %486 = vector.load %arg8[%c0_84, %c0_85] : memref<8x10xf32, #tpu.memory_space<vmem>>, vector<8x10xf32>
    tpu.vector_store %arg8[%c0_84, %c0_85], %485 {strides = array<i32>} : memref<8x10xf32, #tpu.memory_space<vmem>>, vector<8x10xf32>,
    return
  }
}

</mosaic_0001>

<llo_original>
// kernel: tpu_custom_call.1
$region0: #{tpu_custom_call.1}
  #allocation0 [shape = 'u32[]', space=smem, size = 0x4, offset = 0x4, fixed_abs, tag = 'smem constant byte address 0x4 - core index']
  #allocation1 [shape = 'u32[72,128]{1,0:T(1,128)}', space=vmem, size = 0x9000, scoped, tag = 'internal scratch']
  %s0 = inlined_call_operand.vmem [shape: f32[64,22], index: 0, kind: input, shape index: {}]
  %s1 = inlined_call_operand.vmem [shape: bf16[22,512], index: 1, kind: input, shape index: {}]
  %s2 = inlined_call_operand.hbm [shape: bf16[128,512], index: 2, kind: input, shape index: {}]
  %s3 = inlined_call_operand.vmem [shape: f32[1,512], index: 3, kind: input, shape index: {}]
  %s4 = inlined_call_operand.hbm [shape: bf16[256,512], index: 4, kind: input, shape index: {}]
  %s5 = inlined_call_operand.vmem [shape: f32[1,512], index: 5, kind: input, shape index: {}]
  %s6 = inlined_call_operand.vmem [shape: bf16[128,10], index: 6, kind: input, shape index: {}]
  %s7 = inlined_call_operand.vmem [shape: f32[1,10], index: 7, kind: input, shape index: {}]
  %s8 = inlined_call_operand.hbm [shape: f32[8,10], index: 8, kind: output, shape index: {}]
  %s9 = sld [smem:[#allocation0]]
  $region50: #{tpu_custom_call.1} parent=0
    _
  %s11 = ssub.s32 1, %s9
  %s12 = scalar_select 0, %s11, %s9
  $region1: #{tpu_custom_call.1} parent=0
    #allocation2 [shape = 'u8[131072]{0}', space=vmem, size = 0x20000, scoped, tag = 'input window, operand 2, single buffered']
    #allocation3 [shape = 's32[1]{0}', space=sflag, size = 0x4, scoped, tag = 'scoped memory for tpu_custom_call.1']
    #allocation4 [shape = 's32[1]{0}', space=sflag, size = 0x4, scoped, tag = 'scoped memory for tpu_custom_call.1']
    #allocation5 [shape = 'u8[262144]{0}', space=vmem, size = 0x40000, scoped, tag = 'input window, operand 4, single buffered']
    #allocation6 [shape = 's32[1]{0}', space=sflag, size = 0x4, scoped, tag = 'scoped memory for tpu_custom_call.1']
    #allocation7 [shape = 'u8[4096]{0}', space=vmem, size = 0x1000, scoped, tag = 'output window, operand 0, single buffered']
    %13 = vsyncpa [#allocation3], 0
    %14 = vsyncpa [#allocation6], 0
    %15 = vsyncpa [#allocation4], 0
    // Predicated region
    $region2: #{tpu_custom_call.1} parent=1 // pred_check
      _
    $region3: #{tpu_custom_call.1} parent=1 // pred_check_branch
      %17 = sbr.rel (0) target = $region5
    $region4: #{tpu_custom_call.1} parent=1 // pred_region
      _
    $region5: #{tpu_custom_call.1} parent=1 // pred_fallthru
      _
    // Predicated region
    $region6: #{tpu_custom_call.1} parent=1 // pred_check
      _
    $region7: #{tpu_custom_call.1} parent=1 // pred_check_branch
      %19 = sbr.rel (0) target = $region9
    $region8: #{tpu_custom_call.1} parent=1 // pred_region
      _
    $region9: #{tpu_custom_call.1} parent=1 // pred_fallthru
      _
    // Predicated region
    $region10: #{tpu_custom_call.1} parent=1 // pred_check
      _
    $region11: #{tpu_custom_call.1} parent=1 // pred_check_branch
      %21 = sbr.rel (0) target = $region13
    $region12: #{tpu_custom_call.1} parent=1 // pred_region
      %23 = vsyncadd [#allocation3], 0
      %s24 = sshll.u32 %s2, 4
      %s25 = int_to_ptr.hbm [resolvable:$true] %s24
      %s26 = sshll.u32 [#allocation2], 4
      %s27 = int_to_ptr.vmem [resolvable:$true] %s26
      %32 = dma.hbm_to_vmem [thread:$0]  %s25, 4096, %s27, [#allocation3], 256, 256, 16
    $region13: #{tpu_custom_call.1} parent=1 // pred_fallthru
      _
    // Predicated region
    $region14: #{tpu_custom_call.1} parent=1 // pred_check
      _
    $region15: #{tpu_custom_call.1} parent=1 // pred_check_branch
      %34 = sbr.rel (0) target = $region17
    $region16: #{tpu_custom_call.1} parent=1 // pred_region
      _
    $region17: #{tpu_custom_call.1} parent=1 // pred_fallthru
      _
    // Predicated region
    $region18: #{tpu_custom_call.1} parent=1 // pred_check
      _
    $region19: #{tpu_custom_call.1} parent=1 // pred_check_branch
      %36 = sbr.rel (0) target = $region21
    $region20: #{tpu_custom_call.1} parent=1 // pred_region
      %38 = vsyncadd [#allocation6], 0
      %s39 = sshll.u32 %s4, 4
      %s40 = int_to_ptr.hbm [resolvable:$true] %s39
      %s41 = sshll.u32 [#allocation5], 4
      %s42 = int_to_ptr.vmem [resolvable:$true] %s41
      %47 = dma.hbm_to_vmem [thread:$0]  %s40, 8192, %s42, [#allocation6], 256, 256, 16
    $region21: #{tpu_custom_call.1} parent=1 // pred_fallthru
      _
    // Predicated region
    $region22: #{tpu_custom_call.1} parent=1 // pred_check
      _
    $region23: #{tpu_custom_call.1} parent=1 // pred_check_branch
      %49 = sbr.rel (0) target = $region25
    $region24: #{tpu_custom_call.1} parent=1 // pred_region
      _
    $region25: #{tpu_custom_call.1} parent=1 // pred_fallthru
      _
    // Predicated region
    $region26: #{tpu_custom_call.1} parent=1 // pred_check
      _
    $region27: #{tpu_custom_call.1} parent=1 // pred_check_branch
      %51 = sbr.rel (0) target = $region29
    $region28: #{tpu_custom_call.1} parent=1 // pred_region
      _
    $region29: #{tpu_custom_call.1} parent=1 // pred_fallthru
      _
    // Predicated region
    $region30: #{tpu_custom_call.1} parent=1 // pred_check
      _
    $region31: #{tpu_custom_call.1} parent=1 // pred_check_branch
      %53 = sbr.rel (0) target = $region33
    $region32: #{tpu_custom_call.1} parent=1 // pred_region
      _
    $region33: #{tpu_custom_call.1} parent=1 // pred_fallthru
      _
    // Predicated region
    $region34: #{tpu_custom_call.1} parent=1 // pred_check
      _
    $region35: #{tpu_custom_call.1} parent=1 // pred_check_branch
      %55 = sbr.rel (0) target = $region37
    $region36: #{tpu_custom_call.1} parent=1 // pred_region
      %57 = dma.done [#allocation3], 4096
    $region37: #{tpu_custom_call.1} parent=1 // pred_fallthru
      _
    // Predicated region
    $region38: #{tpu_custom_call.1} parent=1 // pred_check
      _
    $region39: #{tpu_custom_call.1} parent=1 // pred_check_branch
      %59 = sbr.rel (0) target = $region41
    $region40: #{tpu_custom_call.1} parent=1 // pred_region
      %61 = dma.done [#allocation6], 8192
    $region41: #{tpu_custom_call.1} parent=1 // pred_fallthru
      _
    %v63 = vld [vmem:[%s0] sm:$0xff]
    %v64 = vld [vmem:[%s0 + $0x8] sm:$0xff]
    %v65 = vld [vmem:[%s0 + $0x10] sm:$0xff]
    %v66 = vld [vmem:[%s0 + $0x18] sm:$0xff]
    %v67 = vld [vmem:[%s0 + $0x20] sm:$0xff]
    %v68 = vld [vmem:[%s0 + $0x28] sm:$0xff]
    %v69 = vld [vmem:[%s0 + $0x30] sm:$0xff]
    %v70 = vld [vmem:[%s0 + $0x38] sm:$0xff]
    %v71 = vpack.c.bf16 %v64, %v63
    %v72 = vpack.c.bf16 %v66, %v65
    %v73 = vpack.c.bf16 %v68, %v67
    %v74 = vpack.c.bf16 %v70, %v69
    %v75 = vld [vmem:[%s1] sm:$0xff]
    %v76 = vld [vmem:[%s1 + $0x8] sm:$0xff]
    %v77 = vld [vmem:[%s1 + $0x10] sm:$0xff]
    %v78 = vld [vmem:[%s1 + $0x18] sm:$0xff]
    %v79 = vld [vmem:[%s1 + $0x20] sm:$0x77]
    %v80 = vld [vmem:[%s1 + $0x28] sm:$0x77]
    %v81 = vld [vmem:[%s3] sm:$0xf]
    %v83 = vperm.slane %v81, 0
    %v84 = vperm.slane %v81, 1
    %v85 = vperm.slane %v81, 2
    %v86 = vperm.slane %v81, 3
    %v97 = vunpack.c.l.b16 %v75
    %v98 = vunpack.c.h.b16 %v75
    %v99 = vunpack.c.l.b16 %v76
    %v100 = vunpack.c.h.b16 %v76
    %v101 = vunpack.c.l.b16 %v77
    %v102 = vunpack.c.h.b16 %v77
    %v103 = vunpack.c.l.b16 %v78
    %v104 = vunpack.c.h.b16 %v78
    %v105 = vunpack.c.l.b16 %v79
    %v106 = vunpack.c.h.b16 %v79
    %v107 = vunpack.c.l.b16 %v80
    %v108 = vunpack.c.h.b16 %v80
    %v109 = vpack.c.b16 %v101, %v97
    %v110 = vpack.c.b16 %v102, %v98
    %v111 = vpack.c.b16 %v103, %v99
    %v112 = vpack.c.b16 %v104, %v100
    %v113 = vpack.c.b16 %v105, %v105
    %v114 = vpack.c.b16 %v106, %v106
    %v115 = vpack.c.b16 %v107, %v107
    %v116 = vpack.c.b16 %v108, %v108
    %vm121 = vcmask 179200
    %v123 = vsel %vm121, %v71, 0
    %v126 = vsel %vm121, %v72, 0
    %v129 = vsel %vm121, %v73, 0
    %v132 = vsel %vm121, %v74, 0
    %vm134 = vcmask 1042432
    %v136 = vsel %vm134, %v113, 0
    %v139 = vsel %vm134, %v114, 0
    %v142 = vsel %vm134, %v115, 0
    %v145 = vsel %vm134, %v116, 0
    %147 = vmatpush.bf16.msra.mxu0 0
    %148 = vmatpush.bf16.msra.mxu0 0
    %149 = vmatpush.bf16.msra.mxu0 0
    %150 = vmatpush.bf16.msra.mxu0 0
    %151 = vmatpush.bf16.msra.mxu0 0
    %152 = vmatpush.bf16.msra.mxu0 0
    %153 = vmatpush.bf16.msra.mxu0 %v136
    %154 = vmatpush.bf16.msra.mxu0 %v109
    %155 = vmatmul.bf16.gmra.mxu0 %v123
    %v156 = vpop.f32.mrf.mxu0
    %v157 = vadd.f32 %v83, %v156
    %v158 = vpop.f32.mrf.mxu0
    %v159 = vadd.f32 %v83, %v158
    %160 = vmatmul.bf16.gmra.mxu0 %v126
    %v161 = vpop.f32.mrf.mxu0
    %v162 = vadd.f32 %v83, %v161
    %v163 = vpop.f32.mrf.mxu0
    %v164 = vadd.f32 %v83, %v163
    %165 = vmatmul.bf16.gmra.mxu0 %v129
    %v166 = vpop.f32.mrf.mxu0
    %v167 = vadd.f32 %v83, %v166
    %v168 = vpop.f32.mrf.mxu0
    %v169 = vadd.f32 %v83, %v168
    %170 = vmatmul.bf16.gmra.mxu0 %v132
    %v171 = vpop.f32.mrf.mxu0
    %v172 = vadd.f32 %v83, %v171
    %v173 = vpop.f32.mrf.mxu0
    %v174 = vadd.f32 %v83, %v173
    %175 = vdwg.mxu0
    %176 = vmatpush.bf16.msra.mxu0 0
    %177 = vmatpush.bf16.msra.mxu0 0
    %178 = vmatpush.bf16.msra.mxu0 0
    %179 = vmatpush.bf16.msra.mxu0 0
    %180 = vmatpush.bf16.msra.mxu0 0
    %181 = vmatpush.bf16.msra.mxu0 0
    %182 = vmatpush.bf16.msra.mxu0 %v139
    %183 = vmatpush.bf16.msra.mxu0 %v110
    %184 = vmatmul.bf16.gmra.mxu0 %v123
    %v185 = vpop.f32.mrf.mxu0
    %v186 = vadd.f32 %v84, %v185
    %v187 = vpop.f32.mrf.mxu0
    %v188 = vadd.f32 %v84, %v187
    %189 = vmatmul.bf16.gmra.mxu0 %v126
    %v190 = vpop.f32.mrf.mxu0
    %v191 = vadd.f32 %v84, %v190
    %v192 = vpop.f32.mrf.mxu0
    %v193 = vadd.f32 %v84, %v192
    %194 = vmatmul.bf16.gmra.mxu0 %v129
    %v195 = vpop.f32.mrf.mxu0
    %v196 = vadd.f32 %v84, %v195
    %v197 = vpop.f32.mrf.mxu0
    %v198 = vadd.f32 %v84, %v197
    %199 = vmatmul.bf16.gmra.mxu0 %v132
    %v200 = vpop.f32.mrf.mxu0
    %v201 = vadd.f32 %v84, %v200
    %v202 = vpop.f32.mrf.mxu0
    %v203 = vadd.f32 %v84, %v202
    %204 = vdwg.mxu0
    %205 = vmatpush.bf16.msra.mxu0 0
    %206 = vmatpush.bf16.msra.mxu0 0
    %207 = vmatpush.bf16.msra.mxu0 0
    %208 = vmatpush.bf16.msra.mxu0 0
    %209 = vmatpush.bf16.msra.mxu0 0
    %210 = vmatpush.bf16.msra.mxu0 0
    %211 = vmatpush.bf16.msra.mxu0 %v142
    %212 = vmatpush.bf16.msra.mxu0 %v111
    %213 = vmatmul.bf16.gmra.mxu0 %v123
    %v214 = vpop.f32.mrf.mxu0
    %v215 = vadd.f32 %v85, %v214
    %v216 = vpop.f32.mrf.mxu0
    %v217 = vadd.f32 %v85, %v216
    %218 = vmatmul.bf16.gmra.mxu0 %v126
    %v219 = vpop.f32.mrf.mxu0
    %v220 = vadd.f32 %v85, %v219
    %v221 = vpop.f32.mrf.mxu0
    %v222 = vadd.f32 %v85, %v221
    %223 = vmatmul.bf16.gmra.mxu0 %v129
    %v224 = vpop.f32.mrf.mxu0
    %v225 = vadd.f32 %v85, %v224
    %v226 = vpop.f32.mrf.mxu0
    %v227 = vadd.f32 %v85, %v226
    %228 = vmatmul.bf16.gmra.mxu0 %v132
    %v229 = vpop.f32.mrf.mxu0
    %v230 = vadd.f32 %v85, %v229
    %v231 = vpop.f32.mrf.mxu0
    %v232 = vadd.f32 %v85, %v231
    %233 = vdwg.mxu0
    %234 = vmatpush.bf16.msra.mxu0 0
    %235 = vmatpush.bf16.msra.mxu0 0
    %236 = vmatpush.bf16.msra.mxu0 0
    %237 = vmatpush.bf16.msra.mxu0 0
    %238 = vmatpush.bf16.msra.mxu0 0
    %239 = vmatpush.bf16.msra.mxu0 0
    %240 = vmatpush.bf16.msra.mxu0 %v145
    %241 = vmatpush.bf16.msra.mxu0 %v112
    %242 = vmatmul.bf16.gmra.mxu0 %v123
    %v243 = vpop.f32.mrf.mxu0
    %v244 = vadd.f32 %v86, %v243
    %v245 = vpop.f32.mrf.mxu0
    %v246 = vadd.f32 %v86, %v245
    %247 = vmatmul.bf16.gmra.mxu0 %v126
    %v248 = vpop.f32.mrf.mxu0
    %v249 = vadd.f32 %v86, %v248
    %v250 = vpop.f32.mrf.mxu0
    %v251 = vadd.f32 %v86, %v250
    %252 = vmatmul.bf16.gmra.mxu0 %v129
    %v253 = vpop.f32.mrf.mxu0
    %v254 = vadd.f32 %v86, %v253
    %v255 = vpop.f32.mrf.mxu0
    %v256 = vadd.f32 %v86, %v255
    %257 = vmatmul.bf16.gmra.mxu0 %v132
    %v258 = vpop.f32.mrf.mxu0
    %v259 = vadd.f32 %v86, %v258
    %v260 = vpop.f32.mrf.mxu0
    %v261 = vadd.f32 %v86, %v260
    %262 = vdwg.mxu0
    %v263 = vld [vmem:[#allocation2] sm:$0xff]
    %v264 = vld [vmem:[#allocation2 + $0x8] sm:$0xff]
    %v265 = vld [vmem:[#allocation2 + $0x10] sm:$0xff]
    %v266 = vld [vmem:[#allocation2 + $0x18] sm:$0xff]
    %v267 = vld [vmem:[#allocation2 + $0x20] sm:$0xff]
    %v268 = vld [vmem:[#allocation2 + $0x28] sm:$0xff]
    %v269 = vld [vmem:[#allocation2 + $0x30] sm:$0xff]
    %v270 = vld [vmem:[#allocation2 + $0x38] sm:$0xff]
    %v271 = vld [vmem:[#allocation2 + $0x40] sm:$0xff]
    %v272 = vld [vmem:[#allocation2 + $0x48] sm:$0xff]
    %v273 = vld [vmem:[#allocation2 + $0x50] sm:$0xff]
    %v274 = vld [vmem:[#allocation2 + $0x58] sm:$0xff]
    %v275 = vld [vmem:[#allocation2 + $0x60] sm:$0xff]
    %v276 = vld [vmem:[#allocation2 + $0x68] sm:$0xff]
    %v277 = vld [vmem:[#allocation2 + $0x70] sm:$0xff]
    %v278 = vld [vmem:[#allocation2 + $0x78] sm:$0xff]
    %v279 = vld [vmem:[#allocation2 + $0x80] sm:$0xff]
    %v280 = vld [vmem:[#allocation2 + $0x88] sm:$0xff]
    %v281 = vld [vmem:[#allocation2 + $0x90] sm:$0xff]
    %v282 = vld [vmem:[#allocation2 + $0x98] sm:$0xff]
    %v283 = vld [vmem:[#allocation2 + $0xa0] sm:$0xff]
    %v284 = vld [vmem:[#allocation2 + $0xa8] sm:$0xff]
    %v285 = vld [vmem:[#allocation2 + $0xb0] sm:$0xff]
    %v286 = vld [vmem:[#allocation2 + $0xb8] sm:$0xff]
    %v287 = vld [vmem:[#allocation2 + $0xc0] sm:$0xff]
    %v288 = vld [vmem:[#allocation2 + $0xc8] sm:$0xff]
    %v289 = vld [vmem:[#allocation2 + $0xd0] sm:$0xff]
    %v290 = vld [vmem:[#allocation2 + $0xd8] sm:$0xff]
    %v291 = vld [vmem:[#allocation2 + $0xe0] sm:$0xff]
    %v292 = vld [vmem:[#allocation2 + $0xe8] sm:$0xff]
    %v293 = vld [vmem:[#allocation2 + $0xf0] sm:$0xff]
    %v294 = vld [vmem:[#allocation2 + $0xf8] sm:$0xff]
    %v295 = vld [vmem:[#allocation5] sm:$0xff]
    %v296 = vld [vmem:[#allocation5 + $0x8] sm:$0xff]
    %v297 = vld [vmem:[#allocation5 + $0x10] sm:$0xff]
    %v298 = vld [vmem:[#allocation5 + $0x18] sm:$0xff]
    %v299 = vld [vmem:[#allocation5 + $0x20] sm:$0xff]
    %v300 = vld [vmem:[#allocation5 + $0x28] sm:$0xff]
    %v301 = vld [vmem:[#allocation5 + $0x30] sm:$0xff]
    %v302 = vld [vmem:[#allocation5 + $0x38] sm:$0xff]
    %v303 = vld [vmem:[#allocation5 + $0x40] sm:$0xff]
    %v304 = vld [vmem:[#allocation5 + $0x48] sm:$0xff]
    %v305 = vld [vmem:[#allocation5 + $0x50] sm:$0xff]
    %v306 = vld [vmem:[#allocation5 + $0x58] sm:$0xff]
    %v307 = vld [vmem:[#allocation5 + $0x60] sm:$0xff]
    %v308 = vld [vmem:[#allocation5 + $0x68] sm:$0xff]
    %v309 = vld [vmem:[#allocation5 + $0x70] sm:$0xff]
    %v310 = vld [vmem:[#allocation5 + $0x78] sm:$0xff]
    %v311 = vld [vmem:[#allocation5 + $0x80] sm:$0xff]
    %v312 = vld [vmem:[#allocation5 + $0x88] sm:$0xff]
    %v313 = vld [vmem:[#allocation5 + $0x90] sm:$0xff]
    %v314 = vld [vmem:[#allocation5 + $0x98] sm:$0xff]
    %v315 = vld [vmem:[#allocation5 + $0xa0] sm:$0xff]
    %v316 = vld [vmem:[#allocation5 + $0xa8] sm:$0xff]
    %v317 = vld [vmem:[#allocation5 + $0xb0] sm:$0xff]
    %v318 = vld [vmem:[#allocation5 + $0xb8] sm:$0xff]
    %v319 = vld [vmem:[#allocation5 + $0xc0] sm:$0xff]
    %v320 = vld [vmem:[#allocation5 + $0xc8] sm:$0xff]
    %v321 = vld [vmem:[#allocation5 + $0xd0] sm:$0xff]
    %v322 = vld [vmem:[#allocation5 + $0xd8] sm:$0xff]
    %v323 = vld [vmem:[#allocation5 + $0xe0] sm:$0xff]
    %v324 = vld [vmem:[#allocation5 + $0xe8] sm:$0xff]
    %v325 = vld [vmem:[#allocation5 + $0xf0] sm:$0xff]
    %v326 = vld [vmem:[#allocation5 + $0xf8] sm:$0xff]
    %v327 = vld [vmem:[#allocation5 + $0x100] sm:$0xff]
    %v328 = vld [vmem:[#allocation5 + $0x108] sm:$0xff]
    %v329 = vld [vmem:[#allocation5 + $0x110] sm:$0xff]
    %v330 = vld [vmem:[#allocation5 + $0x118] sm:$0xff]
    %v331 = vld [vmem:[#allocation5 + $0x120] sm:$0xff]
    %v332 = vld [vmem:[#allocation5 + $0x128] sm:$0xff]
    %v333 = vld [vmem:[#allocation5 + $0x130] sm:$0xff]
    %v334 = vld [vmem:[#allocation5 + $0x138] sm:$0xff]
    %v335 = vld [vmem:[#allocation5 + $0x140] sm:$0xff]
    %v336 = vld [vmem:[#allocation5 + $0x148] sm:$0xff]
    %v337 = vld [vmem:[#allocation5 + $0x150] sm:$0xff]
    %v338 = vld [vmem:[#allocation5 + $0x158] sm:$0xff]
    %v339 = vld [vmem:[#allocation5 + $0x160] sm:$0xff]
    %v340 = vld [vmem:[#allocation5 + $0x168] sm:$0xff]
    %v341 = vld [vmem:[#allocation5 + $0x170] sm:$0xff]
    %v342 = vld [vmem:[#allocation5 + $0x178] sm:$0xff]
    %v343 = vld [vmem:[#allocation5 + $0x180] sm:$0xff]
    %v344 = vld [vmem:[#allocation5 + $0x188] sm:$0xff]
    %v345 = vld [vmem:[#allocation5 + $0x190] sm:$0xff]
    %v346 = vld [vmem:[#allocation5 + $0x198] sm:$0xff]
    %v347 = vld [vmem:[#allocation5 + $0x1a0] sm:$0xff]
    %v348 = vld [vmem:[#allocation5 + $0x1a8] sm:$0xff]
    %v349 = vld [vmem:[#allocation5 + $0x1b0] sm:$0xff]
    %v350 = vld [vmem:[#allocation5 + $0x1b8] sm:$0xff]
    %v351 = vld [vmem:[#allocation5 + $0x1c0] sm:$0xff]
    %v352 = vld [vmem:[#allocation5 + $0x1c8] sm:$0xff]
    %v353 = vld [vmem:[#allocation5 + $0x1d0] sm:$0xff]
    %v354 = vld [vmem:[#allocation5 + $0x1d8] sm:$0xff]
    %v355 = vld [vmem:[#allocation5 + $0x1e0] sm:$0xff]
    %v356 = vld [vmem:[#allocation5 + $0x1e8] sm:$0xff]
    %v357 = vld [vmem:[#allocation5 + $0x1f0] sm:$0xff]
    %v358 = vld [vmem:[#allocation5 + $0x1f8] sm:$0xff]
    %v359 = vld [vmem:[%s5] sm:$0xf]
    %v361 = vperm.slane %v359, 0
    %v362 = vperm.slane %v359, 1
    %v363 = vperm.slane %v359, 2
    %v364 = vperm.slane %v359, 3
    %v401 = vunpack.c.l.b16 %v263
    %v402 = vunpack.c.h.b16 %v263
    %v403 = vunpack.c.l.b16 %v264
    %v404 = vunpack.c.h.b16 %v264
    %v405 = vunpack.c.l.b16 %v265
    %v406 = vunpack.c.h.b16 %v265
    %v407 = vunpack.c.l.b16 %v266
    %v408 = vunpack.c.h.b16 %v266
    %v409 = vunpack.c.l.b16 %v267
    %v410 = vunpack.c.h.b16 %v267
    %v411 = vunpack.c.l.b16 %v268
    %v412 = vunpack.c.h.b16 %v268
    %v413 = vunpack.c.l.b16 %v269
    %v414 = vunpack.c.h.b16 %v269
    %v415 = vunpack.c.l.b16 %v270
    %v416 = vunpack.c.h.b16 %v270
    %v417 = vunpack.c.l.b16 %v271
    %v418 = vunpack.c.h.b16 %v271
    %v419 = vunpack.c.l.b16 %v272
    %v420 = vunpack.c.h.b16 %v272
    %v421 = vunpack.c.l.b16 %v273
    %v422 = vunpack.c.h.b16 %v273
    %v423 = vunpack.c.l.b16 %v274
    %v424 = vunpack.c.h.b16 %v274
    %v425 = vunpack.c.l.b16 %v275
    %v426 = vunpack.c.h.b16 %v275
    %v427 = vunpack.c.l.b16 %v276
    %v428 = vunpack.c.h.b16 %v276
    %v429 = vunpack.c.l.b16 %v277
    %v430 = vunpack.c.h.b16 %v277
    %v431 = vunpack.c.l.b16 %v278
    %v432 = vunpack.c.h.b16 %v278
    %v433 = vunpack.c.l.b16 %v279
    %v434 = vunpack.c.h.b16 %v279
    %v435 = vunpack.c.l.b16 %v280
    %v436 = vunpack.c.h.b16 %v280
    %v437 = vunpack.c.l.b16 %v281
    %v438 = vunpack.c.h.b16 %v281
    %v439 = vunpack.c.l.b16 %v282
    %v440 = vunpack.c.h.b16 %v282
    %v441 = vunpack.c.l.b16 %v283
    %v442 = vunpack.c.h.b16 %v283
    %v443 = vunpack.c.l.b16 %v284
    %v444 = vunpack.c.h.b16 %v284
    %v445 = vunpack.c.l.b16 %v285
    %v446 = vunpack.c.h.b16 %v285
    %v447 = vunpack.c.l.b16 %v286
    %v448 = vunpack.c.h.b16 %v286
    %v449 = vunpack.c.l.b16 %v287
    %v450 = vunpack.c.h.b16 %v287
    %v451 = vunpack.c.l.b16 %v288
    %v452 = vunpack.c.h.b16 %v288
    %v453 = vunpack.c.l.b16 %v289
    %v454 = vunpack.c.h.b16 %v289
    %v455 = vunpack.c.l.b16 %v290
    %v456 = vunpack.c.h.b16 %v290
    %v457 = vunpack.c.l.b16 %v291
    %v458 = vunpack.c.h.b16 %v291
    %v459 = vunpack.c.l.b16 %v292
    %v460 = vunpack.c.h.b16 %v292
    %v461 = vunpack.c.l.b16 %v293
    %v462 = vunpack.c.h.b16 %v293
    %v463 = vunpack.c.l.b16 %v294
    %v464 = vunpack.c.h.b16 %v294
    %v465 = vpack.c.b16 %v405, %v401
    %v466 = vpack.c.b16 %v406, %v402
    %v467 = vpack.c.b16 %v407, %v403
    %v468 = vpack.c.b16 %v408, %v404
    %v469 = vpack.c.b16 %v413, %v409
    %v470 = vpack.c.b16 %v414, %v410
    %v471 = vpack.c.b16 %v415, %v411
    %v472 = vpack.c.b16 %v416, %v412
    %v473 = vpack.c.b16 %v421, %v417
    %v474 = vpack.c.b16 %v422, %v418
    %v475 = vpack.c.b16 %v423, %v419
    %v476 = vpack.c.b16 %v424, %v420
    %v477 = vpack.c.b16 %v429, %v425
    %v478 = vpack.c.b16 %v430, %v426
    %v479 = vpack.c.b16 %v431, %v427
    %v480 = vpack.c.b16 %v432, %v428
    %v481 = vpack.c.b16 %v437, %v433
    %v482 = vpack.c.b16 %v438, %v434
    %v483 = vpack.c.b16 %v439, %v435
    %v484 = vpack.c.b16 %v440, %v436
    %v485 = vpack.c.b16 %v445, %v441
    %v486 = vpack.c.b16 %v446, %v442
    %v487 = vpack.c.b16 %v447, %v443
    %v488 = vpack.c.b16 %v448, %v444
    %v489 = vpack.c.b16 %v453, %v449
    %v490 = vpack.c.b16 %v454, %v450
    %v491 = vpack.c.b16 %v455, %v451
    %v492 = vpack.c.b16 %v456, %v452
    %v493 = vpack.c.b16 %v461, %v457
    %v494 = vpack.c.b16 %v462, %v458
    %v495 = vpack.c.b16 %v463, %v459
    %v496 = vpack.c.b16 %v464, %v460
    %529 = vmatpush.bf16.msra.mxu0 %v493
    %530 = vmatpush.bf16.msra.mxu0 %v489
    %531 = vmatpush.bf16.msra.mxu0 %v485
    %532 = vmatpush.bf16.msra.mxu0 %v481
    %533 = vmatpush.bf16.msra.mxu0 %v477
    %534 = vmatpush.bf16.msra.mxu0 %v473
    %535 = vmatpush.bf16.msra.mxu0 %v469
    %536 = vmatpush.bf16.msra.mxu0 %v465
    %537 = vmatmul.bf16.gmra.mxu0 0
    %v538 = vpop.f32.mrf.mxu0
    %v539 = vadd.f32 0.0, %v538
    %v540 = vpop.f32.mrf.mxu0
    %541 = vdwg.mxu0
    %542 = vmatpush.bf16.msra.mxu0 %v494
    %543 = vmatpush.bf16.msra.mxu0 %v490
    %544 = vmatpush.bf16.msra.mxu0 %v486
    %545 = vmatpush.bf16.msra.mxu0 %v482
    %546 = vmatpush.bf16.msra.mxu0 %v478
    %547 = vmatpush.bf16.msra.mxu0 %v474
    %548 = vmatpush.bf16.msra.mxu0 %v470
    %549 = vmatpush.bf16.msra.mxu0 %v466
    %550 = vmatmul.bf16.gmra.mxu0 0
    %v551 = vpop.f32.mrf.mxu0
    %v552 = vadd.f32 0.0, %v551
    %v553 = vpop.f32.mrf.mxu0
    %554 = vdwg.mxu0
    %555 = vmatpush.bf16.msra.mxu0 %v495
    %556 = vmatpush.bf16.msra.mxu0 %v491
    %557 = vmatpush.bf16.msra.mxu0 %v487
    %558 = vmatpush.bf16.msra.mxu0 %v483
    %559 = vmatpush.bf16.msra.mxu0 %v479
    %560 = vmatpush.bf16.msra.mxu0 %v475
    %561 = vmatpush.bf16.msra.mxu0 %v471
    %562 = vmatpush.bf16.msra.mxu0 %v467
    %563 = vmatmul.bf16.gmra.mxu0 0
    %v564 = vpop.f32.mrf.mxu0
    %v565 = vadd.f32 0.0, %v564
    %v566 = vpop.f32.mrf.mxu0
    %567 = vdwg.mxu0
    %568 = vmatpush.bf16.msra.mxu0 %v496
    %569 = vmatpush.bf16.msra.mxu0 %v492
    %570 = vmatpush.bf16.msra.mxu0 %v488
    %571 = vmatpush.bf16.msra.mxu0 %v484
    %572 = vmatpush.bf16.msra.mxu0 %v480
    %573 = vmatpush.bf16.msra.mxu0 %v476
    %574 = vmatpush.bf16.msra.mxu0 %v472
    %575 = vmatpush.bf16.msra.mxu0 %v468
    %576 = vmatmul.bf16.gmra.mxu0 0
    %v577 = vpop.f32.mrf.mxu0
    %v578 = vadd.f32 0.0, %v577
    %v579 = vpop.f32.mrf.mxu0
    %580 = vdwg.mxu0
    %v581 = vadd.f32 %v157, %v539
    %v582 = vadd.f32 %v186, %v552
    %v583 = vadd.f32 %v215, %v565
    %v584 = vadd.f32 %v244, %v578
    %v585 = vxor.u32 %v581, 2147483648
    %v586 = vmul.f32 %v585, 1.442695
    %v587 = vpow.pop %v586
    %v588 = vadd.f32 %v587, 1.0
    %v589 = vrcp.pop %v588
    %v590 = vmul.f32 %v588, %v589
    %v591 = vsub.f32 1.0, %v590
    %v592 = vmul.f32 %v589, %v591
    %v593 = vadd.f32 %v589, %v592
    %vm594 = vweird.f32 %v588
    %vm595 = vweird.f32 %v589
    %vm596 = vmor %vm594, %vm595
    %v597 = vsel %vm596, %v589, %v593
    %v598 = vand.u32 2147483647, %v588
    %vm599 = vcmp.eq.f32.partialorder %v598, 8.507059e+37
    %v600 = vand.u32 %v588, 2147483648
    %v601 = vor.u32 1.1754944e-38, %v600
    %v602 = vsel %vm599, %v601, %v597
    %v603 = vmul.f32 1.0, %v602
    %v604 = vxor.u32 %v582, 2147483648
    %v605 = vmul.f32 %v604, 1.442695
    %v606 = vpow.pop %v605
    %v607 = vadd.f32 %v606, 1.0
    %v608 = vrcp.pop %v607
    %v609 = vmul.f32 %v607, %v608
    %v610 = vsub.f32 1.0, %v609
    %v611 = vmul.f32 %v608, %v610
    %v612 = vadd.f32 %v608, %v611
    %vm613 = vweird.f32 %v607
    %vm614 = vweird.f32 %v608
    %vm615 = vmor %vm613, %vm614
    %v616 = vsel %vm615, %v608, %v612
    %v617 = vand.u32 2147483647, %v607
    %vm618 = vcmp.eq.f32.partialorder %v617, 8.507059e+37
    %v619 = vand.u32 %v607, 2147483648
    %v620 = vor.u32 1.1754944e-38, %v619
    %v621 = vsel %vm618, %v620, %v616
    %v622 = vmul.f32 1.0, %v621
    %v623 = vtanh.pop %v583
    %v624 = vxor.u32 %v584, 2147483648
    %v625 = vmul.f32 %v624, 1.442695
    %v626 = vpow.pop %v625
    %v627 = vadd.f32 %v626, 1.0
    %v628 = vrcp.pop %v627
    %v629 = vmul.f32 %v627, %v628
    %v630 = vsub.f32 1.0, %v629
    %v631 = vmul.f32 %v628, %v630
    %v632 = vadd.f32 %v628, %v631
    %vm633 = vweird.f32 %v627
    %vm634 = vweird.f32 %v628
    %vm635 = vmor %vm633, %vm634
    %v636 = vsel %vm635, %v628, %v632
    %v637 = vand.u32 2147483647, %v627
    %vm638 = vcmp.eq.f32.partialorder %v637, 8.507059e+37
    %v639 = vand.u32 %v627, 2147483648
    %v640 = vor.u32 1.1754944e-38, %v639
    %v641 = vsel %vm638, %v640, %v636
    %v642 = vmul.f32 1.0, %v641
    %v643 = vmul.f32 %v622, 0.0
    %v644 = vmul.f32 %v603, %v623
    %v645 = vadd.f32 %v643, %v644
    %v646 = vtanh.pop %v645
    %v647 = vmul.f32 %v642, %v646
    %v648 = vpack.c.bf16 %v647, %v647
    %v649 = vpack.c.bf16 0.0, 0.0
    %v714 = vunpack.c.l.b16 %v295
    %v715 = vunpack.c.h.b16 %v295
    %v716 = vunpack.c.l.b16 %v296
    %v717 = vunpack.c.h.b16 %v296
    %v718 = vunpack.c.l.b16 %v297
    %v719 = vunpack.c.h.b16 %v297
    %v720 = vunpack.c.l.b16 %v298
    %v721 = vunpack.c.h.b16 %v298
    %v722 = vunpack.c.l.b16 %v299
    %v723 = vunpack.c.h.b16 %v299
    %v724 = vunpack.c.l.b16 %v300
    %v725 = vunpack.c.h.b16 %v300
    %v726 = vunpack.c.l.b16 %v301
    %v727 = vunpack.c.h.b16 %v301
    %v728 = vunpack.c.l.b16 %v302
    %v729 = vunpack.c.h.b16 %v302
    %v730 = vunpack.c.l.b16 %v303
    %v731 = vunpack.c.h.b16 %v303
    %v732 = vunpack.c.l.b16 %v304
    %v733 = vunpack.c.h.b16 %v304
    %v734 = vunpack.c.l.b16 %v305
    %v735 = vunpack.c.h.b16 %v305
    %v736 = vunpack.c.l.b16 %v306
    %v737 = vunpack.c.h.b16 %v306
    %v738 = vunpack.c.l.b16 %v307
    %v739 = vunpack.c.h.b16 %v307
    %v740 = vunpack.c.l.b16 %v308
    %v741 = vunpack.c.h.b16 %v308
    %v742 = vunpack.c.l.b16 %v309
    %v743 = vunpack.c.h.b16 %v309
    %v744 = vunpack.c.l.b16 %v310
    %v745 = vunpack.c.h.b16 %v310
    %v746 = vunpack.c.l.b16 %v311
    %v747 = vunpack.c.h.b16 %v311
    %v748 = vunpack.c.l.b16 %v312
    %v749 = vunpack.c.h.b16 %v312
    %v750 = vunpack.c.l.b16 %v313
    %v751 = vunpack.c.h.b16 %v313
    %v752 = vunpack.c.l.b16 %v314
    %v753 = vunpack.c.h.b16 %v314
    %v754 = vunpack.c.l.b16 %v315
    %v755 = vunpack.c.h.b16 %v315
    %v756 = vunpack.c.l.b16 %v316
    %v757 = vunpack.c.h.b16 %v316
    %v758 = vunpack.c.l.b16 %v317
    %v759 = vunpack.c.h.b16 %v317
    %v760 = vunpack.c.l.b16 %v318
    %v761 = vunpack.c.h.b16 %v318
    %v762 = vunpack.c.l.b16 %v319
    %v763 = vunpack.c.h.b16 %v319
    %v764 = vunpack.c.l.b16 %v320
    %v765 = vunpack.c.h.b16 %v320
    %v766 = vunpack.c.l.b16 %v321
    %v767 = vunpack.c.h.b16 %v321
    %v768 = vunpack.c.l.b16 %v322
    %v769 = vunpack.c.h.b16 %v322
    %v770 = vunpack.c.l.b16 %v323
    %v771 = vunpack.c.h.b16 %v323
    %v772 = vunpack.c.l.b16 %v324
    %v773 = vunpack.c.h.b16 %v324
    %v774 = vunpack.c.l.b16 %v325
    %v775 = vunpack.c.h.b16 %v325
    %v776 = vunpack.c.l.b16 %v326
    %v777 = vunpack.c.h.b16 %v326
    %v778 = vunpack.c.l.b16 %v327
    %v779 = vunpack.c.h.b16 %v327
    %v780 = vunpack.c.l.b16 %v328
    %v781 = vunpack.c.h.b16 %v328
    %v782 = vunpack.c.l.b16 %v329
    %v783 = vunpack.c.h.b16 %v329
    %v784 = vunpack.c.l.b16 %v330
    %v785 = vunpack.c.h.b16 %v330
    %v786 = vunpack.c.l.b16 %v331
    %v787 = vunpack.c.h.b16 %v331
    %v788 = vunpack.c.l.b16 %v332
    %v789 = vunpack.c.h.b16 %v332
    %v790 = vunpack.c.l.b16 %v333
    %v791 = vunpack.c.h.b16 %v333
    %v792 = vunpack.c.l.b16 %v334
    %v793 = vunpack.c.h.b16 %v334
    %v794 = vunpack.c.l.b16 %v335
    %v795 = vunpack.c.h.b16 %v335
    %v796 = vunpack.c.l.b16 %v336
    %v797 = vunpack.c.h.b16 %v336
    %v798 = vunpack.c.l.b16 %v337
    %v799 = vunpack.c.h.b16 %v337
    %v800 = vunpack.c.l.b16 %v338
    %v801 = vunpack.c.h.b16 %v338
    %v802 = vunpack.c.l.b16 %v339
    %v803 = vunpack.c.h.b16 %v339
    %v804 = vunpack.c.l.b16 %v340
    %v805 = vunpack.c.h.b16 %v340
    %v806 = vunpack.c.l.b16 %v341
    %v807 = vunpack.c.h.b16 %v341
    %v808 = vunpack.c.l.b16 %v342
    %v809 = vunpack.c.h.b16 %v342
    %v810 = vunpack.c.l.b16 %v343
    %v811 = vunpack.c.h.b16 %v343
    %v812 = vunpack.c.l.b16 %v344
    %v813 = vunpack.c.h.b16 %v344
    %v814 = vunpack.c.l.b16 %v345
    %v815 = vunpack.c.h.b16 %v345
    %v816 = vunpack.c.l.b16 %v346
    %v817 = vunpack.c.h.b16 %v346
    %v818 = vunpack.c.l.b16 %v347
    %v819 = vunpack.c.h.b16 %v347
    %v820 = vunpack.c.l.b16 %v348
    %v821 = vunpack.c.h.b16 %v348
    %v822 = vunpack.c.l.b16 %v349
    %v823 = vunpack.c.h.b16 %v349
    %v824 = vunpack.c.l.b16 %v350
    %v825 = vunpack.c.h.b16 %v350
    %v826 = vunpack.c.l.b16 %v351
    %v827 = vunpack.c.h.b16 %v351
    %v828 = vunpack.c.l.b16 %v352
    %v829 = vunpack.c.h.b16 %v352
    %v830 = vunpack.c.l.b16 %v353
    %v831 = vunpack.c.h.b16 %v353
    %v832 = vunpack.c.l.b16 %v354
    %v833 = vunpack.c.h.b16 %v354
    %v834 = vunpack.c.l.b16 %v355
    %v835 = vunpack.c.h.b16 %v355
    %v836 = vunpack.c.l.b16 %v356
    %v837 = vunpack.c.h.b16 %v356
    %v838 = vunpack.c.l.b16 %v357
    %v839 = vunpack.c.h.b16 %v357
    %v840 = vunpack.c.l.b16 %v358
    %v841 = vunpack.c.h.b16 %v358
    %v842 = vpack.c.b16 %v718, %v714
    %v843 = vpack.c.b16 %v719, %v715
    %v844 = vpack.c.b16 %v720, %v716
    %v845 = vpack.c.b16 %v721, %v717
    %v846 = vpack.c.b16 %v726, %v722
    %v847 = vpack.c.b16 %v727, %v723
    %v848 = vpack.c.b16 %v728, %v724
    %v849 = vpack.c.b16 %v729, %v725
    %v850 = vpack.c.b16 %v734, %v730
    %v851 = vpack.c.b16 %v735, %v731
    %v852 = vpack.c.b16 %v736, %v732
    %v853 = vpack.c.b16 %v737, %v733
    %v854 = vpack.c.b16 %v742, %v738
    %v855 = vpack.c.b16 %v743, %v739
    %v856 = vpack.c.b16 %v744, %v740
    %v857 = vpack.c.b16 %v745, %v741
    %v858 = vpack.c.b16 %v750, %v746
    %v859 = vpack.c.b16 %v751, %v747
    %v860 = vpack.c.b16 %v752, %v748
    %v861 = vpack.c.b16 %v753, %v749
    %v862 = vpack.c.b16 %v758, %v754
    %v863 = vpack.c.b16 %v759, %v755
    %v864 = vpack.c.b16 %v760, %v756
    %v865 = vpack.c.b16 %v761, %v757
    %v866 = vpack.c.b16 %v766, %v762
    %v867 = vpack.c.b16 %v767, %v763
    %v868 = vpack.c.b16 %v768, %v764
    %v869 = vpack.c.b16 %v769, %v765
    %v870 = vpack.c.b16 %v774, %v770
    %v871 = vpack.c.b16 %v775, %v771
    %v872 = vpack.c.b16 %v776, %v772
    %v873 = vpack.c.b16 %v777, %v773
    %v874 = vpack.c.b16 %v782, %v778
    %v875 = vpack.c.b16 %v783, %v779
    %v876 = vpack.c.b16 %v784, %v780
    %v877 = vpack.c.b16 %v785, %v781
    %v878 = vpack.c.b16 %v790, %v786
    %v879 = vpack.c.b16 %v791, %v787
    %v880 = vpack.c.b16 %v792, %v788
    %v881 = vpack.c.b16 %v793, %v789
    %v882 = vpack.c.b16 %v798, %v794
    %v883 = vpack.c.b16 %v799, %v795
    %v884 = vpack.c.b16 %v800, %v796
    %v885 = vpack.c.b16 %v801, %v797
    %v886 = vpack.c.b16 %v806, %v802
    %v887 = vpack.c.b16 %v807, %v803
    %v888 = vpack.c.b16 %v808, %v804
    %v889 = vpack.c.b16 %v809, %v805
    %v890 = vpack.c.b16 %v814, %v810
    %v891 = vpack.c.b16 %v815, %v811
    %v892 = vpack.c.b16 %v816, %v812
    %v893 = vpack.c.b16 %v817, %v813
    %v894 = vpack.c.b16 %v822, %v818
    %v895 = vpack.c.b16 %v823, %v819
    %v896 = vpack.c.b16 %v824, %v820
    %v897 = vpack.c.b16 %v825, %v821
    %v898 = vpack.c.b16 %v830, %v826
    %v899 = vpack.c.b16 %v831, %v827
    %v900 = vpack.c.b16 %v832, %v828
    %v901 = vpack.c.b16 %v833, %v829
    %v902 = vpack.c.b16 %v838, %v834
    %v903 = vpack.c.b16 %v839, %v835
    %v904 = vpack.c.b16 %v840, %v836
    %v905 = vpack.c.b16 %v841, %v837
    %970 = vmatpush.bf16.msra.mxu0 %v870
    %971 = vmatpush.bf16.msra.mxu0 %v866
    %972 = vmatpush.bf16.msra.mxu0 %v862
    %973 = vmatpush.bf16.msra.mxu0 %v858
    %974 = vmatpush.bf16.msra.mxu0 %v854
    %975 = vmatpush.bf16.msra.mxu0 %v850
    %976 = vmatpush.bf16.msra.mxu0 %v846
    %977 = vmatpush.bf16.msra.mxu0 %v842
    %978 = vmatmul.bf16.gmra.mxu0 %v648
    %v979 = vpop.f32.mrf.mxu0
    %v980 = vadd.f32 %v361, %v979
    %v981 = vpop.f32.mrf.mxu0
    %982 = vdwg.mxu0
    %983 = vmatpush.bf16.msra.mxu0 %v902
    %984 = vmatpush.bf16.msra.mxu0 %v898
    %985 = vmatpush.bf16.msra.mxu0 %v894
    %986 = vmatpush.bf16.msra.mxu0 %v890
    %987 = vmatpush.bf16.msra.mxu0 %v886
    %988 = vmatpush.bf16.msra.mxu0 %v882
    %989 = vmatpush.bf16.msra.mxu0 %v878
    %990 = vmatpush.bf16.msra.mxu0 %v874
    %991 = vmatmul.bf16.gmra.mxu0 %v649
    %v992 = vpop.f32.mrf.mxu0
    %v993 = vadd.f32 %v980, %v992
    %v994 = vpop.f32.mrf.mxu0
    %995 = vdwg.mxu0
    %996 = vmatpush.bf16.msra.mxu0 %v871
    %997 = vmatpush.bf16.msra.mxu0 %v867
    %998 = vmatpush.bf16.msra.mxu0 %v863
    %999 = vmatpush.bf16.msra.mxu0 %v859
    %1000 = vmatpush.bf16.msra.mxu0 %v855
    %1001 = vmatpush.bf16.msra.mxu0 %v851
    %1002 = vmatpush.bf16.msra.mxu0 %v847
    %1003 = vmatpush.bf16.msra.mxu0 %v843
    %1004 = vmatmul.bf16.gmra.mxu0 %v648
    %v1005 = vpop.f32.mrf.mxu0
    %v1006 = vadd.f32 %v362, %v1005
    %v1007 = vpop.f32.mrf.mxu0
    %1008 = vdwg.mxu0
    %1009 = vmatpush.bf16.msra.mxu0 %v903
    %1010 = vmatpush.bf16.msra.mxu0 %v899
    %1011 = vmatpush.bf16.msra.mxu0 %v895
    %1012 = vmatpush.bf16.msra.mxu0 %v891
    %1013 = vmatpush.bf16.msra.mxu0 %v887
    %1014 = vmatpush.bf16.msra.mxu0 %v883
    %1015 = vmatpush.bf16.msra.mxu0 %v879
    %1016 = vmatpush.bf16.msra.mxu0 %v875
    %1017 = vmatmul.bf16.gmra.mxu0 %v649
    %v1018 = vpop.f32.mrf.mxu0
    %v1019 = vadd.f32 %v1006, %v1018
    %v1020 = vpop.f32.mrf.mxu0
    %1021 = vdwg.mxu0
    %1022 = vmatpush.bf16.msra.mxu0 %v872
    %1023 = vmatpush.bf16.msra.mxu0 %v868
    %1024 = vmatpush.bf16.msra.mxu0 %v864
    %1025 = vmatpush.bf16.msra.mxu0 %v860
    %1026 = vmatpush.bf16.msra.mxu0 %v856
    %1027 = vmatpush.bf16.msra.mxu0 %v852
    %1028 = vmatpush.bf16.msra.mxu0 %v848
    %1029 = vmatpush.bf16.msra.mxu0 %v844
    %1030 = vmatmul.bf16.gmra.mxu0 %v648
    %v1031 = vpop.f32.mrf.mxu0
    %v1032 = vadd.f32 %v363, %v1031
    %v1033 = vpop.f32.mrf.mxu0
    %1034 = vdwg.mxu0
    %1035 = vmatpush.bf16.msra.mxu0 %v904
    %1036 = vmatpush.bf16.msra.mxu0 %v900
    %1037 = vmatpush.bf16.msra.mxu0 %v896
    %1038 = vmatpush.bf16.msra.mxu0 %v892
    %1039 = vmatpush.bf16.msra.mxu0 %v888
    %1040 = vmatpush.bf16.msra.mxu0 %v884
    %1041 = vmatpush.bf16.msra.mxu0 %v880
    %1042 = vmatpush.bf16.msra.mxu0 %v876
    %1043 = vmatmul.bf16.gmra.mxu0 %v649
    %v1044 = vpop.f32.mrf.mxu0
    %v1045 = vadd.f32 %v1032, %v1044
    %v1046 = vpop.f32.mrf.mxu0
    %1047 = vdwg.mxu0
    %1048 = vmatpush.bf16.msra.mxu0 %v873
    %1049 = vmatpush.bf16.msra.mxu0 %v869
    %1050 = vmatpush.bf16.msra.mxu0 %v865
    %1051 = vmatpush.bf16.msra.mxu0 %v861
    %1052 = vmatpush.bf16.msra.mxu0 %v857
    %1053 = vmatpush.bf16.msra.mxu0 %v853
    %1054 = vmatpush.bf16.msra.mxu0 %v849
    %1055 = vmatpush.bf16.msra.mxu0 %v845
    %1056 = vmatmul.bf16.gmra.mxu0 %v648
    %v1057 = vpop.f32.mrf.mxu0
    %v1058 = vadd.f32 %v364, %v1057
    %v1059 = vpop.f32.mrf.mxu0
    %1060 = vdwg.mxu0
    %1061 = vmatpush.bf16.msra.mxu0 %v905
    %1062 = vmatpush.bf16.msra.mxu0 %v901
    %1063 = vmatpush.bf16.msra.mxu0 %v897
    %1064 = vmatpush.bf16.msra.mxu0 %v893
    %1065 = vmatpush.bf16.msra.mxu0 %v889
    %1066 = vmatpush.bf16.msra.mxu0 %v885
    %1067 = vmatpush.bf16.msra.mxu0 %v881
    %1068 = vmatpush.bf16.msra.mxu0 %v877
    %1069 = vmatmul.bf16.gmra.mxu0 %v649
    %v1070 = vpop.f32.mrf.mxu0
    %v1071 = vadd.f32 %v1058, %v1070
    %v1072 = vpop.f32.mrf.mxu0
    %1073 = vdwg.mxu0
    %v1074 = vxor.u32 %v993, 2147483648
    %v1075 = vmul.f32 %v1074, 1.442695
    %v1076 = vpow.pop %v1075
    %v1077 = vadd.f32 %v1076, 1.0
    %v1078 = vrcp.pop %v1077
    %v1079 = vmul.f32 %v1077, %v1078
    %v1080 = vsub.f32 1.0, %v1079
    %v1081 = vmul.f32 %v1078, %v1080
    %v1082 = vadd.f32 %v1078, %v1081
    %vm1083 = vweird.f32 %v1077
    %vm1084 = vweird.f32 %v1078
    %vm1085 = vmor %vm1083, %vm1084
    %v1086 = vsel %vm1085, %v1078, %v1082
    %v1087 = vand.u32 2147483647, %v1077
    %vm1088 = vcmp.eq.f32.partialorder %v1087, 8.507059e+37
    %v1089 = vand.u32 %v1077, 2147483648
    %v1090 = vor.u32 1.1754944e-38, %v1089
    %v1091 = vsel %vm1088, %v1090, %v1086
    %v1092 = vmul.f32 1.0, %v1091
    %v1093 = vxor.u32 %v1019, 2147483648
    %v1094 = vmul.f32 %v1093, 1.442695
    %v1095 = vpow.pop %v1094
    %v1096 = vadd.f32 %v1095, 1.0
    %v1097 = vrcp.pop %v1096
    %v1098 = vmul.f32 %v1096, %v1097
    %v1099 = vsub.f32 1.0, %v1098
    %v1100 = vmul.f32 %v1097, %v1099
    %v1101 = vadd.f32 %v1097, %v1100
    %vm1102 = vweird.f32 %v1096
    %vm1103 = vweird.f32 %v1097
    %vm1104 = vmor %vm1102, %vm1103
    %v1105 = vsel %vm1104, %v1097, %v1101
    %v1106 = vand.u32 2147483647, %v1096
    %vm1107 = vcmp.eq.f32.partialorder %v1106, 8.507059e+37
    %v1108 = vand.u32 %v1096, 2147483648
    %v1109 = vor.u32 1.1754944e-38, %v1108
    %v1110 = vsel %vm1107, %v1109, %v1105
    %v1111 = vmul.f32 1.0, %v1110
    %v1112 = vtanh.pop %v1045
    %v1113 = vxor.u32 %v1071, 2147483648
    %v1114 = vmul.f32 %v1113, 1.442695
    %v1115 = vpow.pop %v1114
    %v1116 = vadd.f32 %v1115, 1.0
    %v1117 = vrcp.pop %v1116
    %v1118 = vmul.f32 %v1116, %v1117
    %v1119 = vsub.f32 1.0, %v1118
    %v1120 = vmul.f32 %v1117, %v1119
    %v1121 = vadd.f32 %v1117, %v1120
    %vm1122 = vweird.f32 %v1116
    %vm1123 = vweird.f32 %v1117
    %vm1124 = vmor %vm1122, %vm1123
    %v1125 = vsel %vm1124, %v1117, %v1121
    %v1126 = vand.u32 2147483647, %v1116
    %vm1127 = vcmp.eq.f32.partialorder %v1126, 8.507059e+37
    %v1128 = vand.u32 %v1116, 2147483648
    %v1129 = vor.u32 1.1754944e-38, %v1128
    %v1130 = vsel %vm1127, %v1129, %v1125
    %v1131 = vmul.f32 1.0, %v1130
    %v1132 = vmul.f32 %v1111, 0.0
    %v1133 = vmul.f32 %v1092, %v1112
    %v1134 = vadd.f32 %v1132, %v1133
    %v1135 = vtanh.pop %v1134
    %v1136 = vmul.f32 %v1131, %v1135
    %1137 = vmatpush.bf16.msra.mxu0 %v493
    %1138 = vmatpush.bf16.msra.mxu0 %v489
    %1139 = vmatpush.bf16.msra.mxu0 %v485
    %1140 = vmatpush.bf16.msra.mxu0 %v481
    %1141 = vmatpush.bf16.msra.mxu0 %v477
    %1142 = vmatpush.bf16.msra.mxu0 %v473
    %1143 = vmatpush.bf16.msra.mxu0 %v469
    %1144 = vmatpush.bf16.msra.mxu0 %v465
    %1145 = vmatmul.bf16.gmra.mxu0 %v648
    %v1146 = vpop.f32.mrf.mxu0
    %v1147 = vadd.f32 0.0, %v1146
    %v1148 = vpop.f32.mrf.mxu0
    %1149 = vdwg.mxu0
    %1150 = vmatpush.bf16.msra.mxu0 %v494
    %1151 = vmatpush.bf16.msra.mxu0 %v490
    %1152 = vmatpush.bf16.msra.mxu0 %v486
    %1153 = vmatpush.bf16.msra.mxu0 %v482
    %1154 = vmatpush.bf16.msra.mxu0 %v478
    %1155 = vmatpush.bf16.msra.mxu0 %v474
    %1156 = vmatpush.bf16.msra.mxu0 %v470
    %1157 = vmatpush.bf16.msra.mxu0 %v466
    %1158 = vmatmul.bf16.gmra.mxu0 %v648
    %v1159 = vpop.f32.mrf.mxu0
    %v1160 = vadd.f32 0.0, %v1159
    %v1161 = vpop.f32.mrf.mxu0
    %1162 = vdwg.mxu0
    %1163 = vmatpush.bf16.msra.mxu0 %v495
    %1164 = vmatpush.bf16.msra.mxu0 %v491
    %1165 = vmatpush.bf16.msra.mxu0 %v487
    %1166 = vmatpush.bf16.msra.mxu0 %v483
    %1167 = vmatpush.bf16.msra.mxu0 %v479
    %1168 = vmatpush.bf16.msra.mxu0 %v475
    %1169 = vmatpush.bf16.msra.mxu0 %v471
    %1170 = vmatpush.bf16.msra.mxu0 %v467
    %1171 = vmatmul.bf16.gmra.mxu0 %v648
    %v1172 = vpop.f32.mrf.mxu0
    %v1173 = vadd.f32 0.0, %v1172
    %v1174 = vpop.f32.mrf.mxu0
    %1175 = vdwg.mxu0
    %1176 = vmatpush.bf16.msra.mxu0 %v496
    %1177 = vmatpush.bf16.msra.mxu0 %v492
    %1178 = vmatpush.bf16.msra.mxu0 %v488
    %1179 = vmatpush.bf16.msra.mxu0 %v484
    %1180 = vmatpush.bf16.msra.mxu0 %v480
    %1181 = vmatpush.bf16.msra.mxu0 %v476
    %1182 = vmatpush.bf16.msra.mxu0 %v472
    %1183 = vmatpush.bf16.msra.mxu0 %v468
    %1184 = vmatmul.bf16.gmra.mxu0 %v648
    %v1185 = vpop.f32.mrf.mxu0
    %v1186 = vadd.f32 0.0, %v1185
    %v1187 = vpop.f32.mrf.mxu0
    %1188 = vdwg.mxu0
    %v1189 = vadd.f32 %v159, %v1147
    %v1190 = vadd.f32 %v188, %v1160
    %v1191 = vadd.f32 %v217, %v1173
    %v1192 = vadd.f32 %v246, %v1186
    %v1193 = vxor.u32 %v1189, 2147483648
    %v1194 = vmul.f32 %v1193, 1.442695
    %v1195 = vpow.pop %v1194
    %v1196 = vadd.f32 %v1195, 1.0
    %v1197 = vrcp.pop %v1196
    %v1198 = vmul.f32 %v1196, %v1197
    %v1199 = vsub.f32 1.0, %v1198
    %v1200 = vmul.f32 %v1197, %v1199
    %v1201 = vadd.f32 %v1197, %v1200
    %vm1202 = vweird.f32 %v1196
    %vm1203 = vweird.f32 %v1197
    %vm1204 = vmor %vm1202, %vm1203
    %v1205 = vsel %vm1204, %v1197, %v1201
    %v1206 = vand.u32 2147483647, %v1196
    %vm1207 = vcmp.eq.f32.partialorder %v1206, 8.507059e+37
    %v1208 = vand.u32 %v1196, 2147483648
    %v1209 = vor.u32 1.1754944e-38, %v1208
    %v1210 = vsel %vm1207, %v1209, %v1205
    %v1211 = vmul.f32 1.0, %v1210
    %v1212 = vxor.u32 %v1190, 2147483648
    %v1213 = vmul.f32 %v1212, 1.442695
    %v1214 = vpow.pop %v1213
    %v1215 = vadd.f32 %v1214, 1.0
    %v1216 = vrcp.pop %v1215
    %v1217 = vmul.f32 %v1215, %v1216
    %v1218 = vsub.f32 1.0, %v1217
    %v1219 = vmul.f32 %v1216, %v1218
    %v1220 = vadd.f32 %v1216, %v1219
    %vm1221 = vweird.f32 %v1215
    %vm1222 = vweird.f32 %v1216
    %vm1223 = vmor %vm1221, %vm1222
    %v1224 = vsel %vm1223, %v1216, %v1220
    %v1225 = vand.u32 2147483647, %v1215
    %vm1226 = vcmp.eq.f32.partialorder %v1225, 8.507059e+37
    %v1227 = vand.u32 %v1215, 2147483648
    %v1228 = vor.u32 1.1754944e-38, %v1227
    %v1229 = vsel %vm1226, %v1228, %v1224
    %v1230 = vmul.f32 1.0, %v1229
    %v1231 = vtanh.pop %v1191
    %v1232 = vxor.u32 %v1192, 2147483648
    %v1233 = vmul.f32 %v1232, 1.442695
    %v1234 = vpow.pop %v1233
    %v1235 = vadd.f32 %v1234, 1.0
    %v1236 = vrcp.pop %v1235
    %v1237 = vmul.f32 %v1235, %v1236
    %v1238 = vsub.f32 1.0, %v1237
    %v1239 = vmul.f32 %v1236, %v1238
    %v1240 = vadd.f32 %v1236, %v1239
    %vm1241 = vweird.f32 %v1235
    %vm1242 = vweird.f32 %v1236
    %vm1243 = vmor %vm1241, %vm1242
    %v1244 = vsel %vm1243, %v1236, %v1240
    %v1245 = vand.u32 2147483647, %v1235
    %vm1246 = vcmp.eq.f32.partialorder %v1245, 8.507059e+37
    %v1247 = vand.u32 %v1235, 2147483648
    %v1248 = vor.u32 1.1754944e-38, %v1247
    %v1249 = vsel %vm1246, %v1248, %v1244
    %v1250 = vmul.f32 1.0, %v1249
    %v1251 = vmul.f32 %v1230, %v645
    %v1252 = vmul.f32 %v1211, %v1231
    %v1253 = vadd.f32 %v1251, %v1252
    %v1254 = vtanh.pop %v1253
    %v1255 = vmul.f32 %v1250, %v1254
    %v1256 = vpack.c.bf16 %v1255, %v1255
    %v1257 = vpack.c.bf16 %v1136, %v1136
    %1258 = vmatpush.bf16.msra.mxu0 %v870
    %1259 = vmatpush.bf16.msra.mxu0 %v866
    %1260 = vmatpush.bf16.msra.mxu0 %v862
    %1261 = vmatpush.bf16.msra.mxu0 %v858
    %1262 = vmatpush.bf16.msra.mxu0 %v854
    %1263 = vmatpush.bf16.msra.mxu0 %v850
    %1264 = vmatpush.bf16.msra.mxu0 %v846
    %1265 = vmatpush.bf16.msra.mxu0 %v842
    %1266 = vmatmul.bf16.gmra.mxu0 %v1256
    %v1267 = vpop.f32.mrf.mxu0
    %v1268 = vadd.f32 %v361, %v1267
    %v1269 = vpop.f32.mrf.mxu0
    %1270 = vdwg.mxu0
    %1271 = vmatpush.bf16.msra.mxu0 %v902
    %1272 = vmatpush.bf16.msra.mxu0 %v898
    %1273 = vmatpush.bf16.msra.mxu0 %v894
    %1274 = vmatpush.bf16.msra.mxu0 %v890
    %1275 = vmatpush.bf16.msra.mxu0 %v886
    %1276 = vmatpush.bf16.msra.mxu0 %v882
    %1277 = vmatpush.bf16.msra.mxu0 %v878
    %1278 = vmatpush.bf16.msra.mxu0 %v874
    %1279 = vmatmul.bf16.gmra.mxu0 %v1257
    %v1280 = vpop.f32.mrf.mxu0
    %v1281 = vadd.f32 %v1268, %v1280
    %v1282 = vpop.f32.mrf.mxu0
    %1283 = vdwg.mxu0
    %1284 = vmatpush.bf16.msra.mxu0 %v871
    %1285 = vmatpush.bf16.msra.mxu0 %v867
    %1286 = vmatpush.bf16.msra.mxu0 %v863
    %1287 = vmatpush.bf16.msra.mxu0 %v859
    %1288 = vmatpush.bf16.msra.mxu0 %v855
    %1289 = vmatpush.bf16.msra.mxu0 %v851
    %1290 = vmatpush.bf16.msra.mxu0 %v847
    %1291 = vmatpush.bf16.msra.mxu0 %v843
    %1292 = vmatmul.bf16.gmra.mxu0 %v1256
    %v1293 = vpop.f32.mrf.mxu0
    %v1294 = vadd.f32 %v362, %v1293
    %v1295 = vpop.f32.mrf.mxu0
    %1296 = vdwg.mxu0
    %1297 = vmatpush.bf16.msra.mxu0 %v903
    %1298 = vmatpush.bf16.msra.mxu0 %v899
    %1299 = vmatpush.bf16.msra.mxu0 %v895
    %1300 = vmatpush.bf16.msra.mxu0 %v891
    %1301 = vmatpush.bf16.msra.mxu0 %v887
    %1302 = vmatpush.bf16.msra.mxu0 %v883
    %1303 = vmatpush.bf16.msra.mxu0 %v879
    %1304 = vmatpush.bf16.msra.mxu0 %v875
    %1305 = vmatmul.bf16.gmra.mxu0 %v1257
    %v1306 = vpop.f32.mrf.mxu0
    %v1307 = vadd.f32 %v1294, %v1306
    %v1308 = vpop.f32.mrf.mxu0
    %1309 = vdwg.mxu0
    %1310 = vmatpush.bf16.msra.mxu0 %v872
    %1311 = vmatpush.bf16.msra.mxu0 %v868
    %1312 = vmatpush.bf16.msra.mxu0 %v864
    %1313 = vmatpush.bf16.msra.mxu0 %v860
    %1314 = vmatpush.bf16.msra.mxu0 %v856
    %1315 = vmatpush.bf16.msra.mxu0 %v852
    %1316 = vmatpush.bf16.msra.mxu0 %v848
    %1317 = vmatpush.bf16.msra.mxu0 %v844
    %1318 = vmatmul.bf16.gmra.mxu0 %v1256
    %v1319 = vpop.f32.mrf.mxu0
    %v1320 = vadd.f32 %v363, %v1319
    %v1321 = vpop.f32.mrf.mxu0
    %1322 = vdwg.mxu0
    %1323 = vmatpush.bf16.msra.mxu0 %v904
    %1324 = vmatpush.bf16.msra.mxu0 %v900
    %1325 = vmatpush.bf16.msra.mxu0 %v896
    %1326 = vmatpush.bf16.msra.mxu0 %v892
    %1327 = vmatpush.bf16.msra.mxu0 %v888
    %1328 = vmatpush.bf16.msra.mxu0 %v884
    %1329 = vmatpush.bf16.msra.mxu0 %v880
    %1330 = vmatpush.bf16.msra.mxu0 %v876
    %1331 = vmatmul.bf16.gmra.mxu0 %v1257
    %v1332 = vpop.f32.mrf.mxu0
    %v1333 = vadd.f32 %v1320, %v1332
    %v1334 = vpop.f32.mrf.mxu0
    %1335 = vdwg.mxu0
    %1336 = vmatpush.bf16.msra.mxu0 %v873
    %1337 = vmatpush.bf16.msra.mxu0 %v869
    %1338 = vmatpush.bf16.msra.mxu0 %v865
    %1339 = vmatpush.bf16.msra.mxu0 %v861
    %1340 = vmatpush.bf16.msra.mxu0 %v857
    %1341 = vmatpush.bf16.msra.mxu0 %v853
    %1342 = vmatpush.bf16.msra.mxu0 %v849
    %1343 = vmatpush.bf16.msra.mxu0 %v845
    %1344 = vmatmul.bf16.gmra.mxu0 %v1256
    %v1345 = vpop.f32.mrf.mxu0
    %v1346 = vadd.f32 %v364, %v1345
    %v1347 = vpop.f32.mrf.mxu0
    %1348 = vdwg.mxu0
    %1349 = vmatpush.bf16.msra.mxu0 %v905
    %1350 = vmatpush.bf16.msra.mxu0 %v901
    %1351 = vmatpush.bf16.msra.mxu0 %v897
    %1352 = vmatpush.bf16.msra.mxu0 %v893
    %1353 = vmatpush.bf16.msra.mxu0 %v889
    %1354 = vmatpush.bf16.msra.mxu0 %v885
    %1355 = vmatpush.bf16.msra.mxu0 %v881
    %1356 = vmatpush.bf16.msra.mxu0 %v877
    %1357 = vmatmul.bf16.gmra.mxu0 %v1257
    %v1358 = vpop.f32.mrf.mxu0
    %v1359 = vadd.f32 %v1346, %v1358
    %v1360 = vpop.f32.mrf.mxu0
    %1361 = vdwg.mxu0
    %v1362 = vxor.u32 %v1281, 2147483648
    %v1363 = vmul.f32 %v1362, 1.442695
    %v1364 = vpow.pop %v1363
    %v1365 = vadd.f32 %v1364, 1.0
    %v1366 = vrcp.pop %v1365
    %v1367 = vmul.f32 %v1365, %v1366
    %v1368 = vsub.f32 1.0, %v1367
    %v1369 = vmul.f32 %v1366, %v1368
    %v1370 = vadd.f32 %v1366, %v1369
    %vm1371 = vweird.f32 %v1365
    %vm1372 = vweird.f32 %v1366
    %vm1373 = vmor %vm1371, %vm1372
    %v1374 = vsel %vm1373, %v1366, %v1370
    %v1375 = vand.u32 2147483647, %v1365
    %vm1376 = vcmp.eq.f32.partialorder %v1375, 8.507059e+37
    %v1377 = vand.u32 %v1365, 2147483648
    %v1378 = vor.u32 1.1754944e-38, %v1377
    %v1379 = vsel %vm1376, %v1378, %v1374
    %v1380 = vmul.f32 1.0, %v1379
    %v1381 = vxor.u32 %v1307, 2147483648
    %v1382 = vmul.f32 %v1381, 1.442695
    %v1383 = vpow.pop %v1382
    %v1384 = vadd.f32 %v1383, 1.0
    %v1385 = vrcp.pop %v1384
    %v1386 = vmul.f32 %v1384, %v1385
    %v1387 = vsub.f32 1.0, %v1386
    %v1388 = vmul.f32 %v1385, %v1387
    %v1389 = vadd.f32 %v1385, %v1388
    %vm1390 = vweird.f32 %v1384
    %vm1391 = vweird.f32 %v1385
    %vm1392 = vmor %vm1390, %vm1391
    %v1393 = vsel %vm1392, %v1385, %v1389
    %v1394 = vand.u32 2147483647, %v1384
    %vm1395 = vcmp.eq.f32.partialorder %v1394, 8.507059e+37
    %v1396 = vand.u32 %v1384, 2147483648
    %v1397 = vor.u32 1.1754944e-38, %v1396
    %v1398 = vsel %vm1395, %v1397, %v1393
    %v1399 = vmul.f32 1.0, %v1398
    %v1400 = vtanh.pop %v1333
    %v1401 = vxor.u32 %v1359, 2147483648
    %v1402 = vmul.f32 %v1401, 1.442695
    %v1403 = vpow.pop %v1402
    %v1404 = vadd.f32 %v1403, 1.0
    %v1405 = vrcp.pop %v1404
    %v1406 = vmul.f32 %v1404, %v1405
    %v1407 = vsub.f32 1.0, %v1406
    %v1408 = vmul.f32 %v1405, %v1407
    %v1409 = vadd.f32 %v1405, %v1408
    %vm1410 = vweird.f32 %v1404
    %vm1411 = vweird.f32 %v1405
    %vm1412 = vmor %vm1410, %vm1411
    %v1413 = vsel %vm1412, %v1405, %v1409
    %v1414 = vand.u32 2147483647, %v1404
    %vm1415 = vcmp.eq.f32.partialorder %v1414, 8.507059e+37
    %v1416 = vand.u32 %v1404, 2147483648
    %v1417 = vor.u32 1.1754944e-38, %v1416
    %v1418 = vsel %vm1415, %v1417, %v1413
    %v1419 = vmul.f32 1.0, %v1418
    %v1420 = vmul.f32 %v1399, %v1134
    %v1421 = vmul.f32 %v1380, %v1400
    %v1422 = vadd.f32 %v1420, %v1421
    %v1423 = vtanh.pop %v1422
    %v1424 = vmul.f32 %v1419, %v1423
    %1425 = vmatpush.bf16.msra.mxu0 %v493
    %1426 = vmatpush.bf16.msra.mxu0 %v489
    %1427 = vmatpush.bf16.msra.mxu0 %v485
    %1428 = vmatpush.bf16.msra.mxu0 %v481
    %1429 = vmatpush.bf16.msra.mxu0 %v477
    %1430 = vmatpush.bf16.msra.mxu0 %v473
    %1431 = vmatpush.bf16.msra.mxu0 %v469
    %1432 = vmatpush.bf16.msra.mxu0 %v465
    %1433 = vmatmul.bf16.gmra.mxu0 %v1256
    %v1434 = vpop.f32.mrf.mxu0
    %v1435 = vadd.f32 0.0, %v1434
    %v1436 = vpop.f32.mrf.mxu0
    %1437 = vdwg.mxu0
    %1438 = vmatpush.bf16.msra.mxu0 %v494
    %1439 = vmatpush.bf16.msra.mxu0 %v490
    %1440 = vmatpush.bf16.msra.mxu0 %v486
    %1441 = vmatpush.bf16.msra.mxu0 %v482
    %1442 = vmatpush.bf16.msra.mxu0 %v478
    %1443 = vmatpush.bf16.msra.mxu0 %v474
    %1444 = vmatpush.bf16.msra.mxu0 %v470
    %1445 = vmatpush.bf16.msra.mxu0 %v466
    %1446 = vmatmul.bf16.gmra.mxu0 %v1256
    %v1447 = vpop.f32.mrf.mxu0
    %v1448 = vadd.f32 0.0, %v1447
    %v1449 = vpop.f32.mrf.mxu0
    %1450 = vdwg.mxu0
    %1451 = vmatpush.bf16.msra.mxu0 %v495
    %1452 = vmatpush.bf16.msra.mxu0 %v491
    %1453 = vmatpush.bf16.msra.mxu0 %v487
    %1454 = vmatpush.bf16.msra.mxu0 %v483
    %1455 = vmatpush.bf16.msra.mxu0 %v479
    %1456 = vmatpush.bf16.msra.mxu0 %v475
    %1457 = vmatpush.bf16.msra.mxu0 %v471
    %1458 = vmatpush.bf16.msra.mxu0 %v467
    %1459 = vmatmul.bf16.gmra.mxu0 %v1256
    %v1460 = vpop.f32.mrf.mxu0
    %v1461 = vadd.f32 0.0, %v1460
    %v1462 = vpop.f32.mrf.mxu0
    %1463 = vdwg.mxu0
    %1464 = vmatpush.bf16.msra.mxu0 %v496
    %1465 = vmatpush.bf16.msra.mxu0 %v492
    %1466 = vmatpush.bf16.msra.mxu0 %v488
    %1467 = vmatpush.bf16.msra.mxu0 %v484
    %1468 = vmatpush.bf16.msra.mxu0 %v480
    %1469 = vmatpush.bf16.msra.mxu0 %v476
    %1470 = vmatpush.bf16.msra.mxu0 %v472
    %1471 = vmatpush.bf16.msra.mxu0 %v468
    %1472 = vmatmul.bf16.gmra.mxu0 %v1256
    %v1473 = vpop.f32.mrf.mxu0
    %v1474 = vadd.f32 0.0, %v1473
    %v1475 = vpop.f32.mrf.mxu0
    %1476 = vdwg.mxu0
    %v1477 = vadd.f32 %v162, %v1435
    %v1478 = vadd.f32 %v191, %v1448
    %v1479 = vadd.f32 %v220, %v1461
    %v1480 = vadd.f32 %v249, %v1474
    %v1481 = vxor.u32 %v1477, 2147483648
    %v1482 = vmul.f32 %v1481, 1.442695
    %v1483 = vpow.pop %v1482
    %v1484 = vadd.f32 %v1483, 1.0
    %v1485 = vrcp.pop %v1484
    %v1486 = vmul.f32 %v1484, %v1485
    %v1487 = vsub.f32 1.0, %v1486
    %v1488 = vmul.f32 %v1485, %v1487
    %v1489 = vadd.f32 %v1485, %v1488
    %vm1490 = vweird.f32 %v1484
    %vm1491 = vweird.f32 %v1485
    %vm1492 = vmor %vm1490, %vm1491
    %v1493 = vsel %vm1492, %v1485, %v1489
    %v1494 = vand.u32 2147483647, %v1484
    %vm1495 = vcmp.eq.f32.partialorder %v1494, 8.507059e+37
    %v1496 = vand.u32 %v1484, 2147483648
    %v1497 = vor.u32 1.1754944e-38, %v1496
    %v1498 = vsel %vm1495, %v1497, %v1493
    %v1499 = vmul.f32 1.0, %v1498
    %v1500 = vxor.u32 %v1478, 2147483648
    %v1501 = vmul.f32 %v1500, 1.442695
    %v1502 = vpow.pop %v1501
    %v1503 = vadd.f32 %v1502, 1.0
    %v1504 = vrcp.pop %v1503
    %v1505 = vmul.f32 %v1503, %v1504
    %v1506 = vsub.f32 1.0, %v1505
    %v1507 = vmul.f32 %v1504, %v1506
    %v1508 = vadd.f32 %v1504, %v1507
    %vm1509 = vweird.f32 %v1503
    %vm1510 = vweird.f32 %v1504
    %vm1511 = vmor %vm1509, %vm1510
    %v1512 = vsel %vm1511, %v1504, %v1508
    %v1513 = vand.u32 2147483647, %v1503
    %vm1514 = vcmp.eq.f32.partialorder %v1513, 8.507059e+37
    %v1515 = vand.u32 %v1503, 2147483648
    %v1516 = vor.u32 1.1754944e-38, %v1515
    %v1517 = vsel %vm1514, %v1516, %v1512
    %v1518 = vmul.f32 1.0, %v1517
    %v1519 = vtanh.pop %v1479
    %v1520 = vxor.u32 %v1480, 2147483648
    %v1521 = vmul.f32 %v1520, 1.442695
    %v1522 = vpow.pop %v1521
    %v1523 = vadd.f32 %v1522, 1.0
    %v1524 = vrcp.pop %v1523
    %v1525 = vmul.f32 %v1523, %v1524
    %v1526 = vsub.f32 1.0, %v1525
    %v1527 = vmul.f32 %v1524, %v1526
    %v1528 = vadd.f32 %v1524, %v1527
    %vm1529 = vweird.f32 %v1523
    %vm1530 = vweird.f32 %v1524
    %vm1531 = vmor %vm1529, %vm1530
    %v1532 = vsel %vm1531, %v1524, %v1528
    %v1533 = vand.u32 2147483647, %v1523
    %vm1534 = vcmp.eq.f32.partialorder %v1533, 8.507059e+37
    %v1535 = vand.u32 %v1523, 2147483648
    %v1536 = vor.u32 1.1754944e-38, %v1535
    %v1537 = vsel %vm1534, %v1536, %v1532
    %v1538 = vmul.f32 1.0, %v1537
    %v1539 = vmul.f32 %v1518, %v1253
    %v1540 = vmul.f32 %v1499, %v1519
    %v1541 = vadd.f32 %v1539, %v1540
    %v1542 = vtanh.pop %v1541
    %v1543 = vmul.f32 %v1538, %v1542
    %v1544 = vpack.c.bf16 %v1543, %v1543
    %v1545 = vpack.c.bf16 %v1424, %v1424
    %1546 = vmatpush.bf16.msra.mxu0 %v870
    %1547 = vmatpush.bf16.msra.mxu0 %v866
    %1548 = vmatpush.bf16.msra.mxu0 %v862
    %1549 = vmatpush.bf16.msra.mxu0 %v858
    %1550 = vmatpush.bf16.msra.mxu0 %v854
    %1551 = vmatpush.bf16.msra.mxu0 %v850
    %1552 = vmatpush.bf16.msra.mxu0 %v846
    %1553 = vmatpush.bf16.msra.mxu0 %v842
    %1554 = vmatmul.bf16.gmra.mxu0 %v1544
    %v1555 = vpop.f32.mrf.mxu0
    %v1556 = vadd.f32 %v361, %v1555
    %v1557 = vpop.f32.mrf.mxu0
    %1558 = vdwg.mxu0
    %1559 = vmatpush.bf16.msra.mxu0 %v902
    %1560 = vmatpush.bf16.msra.mxu0 %v898
    %1561 = vmatpush.bf16.msra.mxu0 %v894
    %1562 = vmatpush.bf16.msra.mxu0 %v890
    %1563 = vmatpush.bf16.msra.mxu0 %v886
    %1564 = vmatpush.bf16.msra.mxu0 %v882
    %1565 = vmatpush.bf16.msra.mxu0 %v878
    %1566 = vmatpush.bf16.msra.mxu0 %v874
    %1567 = vmatmul.bf16.gmra.mxu0 %v1545
    %v1568 = vpop.f32.mrf.mxu0
    %v1569 = vadd.f32 %v1556, %v1568
    %v1570 = vpop.f32.mrf.mxu0
    %1571 = vdwg.mxu0
    %1572 = vmatpush.bf16.msra.mxu0 %v871
    %1573 = vmatpush.bf16.msra.mxu0 %v867
    %1574 = vmatpush.bf16.msra.mxu0 %v863
    %1575 = vmatpush.bf16.msra.mxu0 %v859
    %1576 = vmatpush.bf16.msra.mxu0 %v855
    %1577 = vmatpush.bf16.msra.mxu0 %v851
    %1578 = vmatpush.bf16.msra.mxu0 %v847
    %1579 = vmatpush.bf16.msra.mxu0 %v843
    %1580 = vmatmul.bf16.gmra.mxu0 %v1544
    %v1581 = vpop.f32.mrf.mxu0
    %v1582 = vadd.f32 %v362, %v1581
    %v1583 = vpop.f32.mrf.mxu0
    %1584 = vdwg.mxu0
    %1585 = vmatpush.bf16.msra.mxu0 %v903
    %1586 = vmatpush.bf16.msra.mxu0 %v899
    %1587 = vmatpush.bf16.msra.mxu0 %v895
    %1588 = vmatpush.bf16.msra.mxu0 %v891
    %1589 = vmatpush.bf16.msra.mxu0 %v887
    %1590 = vmatpush.bf16.msra.mxu0 %v883
    %1591 = vmatpush.bf16.msra.mxu0 %v879
    %1592 = vmatpush.bf16.msra.mxu0 %v875
    %1593 = vmatmul.bf16.gmra.mxu0 %v1545
    %v1594 = vpop.f32.mrf.mxu0
    %v1595 = vadd.f32 %v1582, %v1594
    %v1596 = vpop.f32.mrf.mxu0
    %1597 = vdwg.mxu0
    %1598 = vmatpush.bf16.msra.mxu0 %v872
    %1599 = vmatpush.bf16.msra.mxu0 %v868
    %1600 = vmatpush.bf16.msra.mxu0 %v864
    %1601 = vmatpush.bf16.msra.mxu0 %v860
    %1602 = vmatpush.bf16.msra.mxu0 %v856
    %1603 = vmatpush.bf16.msra.mxu0 %v852
    %1604 = vmatpush.bf16.msra.mxu0 %v848
    %1605 = vmatpush.bf16.msra.mxu0 %v844
    %1606 = vmatmul.bf16.gmra.mxu0 %v1544
    %v1607 = vpop.f32.mrf.mxu0
    %v1608 = vadd.f32 %v363, %v1607
    %v1609 = vpop.f32.mrf.mxu0
    %1610 = vdwg.mxu0
    %1611 = vmatpush.bf16.msra.mxu0 %v904
    %1612 = vmatpush.bf16.msra.mxu0 %v900
    %1613 = vmatpush.bf16.msra.mxu0 %v896
    %1614 = vmatpush.bf16.msra.mxu0 %v892
    %1615 = vmatpush.bf16.msra.mxu0 %v888
    %1616 = vmatpush.bf16.msra.mxu0 %v884
    %1617 = vmatpush.bf16.msra.mxu0 %v880
    %1618 = vmatpush.bf16.msra.mxu0 %v876
    %1619 = vmatmul.bf16.gmra.mxu0 %v1545
    %v1620 = vpop.f32.mrf.mxu0
    %v1621 = vadd.f32 %v1608, %v1620
    %v1622 = vpop.f32.mrf.mxu0
    %1623 = vdwg.mxu0
    %1624 = vmatpush.bf16.msra.mxu0 %v873
    %1625 = vmatpush.bf16.msra.mxu0 %v869
    %1626 = vmatpush.bf16.msra.mxu0 %v865
    %1627 = vmatpush.bf16.msra.mxu0 %v861
    %1628 = vmatpush.bf16.msra.mxu0 %v857
    %1629 = vmatpush.bf16.msra.mxu0 %v853
    %1630 = vmatpush.bf16.msra.mxu0 %v849
    %1631 = vmatpush.bf16.msra.mxu0 %v845
    %1632 = vmatmul.bf16.gmra.mxu0 %v1544
    %v1633 = vpop.f32.mrf.mxu0
    %v1634 = vadd.f32 %v364, %v1633
    %v1635 = vpop.f32.mrf.mxu0
    %1636 = vdwg.mxu0
    %1637 = vmatpush.bf16.msra.mxu0 %v905
    %1638 = vmatpush.bf16.msra.mxu0 %v901
    %1639 = vmatpush.bf16.msra.mxu0 %v897
    %1640 = vmatpush.bf16.msra.mxu0 %v893
    %1641 = vmatpush.bf16.msra.mxu0 %v889
    %1642 = vmatpush.bf16.msra.mxu0 %v885
    %1643 = vmatpush.bf16.msra.mxu0 %v881
    %1644 = vmatpush.bf16.msra.mxu0 %v877
    %1645 = vmatmul.bf16.gmra.mxu0 %v1545
    %v1646 = vpop.f32.mrf.mxu0
    %v1647 = vadd.f32 %v1634, %v1646
    %v1648 = vpop.f32.mrf.mxu0
    %1649 = vdwg.mxu0
    %v1650 = vxor.u32 %v1569, 2147483648
    %v1651 = vmul.f32 %v1650, 1.442695
    %v1652 = vpow.pop %v1651
    %v1653 = vadd.f32 %v1652, 1.0
    %v1654 = vrcp.pop %v1653
    %v1655 = vmul.f32 %v1653, %v1654
    %v1656 = vsub.f32 1.0, %v1655
    %v1657 = vmul.f32 %v1654, %v1656
    %v1658 = vadd.f32 %v1654, %v1657
    %vm1659 = vweird.f32 %v1653
    %vm1660 = vweird.f32 %v1654
    %vm1661 = vmor %vm1659, %vm1660
    %v1662 = vsel %vm1661, %v1654, %v1658
    %v1663 = vand.u32 2147483647, %v1653
    %vm1664 = vcmp.eq.f32.partialorder %v1663, 8.507059e+37
    %v1665 = vand.u32 %v1653, 2147483648
    %v1666 = vor.u32 1.1754944e-38, %v1665
    %v1667 = vsel %vm1664, %v1666, %v1662
    %v1668 = vmul.f32 1.0, %v1667
    %v1669 = vxor.u32 %v1595, 2147483648
    %v1670 = vmul.f32 %v1669, 1.442695
    %v1671 = vpow.pop %v1670
    %v1672 = vadd.f32 %v1671, 1.0
    %v1673 = vrcp.pop %v1672
    %v1674 = vmul.f32 %v1672, %v1673
    %v1675 = vsub.f32 1.0, %v1674
    %v1676 = vmul.f32 %v1673, %v1675
    %v1677 = vadd.f32 %v1673, %v1676
    %vm1678 = vweird.f32 %v1672
    %vm1679 = vweird.f32 %v1673
    %vm1680 = vmor %vm1678, %vm1679
    %v1681 = vsel %vm1680, %v1673, %v1677
    %v1682 = vand.u32 2147483647, %v1672
    %vm1683 = vcmp.eq.f32.partialorder %v1682, 8.507059e+37
    %v1684 = vand.u32 %v1672, 2147483648
    %v1685 = vor.u32 1.1754944e-38, %v1684
    %v1686 = vsel %vm1683, %v1685, %v1681
    %v1687 = vmul.f32 1.0, %v1686
    %v1688 = vtanh.pop %v1621
    %v1689 = vxor.u32 %v1647, 2147483648
    %v1690 = vmul.f32 %v1689, 1.442695
    %v1691 = vpow.pop %v1690
    %v1692 = vadd.f32 %v1691, 1.0
    %v1693 = vrcp.pop %v1692
    %v1694 = vmul.f32 %v1692, %v1693
    %v1695 = vsub.f32 1.0, %v1694
    %v1696 = vmul.f32 %v1693, %v1695
    %v1697 = vadd.f32 %v1693, %v1696
    %vm1698 = vweird.f32 %v1692
    %vm1699 = vweird.f32 %v1693
    %vm1700 = vmor %vm1698, %vm1699
    %v1701 = vsel %vm1700, %v1693, %v1697
    %v1702 = vand.u32 2147483647, %v1692
    %vm1703 = vcmp.eq.f32.partialorder %v1702, 8.507059e+37
    %v1704 = vand.u32 %v1692, 2147483648
    %v1705 = vor.u32 1.1754944e-38, %v1704
    %v1706 = vsel %vm1703, %v1705, %v1701
    %v1707 = vmul.f32 1.0, %v1706
    %v1708 = vmul.f32 %v1687, %v1422
    %v1709 = vmul.f32 %v1668, %v1688
    %v1710 = vadd.f32 %v1708, %v1709
    %v1711 = vtanh.pop %v1710
    %v1712 = vmul.f32 %v1707, %v1711
    %1713 = vmatpush.bf16.msra.mxu0 %v493
    %1714 = vmatpush.bf16.msra.mxu0 %v489
    %1715 = vmatpush.bf16.msra.mxu0 %v485
    %1716 = vmatpush.bf16.msra.mxu0 %v481
    %1717 = vmatpush.bf16.msra.mxu0 %v477
    %1718 = vmatpush.bf16.msra.mxu0 %v473
    %1719 = vmatpush.bf16.msra.mxu0 %v469
    %1720 = vmatpush.bf16.msra.mxu0 %v465
    %1721 = vmatmul.bf16.gmra.mxu0 %v1544
    %v1722 = vpop.f32.mrf.mxu0
    %v1723 = vadd.f32 0.0, %v1722
    %v1724 = vpop.f32.mrf.mxu0
    %1725 = vdwg.mxu0
    %1726 = vmatpush.bf16.msra.mxu0 %v494
    %1727 = vmatpush.bf16.msra.mxu0 %v490
    %1728 = vmatpush.bf16.msra.mxu0 %v486
    %1729 = vmatpush.bf16.msra.mxu0 %v482
    %1730 = vmatpush.bf16.msra.mxu0 %v478
    %1731 = vmatpush.bf16.msra.mxu0 %v474
    %1732 = vmatpush.bf16.msra.mxu0 %v470
    %1733 = vmatpush.bf16.msra.mxu0 %v466
    %1734 = vmatmul.bf16.gmra.mxu0 %v1544
    %v1735 = vpop.f32.mrf.mxu0
    %v1736 = vadd.f32 0.0, %v1735
    %v1737 = vpop.f32.mrf.mxu0
    %1738 = vdwg.mxu0
    %1739 = vmatpush.bf16.msra.mxu0 %v495
    %1740 = vmatpush.bf16.msra.mxu0 %v491
    %1741 = vmatpush.bf16.msra.mxu0 %v487
    %1742 = vmatpush.bf16.msra.mxu0 %v483
    %1743 = vmatpush.bf16.msra.mxu0 %v479
    %1744 = vmatpush.bf16.msra.mxu0 %v475
    %1745 = vmatpush.bf16.msra.mxu0 %v471
    %1746 = vmatpush.bf16.msra.mxu0 %v467
    %1747 = vmatmul.bf16.gmra.mxu0 %v1544
    %v1748 = vpop.f32.mrf.mxu0
    %v1749 = vadd.f32 0.0, %v1748
    %v1750 = vpop.f32.mrf.mxu0
    %1751 = vdwg.mxu0
    %1752 = vmatpush.bf16.msra.mxu0 %v496
    %1753 = vmatpush.bf16.msra.mxu0 %v492
    %1754 = vmatpush.bf16.msra.mxu0 %v488
    %1755 = vmatpush.bf16.msra.mxu0 %v484
    %1756 = vmatpush.bf16.msra.mxu0 %v480
    %1757 = vmatpush.bf16.msra.mxu0 %v476
    %1758 = vmatpush.bf16.msra.mxu0 %v472
    %1759 = vmatpush.bf16.msra.mxu0 %v468
    %1760 = vmatmul.bf16.gmra.mxu0 %v1544
    %v1761 = vpop.f32.mrf.mxu0
    %v1762 = vadd.f32 0.0, %v1761
    %v1763 = vpop.f32.mrf.mxu0
    %1764 = vdwg.mxu0
    %v1765 = vadd.f32 %v164, %v1723
    %v1766 = vadd.f32 %v193, %v1736
    %v1767 = vadd.f32 %v222, %v1749
    %v1768 = vadd.f32 %v251, %v1762
    %v1769 = vxor.u32 %v1765, 2147483648
    %v1770 = vmul.f32 %v1769, 1.442695
    %v1771 = vpow.pop %v1770
    %v1772 = vadd.f32 %v1771, 1.0
    %v1773 = vrcp.pop %v1772
    %v1774 = vmul.f32 %v1772, %v1773
    %v1775 = vsub.f32 1.0, %v1774
    %v1776 = vmul.f32 %v1773, %v1775
    %v1777 = vadd.f32 %v1773, %v1776
    %vm1778 = vweird.f32 %v1772
    %vm1779 = vweird.f32 %v1773
    %vm1780 = vmor %vm1778, %vm1779
    %v1781 = vsel %vm1780, %v1773, %v1777
    %v1782 = vand.u32 2147483647, %v1772
    %vm1783 = vcmp.eq.f32.partialorder %v1782, 8.507059e+37
    %v1784 = vand.u32 %v1772, 2147483648
    %v1785 = vor.u32 1.1754944e-38, %v1784
    %v1786 = vsel %vm1783, %v1785, %v1781
    %v1787 = vmul.f32 1.0, %v1786
    %v1788 = vxor.u32 %v1766, 2147483648
    %v1789 = vmul.f32 %v1788, 1.442695
    %v1790 = vpow.pop %v1789
    %v1791 = vadd.f32 %v1790, 1.0
    %v1792 = vrcp.pop %v1791
    %v1793 = vmul.f32 %v1791, %v1792
    %v1794 = vsub.f32 1.0, %v1793
    %v1795 = vmul.f32 %v1792, %v1794
    %v1796 = vadd.f32 %v1792, %v1795
    %vm1797 = vweird.f32 %v1791
    %vm1798 = vweird.f32 %v1792
    %vm1799 = vmor %vm1797, %vm1798
    %v1800 = vsel %vm1799, %v1792, %v1796
    %v1801 = vand.u32 2147483647, %v1791
    %vm1802 = vcmp.eq.f32.partialorder %v1801, 8.507059e+37
    %v1803 = vand.u32 %v1791, 2147483648
    %v1804 = vor.u32 1.1754944e-38, %v1803
    %v1805 = vsel %vm1802, %v1804, %v1800
    %v1806 = vmul.f32 1.0, %v1805
    %v1807 = vtanh.pop %v1767
    %v1808 = vxor.u32 %v1768, 2147483648
    %v1809 = vmul.f32 %v1808, 1.442695
    %v1810 = vpow.pop %v1809
    %v1811 = vadd.f32 %v1810, 1.0
    %v1812 = vrcp.pop %v1811
    %v1813 = vmul.f32 %v1811, %v1812
    %v1814 = vsub.f32 1.0, %v1813
    %v1815 = vmul.f32 %v1812, %v1814
    %v1816 = vadd.f32 %v1812, %v1815
    %vm1817 = vweird.f32 %v1811
    %vm1818 = vweird.f32 %v1812
    %vm1819 = vmor %vm1817, %vm1818
    %v1820 = vsel %vm1819, %v1812, %v1816
    %v1821 = vand.u32 2147483647, %v1811
    %vm1822 = vcmp.eq.f32.partialorder %v1821, 8.507059e+37
    %v1823 = vand.u32 %v1811, 2147483648
    %v1824 = vor.u32 1.1754944e-38, %v1823
    %v1825 = vsel %vm1822, %v1824, %v1820
    %v1826 = vmul.f32 1.0, %v1825
    %v1827 = vmul.f32 %v1806, %v1541
    %v1828 = vmul.f32 %v1787, %v1807
    %v1829 = vadd.f32 %v1827, %v1828
    %v1830 = vtanh.pop %v1829
    %v1831 = vmul.f32 %v1826, %v1830
    %v1832 = vpack.c.bf16 %v1831, %v1831
    %v1833 = vpack.c.bf16 %v1712, %v1712
    %1834 = vmatpush.bf16.msra.mxu0 %v870
    %1835 = vmatpush.bf16.msra.mxu0 %v866
    %1836 = vmatpush.bf16.msra.mxu0 %v862
    %1837 = vmatpush.bf16.msra.mxu0 %v858
    %1838 = vmatpush.bf16.msra.mxu0 %v854
    %1839 = vmatpush.bf16.msra.mxu0 %v850
    %1840 = vmatpush.bf16.msra.mxu0 %v846
    %1841 = vmatpush.bf16.msra.mxu0 %v842
    %1842 = vmatmul.bf16.gmra.mxu0 %v1832
    %v1843 = vpop.f32.mrf.mxu0
    %v1844 = vadd.f32 %v361, %v1843
    %v1845 = vpop.f32.mrf.mxu0
    %1846 = vdwg.mxu0
    %1847 = vmatpush.bf16.msra.mxu0 %v902
    %1848 = vmatpush.bf16.msra.mxu0 %v898
    %1849 = vmatpush.bf16.msra.mxu0 %v894
    %1850 = vmatpush.bf16.msra.mxu0 %v890
    %1851 = vmatpush.bf16.msra.mxu0 %v886
    %1852 = vmatpush.bf16.msra.mxu0 %v882
    %1853 = vmatpush.bf16.msra.mxu0 %v878
    %1854 = vmatpush.bf16.msra.mxu0 %v874
    %1855 = vmatmul.bf16.gmra.mxu0 %v1833
    %v1856 = vpop.f32.mrf.mxu0
    %v1857 = vadd.f32 %v1844, %v1856
    %v1858 = vpop.f32.mrf.mxu0
    %1859 = vdwg.mxu0
    %1860 = vmatpush.bf16.msra.mxu0 %v871
    %1861 = vmatpush.bf16.msra.mxu0 %v867
    %1862 = vmatpush.bf16.msra.mxu0 %v863
    %1863 = vmatpush.bf16.msra.mxu0 %v859
    %1864 = vmatpush.bf16.msra.mxu0 %v855
    %1865 = vmatpush.bf16.msra.mxu0 %v851
    %1866 = vmatpush.bf16.msra.mxu0 %v847
    %1867 = vmatpush.bf16.msra.mxu0 %v843
    %1868 = vmatmul.bf16.gmra.mxu0 %v1832
    %v1869 = vpop.f32.mrf.mxu0
    %v1870 = vadd.f32 %v362, %v1869
    %v1871 = vpop.f32.mrf.mxu0
    %1872 = vdwg.mxu0
    %1873 = vmatpush.bf16.msra.mxu0 %v903
    %1874 = vmatpush.bf16.msra.mxu0 %v899
    %1875 = vmatpush.bf16.msra.mxu0 %v895
    %1876 = vmatpush.bf16.msra.mxu0 %v891
    %1877 = vmatpush.bf16.msra.mxu0 %v887
    %1878 = vmatpush.bf16.msra.mxu0 %v883
    %1879 = vmatpush.bf16.msra.mxu0 %v879
    %1880 = vmatpush.bf16.msra.mxu0 %v875
    %1881 = vmatmul.bf16.gmra.mxu0 %v1833
    %v1882 = vpop.f32.mrf.mxu0
    %v1883 = vadd.f32 %v1870, %v1882
    %v1884 = vpop.f32.mrf.mxu0
    %1885 = vdwg.mxu0
    %1886 = vmatpush.bf16.msra.mxu0 %v872
    %1887 = vmatpush.bf16.msra.mxu0 %v868
    %1888 = vmatpush.bf16.msra.mxu0 %v864
    %1889 = vmatpush.bf16.msra.mxu0 %v860
    %1890 = vmatpush.bf16.msra.mxu0 %v856
    %1891 = vmatpush.bf16.msra.mxu0 %v852
    %1892 = vmatpush.bf16.msra.mxu0 %v848
    %1893 = vmatpush.bf16.msra.mxu0 %v844
    %1894 = vmatmul.bf16.gmra.mxu0 %v1832
    %v1895 = vpop.f32.mrf.mxu0
    %v1896 = vadd.f32 %v363, %v1895
    %v1897 = vpop.f32.mrf.mxu0
    %1898 = vdwg.mxu0
    %1899 = vmatpush.bf16.msra.mxu0 %v904
    %1900 = vmatpush.bf16.msra.mxu0 %v900
    %1901 = vmatpush.bf16.msra.mxu0 %v896
    %1902 = vmatpush.bf16.msra.mxu0 %v892
    %1903 = vmatpush.bf16.msra.mxu0 %v888
    %1904 = vmatpush.bf16.msra.mxu0 %v884
    %1905 = vmatpush.bf16.msra.mxu0 %v880
    %1906 = vmatpush.bf16.msra.mxu0 %v876
    %1907 = vmatmul.bf16.gmra.mxu0 %v1833
    %v1908 = vpop.f32.mrf.mxu0
    %v1909 = vadd.f32 %v1896, %v1908
    %v1910 = vpop.f32.mrf.mxu0
    %1911 = vdwg.mxu0
    %1912 = vmatpush.bf16.msra.mxu0 %v873
    %1913 = vmatpush.bf16.msra.mxu0 %v869
    %1914 = vmatpush.bf16.msra.mxu0 %v865
    %1915 = vmatpush.bf16.msra.mxu0 %v861
    %1916 = vmatpush.bf16.msra.mxu0 %v857
    %1917 = vmatpush.bf16.msra.mxu0 %v853
    %1918 = vmatpush.bf16.msra.mxu0 %v849
    %1919 = vmatpush.bf16.msra.mxu0 %v845
    %1920 = vmatmul.bf16.gmra.mxu0 %v1832
    %v1921 = vpop.f32.mrf.mxu0
    %v1922 = vadd.f32 %v364, %v1921
    %v1923 = vpop.f32.mrf.mxu0
    %1924 = vdwg.mxu0
    %1925 = vmatpush.bf16.msra.mxu0 %v905
    %1926 = vmatpush.bf16.msra.mxu0 %v901
    %1927 = vmatpush.bf16.msra.mxu0 %v897
    %1928 = vmatpush.bf16.msra.mxu0 %v893
    %1929 = vmatpush.bf16.msra.mxu0 %v889
    %1930 = vmatpush.bf16.msra.mxu0 %v885
    %1931 = vmatpush.bf16.msra.mxu0 %v881
    %1932 = vmatpush.bf16.msra.mxu0 %v877
    %1933 = vmatmul.bf16.gmra.mxu0 %v1833
    %v1934 = vpop.f32.mrf.mxu0
    %v1935 = vadd.f32 %v1922, %v1934
    %v1936 = vpop.f32.mrf.mxu0
    %1937 = vdwg.mxu0
    %v1938 = vxor.u32 %v1857, 2147483648
    %v1939 = vmul.f32 %v1938, 1.442695
    %v1940 = vpow.pop %v1939
    %v1941 = vadd.f32 %v1940, 1.0
    %v1942 = vrcp.pop %v1941
    %v1943 = vmul.f32 %v1941, %v1942
    %v1944 = vsub.f32 1.0, %v1943
    %v1945 = vmul.f32 %v1942, %v1944
    %v1946 = vadd.f32 %v1942, %v1945
    %vm1947 = vweird.f32 %v1941
    %vm1948 = vweird.f32 %v1942
    %vm1949 = vmor %vm1947, %vm1948
    %v1950 = vsel %vm1949, %v1942, %v1946
    %v1951 = vand.u32 2147483647, %v1941
    %vm1952 = vcmp.eq.f32.partialorder %v1951, 8.507059e+37
    %v1953 = vand.u32 %v1941, 2147483648
    %v1954 = vor.u32 1.1754944e-38, %v1953
    %v1955 = vsel %vm1952, %v1954, %v1950
    %v1956 = vmul.f32 1.0, %v1955
    %v1957 = vxor.u32 %v1883, 2147483648
    %v1958 = vmul.f32 %v1957, 1.442695
    %v1959 = vpow.pop %v1958
    %v1960 = vadd.f32 %v1959, 1.0
    %v1961 = vrcp.pop %v1960
    %v1962 = vmul.f32 %v1960, %v1961
    %v1963 = vsub.f32 1.0, %v1962
    %v1964 = vmul.f32 %v1961, %v1963
    %v1965 = vadd.f32 %v1961, %v1964
    %vm1966 = vweird.f32 %v1960
    %vm1967 = vweird.f32 %v1961
    %vm1968 = vmor %vm1966, %vm1967
    %v1969 = vsel %vm1968, %v1961, %v1965
    %v1970 = vand.u32 2147483647, %v1960
    %vm1971 = vcmp.eq.f32.partialorder %v1970, 8.507059e+37
    %v1972 = vand.u32 %v1960, 2147483648
    %v1973 = vor.u32 1.1754944e-38, %v1972
    %v1974 = vsel %vm1971, %v1973, %v1969
    %v1975 = vmul.f32 1.0, %v1974
    %v1976 = vtanh.pop %v1909
    %v1977 = vxor.u32 %v1935, 2147483648
    %v1978 = vmul.f32 %v1977, 1.442695
    %v1979 = vpow.pop %v1978
    %v1980 = vadd.f32 %v1979, 1.0
    %v1981 = vrcp.pop %v1980
    %v1982 = vmul.f32 %v1980, %v1981
    %v1983 = vsub.f32 1.0, %v1982
    %v1984 = vmul.f32 %v1981, %v1983
    %v1985 = vadd.f32 %v1981, %v1984
    %vm1986 = vweird.f32 %v1980
    %vm1987 = vweird.f32 %v1981
    %vm1988 = vmor %vm1986, %vm1987
    %v1989 = vsel %vm1988, %v1981, %v1985
    %v1990 = vand.u32 2147483647, %v1980
    %vm1991 = vcmp.eq.f32.partialorder %v1990, 8.507059e+37
    %v1992 = vand.u32 %v1980, 2147483648
    %v1993 = vor.u32 1.1754944e-38, %v1992
    %v1994 = vsel %vm1991, %v1993, %v1989
    %v1995 = vmul.f32 1.0, %v1994
    %v1996 = vmul.f32 %v1975, %v1710
    %v1997 = vmul.f32 %v1956, %v1976
    %v1998 = vadd.f32 %v1996, %v1997
    %v1999 = vtanh.pop %v1998
    %v2000 = vmul.f32 %v1995, %v1999
    %2001 = vmatpush.bf16.msra.mxu0 %v493
    %2002 = vmatpush.bf16.msra.mxu0 %v489
    %2003 = vmatpush.bf16.msra.mxu0 %v485
    %2004 = vmatpush.bf16.msra.mxu0 %v481
    %2005 = vmatpush.bf16.msra.mxu0 %v477
    %2006 = vmatpush.bf16.msra.mxu0 %v473
    %2007 = vmatpush.bf16.msra.mxu0 %v469
    %2008 = vmatpush.bf16.msra.mxu0 %v465
    %2009 = vmatmul.bf16.gmra.mxu0 %v1832
    %v2010 = vpop.f32.mrf.mxu0
    %v2011 = vadd.f32 0.0, %v2010
    %v2012 = vpop.f32.mrf.mxu0
    %2013 = vdwg.mxu0
    %2014 = vmatpush.bf16.msra.mxu0 %v494
    %2015 = vmatpush.bf16.msra.mxu0 %v490
    %2016 = vmatpush.bf16.msra.mxu0 %v486
    %2017 = vmatpush.bf16.msra.mxu0 %v482
    %2018 = vmatpush.bf16.msra.mxu0 %v478
    %2019 = vmatpush.bf16.msra.mxu0 %v474
    %2020 = vmatpush.bf16.msra.mxu0 %v470
    %2021 = vmatpush.bf16.msra.mxu0 %v466
    %2022 = vmatmul.bf16.gmra.mxu0 %v1832
    %v2023 = vpop.f32.mrf.mxu0
    %v2024 = vadd.f32 0.0, %v2023
    %v2025 = vpop.f32.mrf.mxu0
    %2026 = vdwg.mxu0
    %2027 = vmatpush.bf16.msra.mxu0 %v495
    %2028 = vmatpush.bf16.msra.mxu0 %v491
    %2029 = vmatpush.bf16.msra.mxu0 %v487
    %2030 = vmatpush.bf16.msra.mxu0 %v483
    %2031 = vmatpush.bf16.msra.mxu0 %v479
    %2032 = vmatpush.bf16.msra.mxu0 %v475
    %2033 = vmatpush.bf16.msra.mxu0 %v471
    %2034 = vmatpush.bf16.msra.mxu0 %v467
    %2035 = vmatmul.bf16.gmra.mxu0 %v1832
    %v2036 = vpop.f32.mrf.mxu0
    %v2037 = vadd.f32 0.0, %v2036
    %v2038 = vpop.f32.mrf.mxu0
    %2039 = vdwg.mxu0
    %2040 = vmatpush.bf16.msra.mxu0 %v496
    %2041 = vmatpush.bf16.msra.mxu0 %v492
    %2042 = vmatpush.bf16.msra.mxu0 %v488
    %2043 = vmatpush.bf16.msra.mxu0 %v484
    %2044 = vmatpush.bf16.msra.mxu0 %v480
    %2045 = vmatpush.bf16.msra.mxu0 %v476
    %2046 = vmatpush.bf16.msra.mxu0 %v472
    %2047 = vmatpush.bf16.msra.mxu0 %v468
    %2048 = vmatmul.bf16.gmra.mxu0 %v1832
    %v2049 = vpop.f32.mrf.mxu0
    %v2050 = vadd.f32 0.0, %v2049
    %v2051 = vpop.f32.mrf.mxu0
    %2052 = vdwg.mxu0
    %v2053 = vadd.f32 %v167, %v2011
    %v2054 = vadd.f32 %v196, %v2024
    %v2055 = vadd.f32 %v225, %v2037
    %v2056 = vadd.f32 %v254, %v2050
    %v2057 = vxor.u32 %v2053, 2147483648
    %v2058 = vmul.f32 %v2057, 1.442695
    %v2059 = vpow.pop %v2058
    %v2060 = vadd.f32 %v2059, 1.0
    %v2061 = vrcp.pop %v2060
    %v2062 = vmul.f32 %v2060, %v2061
    %v2063 = vsub.f32 1.0, %v2062
    %v2064 = vmul.f32 %v2061, %v2063
    %v2065 = vadd.f32 %v2061, %v2064
    %vm2066 = vweird.f32 %v2060
    %vm2067 = vweird.f32 %v2061
    %vm2068 = vmor %vm2066, %vm2067
    %v2069 = vsel %vm2068, %v2061, %v2065
    %v2070 = vand.u32 2147483647, %v2060
    %vm2071 = vcmp.eq.f32.partialorder %v2070, 8.507059e+37
    %v2072 = vand.u32 %v2060, 2147483648
    %v2073 = vor.u32 1.1754944e-38, %v2072
    %v2074 = vsel %vm2071, %v2073, %v2069
    %v2075 = vmul.f32 1.0, %v2074
    %v2076 = vxor.u32 %v2054, 2147483648
    %v2077 = vmul.f32 %v2076, 1.442695
    %v2078 = vpow.pop %v2077
    %v2079 = vadd.f32 %v2078, 1.0
    %v2080 = vrcp.pop %v2079
    %v2081 = vmul.f32 %v2079, %v2080
    %v2082 = vsub.f32 1.0, %v2081
    %v2083 = vmul.f32 %v2080, %v2082
    %v2084 = vadd.f32 %v2080, %v2083
    %vm2085 = vweird.f32 %v2079
    %vm2086 = vweird.f32 %v2080
    %vm2087 = vmor %vm2085, %vm2086
    %v2088 = vsel %vm2087, %v2080, %v2084
    %v2089 = vand.u32 2147483647, %v2079
    %vm2090 = vcmp.eq.f32.partialorder %v2089, 8.507059e+37
    %v2091 = vand.u32 %v2079, 2147483648
    %v2092 = vor.u32 1.1754944e-38, %v2091
    %v2093 = vsel %vm2090, %v2092, %v2088
    %v2094 = vmul.f32 1.0, %v2093
    %v2095 = vtanh.pop %v2055
    %v2096 = vxor.u32 %v2056, 2147483648
    %v2097 = vmul.f32 %v2096, 1.442695
    %v2098 = vpow.pop %v2097
    %v2099 = vadd.f32 %v2098, 1.0
    %v2100 = vrcp.pop %v2099
    %v2101 = vmul.f32 %v2099, %v2100
    %v2102 = vsub.f32 1.0, %v2101
    %v2103 = vmul.f32 %v2100, %v2102
    %v2104 = vadd.f32 %v2100, %v2103
    %vm2105 = vweird.f32 %v2099
    %vm2106 = vweird.f32 %v2100
    %vm2107 = vmor %vm2105, %vm2106
    %v2108 = vsel %vm2107, %v2100, %v2104
    %v2109 = vand.u32 2147483647, %v2099
    %vm2110 = vcmp.eq.f32.partialorder %v2109, 8.507059e+37
    %v2111 = vand.u32 %v2099, 2147483648
    %v2112 = vor.u32 1.1754944e-38, %v2111
    %v2113 = vsel %vm2110, %v2112, %v2108
    %v2114 = vmul.f32 1.0, %v2113
    %v2115 = vmul.f32 %v2094, %v1829
    %v2116 = vmul.f32 %v2075, %v2095
    %v2117 = vadd.f32 %v2115, %v2116
    %v2118 = vtanh.pop %v2117
    %v2119 = vmul.f32 %v2114, %v2118
    %v2120 = vpack.c.bf16 %v2119, %v2119
    %v2121 = vpack.c.bf16 %v2000, %v2000
    %2122 = vmatpush.bf16.msra.mxu0 %v870
    %2123 = vmatpush.bf16.msra.mxu0 %v866
    %2124 = vmatpush.bf16.msra.mxu0 %v862
    %2125 = vmatpush.bf16.msra.mxu0 %v858
    %2126 = vmatpush.bf16.msra.mxu0 %v854
    %2127 = vmatpush.bf16.msra.mxu0 %v850
    %2128 = vmatpush.bf16.msra.mxu0 %v846
    %2129 = vmatpush.bf16.msra.mxu0 %v842
    %2130 = vmatmul.bf16.gmra.mxu0 %v2120
    %v2131 = vpop.f32.mrf.mxu0
    %v2132 = vadd.f32 %v361, %v2131
    %v2133 = vpop.f32.mrf.mxu0
    %2134 = vdwg.mxu0
    %2135 = vmatpush.bf16.msra.mxu0 %v902
    %2136 = vmatpush.bf16.msra.mxu0 %v898
    %2137 = vmatpush.bf16.msra.mxu0 %v894
    %2138 = vmatpush.bf16.msra.mxu0 %v890
    %2139 = vmatpush.bf16.msra.mxu0 %v886
    %2140 = vmatpush.bf16.msra.mxu0 %v882
    %2141 = vmatpush.bf16.msra.mxu0 %v878
    %2142 = vmatpush.bf16.msra.mxu0 %v874
    %2143 = vmatmul.bf16.gmra.mxu0 %v2121
    %v2144 = vpop.f32.mrf.mxu0
    %v2145 = vadd.f32 %v2132, %v2144
    %v2146 = vpop.f32.mrf.mxu0
    %2147 = vdwg.mxu0
    %2148 = vmatpush.bf16.msra.mxu0 %v871
    %2149 = vmatpush.bf16.msra.mxu0 %v867
    %2150 = vmatpush.bf16.msra.mxu0 %v863
    %2151 = vmatpush.bf16.msra.mxu0 %v859
    %2152 = vmatpush.bf16.msra.mxu0 %v855
    %2153 = vmatpush.bf16.msra.mxu0 %v851
    %2154 = vmatpush.bf16.msra.mxu0 %v847
    %2155 = vmatpush.bf16.msra.mxu0 %v843
    %2156 = vmatmul.bf16.gmra.mxu0 %v2120
    %v2157 = vpop.f32.mrf.mxu0
    %v2158 = vadd.f32 %v362, %v2157
    %v2159 = vpop.f32.mrf.mxu0
    %2160 = vdwg.mxu0
    %2161 = vmatpush.bf16.msra.mxu0 %v903
    %2162 = vmatpush.bf16.msra.mxu0 %v899
    %2163 = vmatpush.bf16.msra.mxu0 %v895
    %2164 = vmatpush.bf16.msra.mxu0 %v891
    %2165 = vmatpush.bf16.msra.mxu0 %v887
    %2166 = vmatpush.bf16.msra.mxu0 %v883
    %2167 = vmatpush.bf16.msra.mxu0 %v879
    %2168 = vmatpush.bf16.msra.mxu0 %v875
    %2169 = vmatmul.bf16.gmra.mxu0 %v2121
    %v2170 = vpop.f32.mrf.mxu0
    %v2171 = vadd.f32 %v2158, %v2170
    %v2172 = vpop.f32.mrf.mxu0
    %2173 = vdwg.mxu0
    %2174 = vmatpush.bf16.msra.mxu0 %v872
    %2175 = vmatpush.bf16.msra.mxu0 %v868
    %2176 = vmatpush.bf16.msra.mxu0 %v864
    %2177 = vmatpush.bf16.msra.mxu0 %v860
    %2178 = vmatpush.bf16.msra.mxu0 %v856
    %2179 = vmatpush.bf16.msra.mxu0 %v852
    %2180 = vmatpush.bf16.msra.mxu0 %v848
    %2181 = vmatpush.bf16.msra.mxu0 %v844
    %2182 = vmatmul.bf16.gmra.mxu0 %v2120
    %v2183 = vpop.f32.mrf.mxu0
    %v2184 = vadd.f32 %v363, %v2183
    %v2185 = vpop.f32.mrf.mxu0
    %2186 = vdwg.mxu0
    %2187 = vmatpush.bf16.msra.mxu0 %v904
    %2188 = vmatpush.bf16.msra.mxu0 %v900
    %2189 = vmatpush.bf16.msra.mxu0 %v896
    %2190 = vmatpush.bf16.msra.mxu0 %v892
    %2191 = vmatpush.bf16.msra.mxu0 %v888
    %2192 = vmatpush.bf16.msra.mxu0 %v884
    %2193 = vmatpush.bf16.msra.mxu0 %v880
    %2194 = vmatpush.bf16.msra.mxu0 %v876
    %2195 = vmatmul.bf16.gmra.mxu0 %v2121
    %v2196 = vpop.f32.mrf.mxu0
    %v2197 = vadd.f32 %v2184, %v2196
    %v2198 = vpop.f32.mrf.mxu0
    %2199 = vdwg.mxu0
    %2200 = vmatpush.bf16.msra.mxu0 %v873
    %2201 = vmatpush.bf16.msra.mxu0 %v869
    %2202 = vmatpush.bf16.msra.mxu0 %v865
    %2203 = vmatpush.bf16.msra.mxu0 %v861
    %2204 = vmatpush.bf16.msra.mxu0 %v857
    %2205 = vmatpush.bf16.msra.mxu0 %v853
    %2206 = vmatpush.bf16.msra.mxu0 %v849
    %2207 = vmatpush.bf16.msra.mxu0 %v845
    %2208 = vmatmul.bf16.gmra.mxu0 %v2120
    %v2209 = vpop.f32.mrf.mxu0
    %v2210 = vadd.f32 %v364, %v2209
    %v2211 = vpop.f32.mrf.mxu0
    %2212 = vdwg.mxu0
    %2213 = vmatpush.bf16.msra.mxu0 %v905
    %2214 = vmatpush.bf16.msra.mxu0 %v901
    %2215 = vmatpush.bf16.msra.mxu0 %v897
    %2216 = vmatpush.bf16.msra.mxu0 %v893
    %2217 = vmatpush.bf16.msra.mxu0 %v889
    %2218 = vmatpush.bf16.msra.mxu0 %v885
    %2219 = vmatpush.bf16.msra.mxu0 %v881
    %2220 = vmatpush.bf16.msra.mxu0 %v877
    %2221 = vmatmul.bf16.gmra.mxu0 %v2121
    %v2222 = vpop.f32.mrf.mxu0
    %v2223 = vadd.f32 %v2210, %v2222
    %v2224 = vpop.f32.mrf.mxu0
    %2225 = vdwg.mxu0
    %v2226 = vxor.u32 %v2145, 2147483648
    %v2227 = vmul.f32 %v2226, 1.442695
    %v2228 = vpow.pop %v2227
    %v2229 = vadd.f32 %v2228, 1.0
    %v2230 = vrcp.pop %v2229
    %v2231 = vmul.f32 %v2229, %v2230
    %v2232 = vsub.f32 1.0, %v2231
    %v2233 = vmul.f32 %v2230, %v2232
    %v2234 = vadd.f32 %v2230, %v2233
    %vm2235 = vweird.f32 %v2229
    %vm2236 = vweird.f32 %v2230
    %vm2237 = vmor %vm2235, %vm2236
    %v2238 = vsel %vm2237, %v2230, %v2234
    %v2239 = vand.u32 2147483647, %v2229
    %vm2240 = vcmp.eq.f32.partialorder %v2239, 8.507059e+37
    %v2241 = vand.u32 %v2229, 2147483648
    %v2242 = vor.u32 1.1754944e-38, %v2241
    %v2243 = vsel %vm2240, %v2242, %v2238
    %v2244 = vmul.f32 1.0, %v2243
    %v2245 = vxor.u32 %v2171, 2147483648
    %v2246 = vmul.f32 %v2245, 1.442695
    %v2247 = vpow.pop %v2246
    %v2248 = vadd.f32 %v2247, 1.0
    %v2249 = vrcp.pop %v2248
    %v2250 = vmul.f32 %v2248, %v2249
    %v2251 = vsub.f32 1.0, %v2250
    %v2252 = vmul.f32 %v2249, %v2251
    %v2253 = vadd.f32 %v2249, %v2252
    %vm2254 = vweird.f32 %v2248
    %vm2255 = vweird.f32 %v2249
    %vm2256 = vmor %vm2254, %vm2255
    %v2257 = vsel %vm2256, %v2249, %v2253
    %v2258 = vand.u32 2147483647, %v2248
    %vm2259 = vcmp.eq.f32.partialorder %v2258, 8.507059e+37
    %v2260 = vand.u32 %v2248, 2147483648
    %v2261 = vor.u32 1.1754944e-38, %v2260
    %v2262 = vsel %vm2259, %v2261, %v2257
    %v2263 = vmul.f32 1.0, %v2262
    %v2264 = vtanh.pop %v2197
    %v2265 = vxor.u32 %v2223, 2147483648
    %v2266 = vmul.f32 %v2265, 1.442695
    %v2267 = vpow.pop %v2266
    %v2268 = vadd.f32 %v2267, 1.0
    %v2269 = vrcp.pop %v2268
    %v2270 = vmul.f32 %v2268, %v2269
    %v2271 = vsub.f32 1.0, %v2270
    %v2272 = vmul.f32 %v2269, %v2271
    %v2273 = vadd.f32 %v2269, %v2272
    %vm2274 = vweird.f32 %v2268
    %vm2275 = vweird.f32 %v2269
    %vm2276 = vmor %vm2274, %vm2275
    %v2277 = vsel %vm2276, %v2269, %v2273
    %v2278 = vand.u32 2147483647, %v2268
    %vm2279 = vcmp.eq.f32.partialorder %v2278, 8.507059e+37
    %v2280 = vand.u32 %v2268, 2147483648
    %v2281 = vor.u32 1.1754944e-38, %v2280
    %v2282 = vsel %vm2279, %v2281, %v2277
    %v2283 = vmul.f32 1.0, %v2282
    %v2284 = vmul.f32 %v2263, %v1998
    %v2285 = vmul.f32 %v2244, %v2264
    %v2286 = vadd.f32 %v2284, %v2285
    %v2287 = vtanh.pop %v2286
    %v2288 = vmul.f32 %v2283, %v2287
    %2289 = vmatpush.bf16.msra.mxu0 %v493
    %2290 = vmatpush.bf16.msra.mxu0 %v489
    %2291 = vmatpush.bf16.msra.mxu0 %v485
    %2292 = vmatpush.bf16.msra.mxu0 %v481
    %2293 = vmatpush.bf16.msra.mxu0 %v477
    %2294 = vmatpush.bf16.msra.mxu0 %v473
    %2295 = vmatpush.bf16.msra.mxu0 %v469
    %2296 = vmatpush.bf16.msra.mxu0 %v465
    %2297 = vmatmul.bf16.gmra.mxu0 %v2120
    %v2298 = vpop.f32.mrf.mxu0
    %v2299 = vadd.f32 0.0, %v2298
    %v2300 = vpop.f32.mrf.mxu0
    %2301 = vdwg.mxu0
    %2302 = vmatpush.bf16.msra.mxu0 %v494
    %2303 = vmatpush.bf16.msra.mxu0 %v490
    %2304 = vmatpush.bf16.msra.mxu0 %v486
    %2305 = vmatpush.bf16.msra.mxu0 %v482
    %2306 = vmatpush.bf16.msra.mxu0 %v478
    %2307 = vmatpush.bf16.msra.mxu0 %v474
    %2308 = vmatpush.bf16.msra.mxu0 %v470
    %2309 = vmatpush.bf16.msra.mxu0 %v466
    %2310 = vmatmul.bf16.gmra.mxu0 %v2120
    %v2311 = vpop.f32.mrf.mxu0
    %v2312 = vadd.f32 0.0, %v2311
    %v2313 = vpop.f32.mrf.mxu0
    %2314 = vdwg.mxu0
    %2315 = vmatpush.bf16.msra.mxu0 %v495
    %2316 = vmatpush.bf16.msra.mxu0 %v491
    %2317 = vmatpush.bf16.msra.mxu0 %v487
    %2318 = vmatpush.bf16.msra.mxu0 %v483
    %2319 = vmatpush.bf16.msra.mxu0 %v479
    %2320 = vmatpush.bf16.msra.mxu0 %v475
    %2321 = vmatpush.bf16.msra.mxu0 %v471
    %2322 = vmatpush.bf16.msra.mxu0 %v467
    %2323 = vmatmul.bf16.gmra.mxu0 %v2120
    %v2324 = vpop.f32.mrf.mxu0
    %v2325 = vadd.f32 0.0, %v2324
    %v2326 = vpop.f32.mrf.mxu0
    %2327 = vdwg.mxu0
    %2328 = vmatpush.bf16.msra.mxu0 %v496
    %2329 = vmatpush.bf16.msra.mxu0 %v492
    %2330 = vmatpush.bf16.msra.mxu0 %v488
    %2331 = vmatpush.bf16.msra.mxu0 %v484
    %2332 = vmatpush.bf16.msra.mxu0 %v480
    %2333 = vmatpush.bf16.msra.mxu0 %v476
    %2334 = vmatpush.bf16.msra.mxu0 %v472
    %2335 = vmatpush.bf16.msra.mxu0 %v468
    %2336 = vmatmul.bf16.gmra.mxu0 %v2120
    %v2337 = vpop.f32.mrf.mxu0
    %v2338 = vadd.f32 0.0, %v2337
    %v2339 = vpop.f32.mrf.mxu0
    %2340 = vdwg.mxu0
    %v2341 = vadd.f32 %v169, %v2299
    %v2342 = vadd.f32 %v198, %v2312
    %v2343 = vadd.f32 %v227, %v2325
    %v2344 = vadd.f32 %v256, %v2338
    %v2345 = vxor.u32 %v2341, 2147483648
    %v2346 = vmul.f32 %v2345, 1.442695
    %v2347 = vpow.pop %v2346
    %v2348 = vadd.f32 %v2347, 1.0
    %v2349 = vrcp.pop %v2348
    %v2350 = vmul.f32 %v2348, %v2349
    %v2351 = vsub.f32 1.0, %v2350
    %v2352 = vmul.f32 %v2349, %v2351
    %v2353 = vadd.f32 %v2349, %v2352
    %vm2354 = vweird.f32 %v2348
    %vm2355 = vweird.f32 %v2349
    %vm2356 = vmor %vm2354, %vm2355
    %v2357 = vsel %vm2356, %v2349, %v2353
    %v2358 = vand.u32 2147483647, %v2348
    %vm2359 = vcmp.eq.f32.partialorder %v2358, 8.507059e+37
    %v2360 = vand.u32 %v2348, 2147483648
    %v2361 = vor.u32 1.1754944e-38, %v2360
    %v2362 = vsel %vm2359, %v2361, %v2357
    %v2363 = vmul.f32 1.0, %v2362
    %v2364 = vxor.u32 %v2342, 2147483648
    %v2365 = vmul.f32 %v2364, 1.442695
    %v2366 = vpow.pop %v2365
    %v2367 = vadd.f32 %v2366, 1.0
    %v2368 = vrcp.pop %v2367
    %v2369 = vmul.f32 %v2367, %v2368
    %v2370 = vsub.f32 1.0, %v2369
    %v2371 = vmul.f32 %v2368, %v2370
    %v2372 = vadd.f32 %v2368, %v2371
    %vm2373 = vweird.f32 %v2367
    %vm2374 = vweird.f32 %v2368
    %vm2375 = vmor %vm2373, %vm2374
    %v2376 = vsel %vm2375, %v2368, %v2372
    %v2377 = vand.u32 2147483647, %v2367
    %vm2378 = vcmp.eq.f32.partialorder %v2377, 8.507059e+37
    %v2379 = vand.u32 %v2367, 2147483648
    %v2380 = vor.u32 1.1754944e-38, %v2379
    %v2381 = vsel %vm2378, %v2380, %v2376
    %v2382 = vmul.f32 1.0, %v2381
    %v2383 = vtanh.pop %v2343
    %v2384 = vxor.u32 %v2344, 2147483648
    %v2385 = vmul.f32 %v2384, 1.442695
    %v2386 = vpow.pop %v2385
    %v2387 = vadd.f32 %v2386, 1.0
    %v2388 = vrcp.pop %v2387
    %v2389 = vmul.f32 %v2387, %v2388
    %v2390 = vsub.f32 1.0, %v2389
    %v2391 = vmul.f32 %v2388, %v2390
    %v2392 = vadd.f32 %v2388, %v2391
    %vm2393 = vweird.f32 %v2387
    %vm2394 = vweird.f32 %v2388
    %vm2395 = vmor %vm2393, %vm2394
    %v2396 = vsel %vm2395, %v2388, %v2392
    %v2397 = vand.u32 2147483647, %v2387
    %vm2398 = vcmp.eq.f32.partialorder %v2397, 8.507059e+37
    %v2399 = vand.u32 %v2387, 2147483648
    %v2400 = vor.u32 1.1754944e-38, %v2399
    %v2401 = vsel %vm2398, %v2400, %v2396
    %v2402 = vmul.f32 1.0, %v2401
    %v2403 = vmul.f32 %v2382, %v2117
    %v2404 = vmul.f32 %v2363, %v2383
    %v2405 = vadd.f32 %v2403, %v2404
    %v2406 = vtanh.pop %v2405
    %v2407 = vmul.f32 %v2402, %v2406
    %v2408 = vpack.c.bf16 %v2407, %v2407
    %v2409 = vpack.c.bf16 %v2288, %v2288
    %2410 = vmatpush.bf16.msra.mxu0 %v870
    %2411 = vmatpush.bf16.msra.mxu0 %v866
    %2412 = vmatpush.bf16.msra.mxu0 %v862
    %2413 = vmatpush.bf16.msra.mxu0 %v858
    %2414 = vmatpush.bf16.msra.mxu0 %v854
    %2415 = vmatpush.bf16.msra.mxu0 %v850
    %2416 = vmatpush.bf16.msra.mxu0 %v846
    %2417 = vmatpush.bf16.msra.mxu0 %v842
    %2418 = vmatmul.bf16.gmra.mxu0 %v2408
    %v2419 = vpop.f32.mrf.mxu0
    %v2420 = vadd.f32 %v361, %v2419
    %v2421 = vpop.f32.mrf.mxu0
    %2422 = vdwg.mxu0
    %2423 = vmatpush.bf16.msra.mxu0 %v902
    %2424 = vmatpush.bf16.msra.mxu0 %v898
    %2425 = vmatpush.bf16.msra.mxu0 %v894
    %2426 = vmatpush.bf16.msra.mxu0 %v890
    %2427 = vmatpush.bf16.msra.mxu0 %v886
    %2428 = vmatpush.bf16.msra.mxu0 %v882
    %2429 = vmatpush.bf16.msra.mxu0 %v878
    %2430 = vmatpush.bf16.msra.mxu0 %v874
    %2431 = vmatmul.bf16.gmra.mxu0 %v2409
    %v2432 = vpop.f32.mrf.mxu0
    %v2433 = vadd.f32 %v2420, %v2432
    %v2434 = vpop.f32.mrf.mxu0
    %2435 = vdwg.mxu0
    %2436 = vmatpush.bf16.msra.mxu0 %v871
    %2437 = vmatpush.bf16.msra.mxu0 %v867
    %2438 = vmatpush.bf16.msra.mxu0 %v863
    %2439 = vmatpush.bf16.msra.mxu0 %v859
    %2440 = vmatpush.bf16.msra.mxu0 %v855
    %2441 = vmatpush.bf16.msra.mxu0 %v851
    %2442 = vmatpush.bf16.msra.mxu0 %v847
    %2443 = vmatpush.bf16.msra.mxu0 %v843
    %2444 = vmatmul.bf16.gmra.mxu0 %v2408
    %v2445 = vpop.f32.mrf.mxu0
    %v2446 = vadd.f32 %v362, %v2445
    %v2447 = vpop.f32.mrf.mxu0
    %2448 = vdwg.mxu0
    %2449 = vmatpush.bf16.msra.mxu0 %v903
    %2450 = vmatpush.bf16.msra.mxu0 %v899
    %2451 = vmatpush.bf16.msra.mxu0 %v895
    %2452 = vmatpush.bf16.msra.mxu0 %v891
    %2453 = vmatpush.bf16.msra.mxu0 %v887
    %2454 = vmatpush.bf16.msra.mxu0 %v883
    %2455 = vmatpush.bf16.msra.mxu0 %v879
    %2456 = vmatpush.bf16.msra.mxu0 %v875
    %2457 = vmatmul.bf16.gmra.mxu0 %v2409
    %v2458 = vpop.f32.mrf.mxu0
    %v2459 = vadd.f32 %v2446, %v2458
    %v2460 = vpop.f32.mrf.mxu0
    %2461 = vdwg.mxu0
    %2462 = vmatpush.bf16.msra.mxu0 %v872
    %2463 = vmatpush.bf16.msra.mxu0 %v868
    %2464 = vmatpush.bf16.msra.mxu0 %v864
    %2465 = vmatpush.bf16.msra.mxu0 %v860
    %2466 = vmatpush.bf16.msra.mxu0 %v856
    %2467 = vmatpush.bf16.msra.mxu0 %v852
    %2468 = vmatpush.bf16.msra.mxu0 %v848
    %2469 = vmatpush.bf16.msra.mxu0 %v844
    %2470 = vmatmul.bf16.gmra.mxu0 %v2408
    %v2471 = vpop.f32.mrf.mxu0
    %v2472 = vadd.f32 %v363, %v2471
    %v2473 = vpop.f32.mrf.mxu0
    %2474 = vdwg.mxu0
    %2475 = vmatpush.bf16.msra.mxu0 %v904
    %2476 = vmatpush.bf16.msra.mxu0 %v900
    %2477 = vmatpush.bf16.msra.mxu0 %v896
    %2478 = vmatpush.bf16.msra.mxu0 %v892
    %2479 = vmatpush.bf16.msra.mxu0 %v888
    %2480 = vmatpush.bf16.msra.mxu0 %v884
    %2481 = vmatpush.bf16.msra.mxu0 %v880
    %2482 = vmatpush.bf16.msra.mxu0 %v876
    %2483 = vmatmul.bf16.gmra.mxu0 %v2409
    %v2484 = vpop.f32.mrf.mxu0
    %v2485 = vadd.f32 %v2472, %v2484
    %v2486 = vpop.f32.mrf.mxu0
    %2487 = vdwg.mxu0
    %2488 = vmatpush.bf16.msra.mxu0 %v873
    %2489 = vmatpush.bf16.msra.mxu0 %v869
    %2490 = vmatpush.bf16.msra.mxu0 %v865
    %2491 = vmatpush.bf16.msra.mxu0 %v861
    %2492 = vmatpush.bf16.msra.mxu0 %v857
    %2493 = vmatpush.bf16.msra.mxu0 %v853
    %2494 = vmatpush.bf16.msra.mxu0 %v849
    %2495 = vmatpush.bf16.msra.mxu0 %v845
    %2496 = vmatmul.bf16.gmra.mxu0 %v2408
    %v2497 = vpop.f32.mrf.mxu0
    %v2498 = vadd.f32 %v364, %v2497
    %v2499 = vpop.f32.mrf.mxu0
    %2500 = vdwg.mxu0
    %2501 = vmatpush.bf16.msra.mxu0 %v905
    %2502 = vmatpush.bf16.msra.mxu0 %v901
    %2503 = vmatpush.bf16.msra.mxu0 %v897
    %2504 = vmatpush.bf16.msra.mxu0 %v893
    %2505 = vmatpush.bf16.msra.mxu0 %v889
    %2506 = vmatpush.bf16.msra.mxu0 %v885
    %2507 = vmatpush.bf16.msra.mxu0 %v881
    %2508 = vmatpush.bf16.msra.mxu0 %v877
    %2509 = vmatmul.bf16.gmra.mxu0 %v2409
    %v2510 = vpop.f32.mrf.mxu0
    %v2511 = vadd.f32 %v2498, %v2510
    %v2512 = vpop.f32.mrf.mxu0
    %2513 = vdwg.mxu0
    %v2514 = vxor.u32 %v2433, 2147483648
    %v2515 = vmul.f32 %v2514, 1.442695
    %v2516 = vpow.pop %v2515
    %v2517 = vadd.f32 %v2516, 1.0
    %v2518 = vrcp.pop %v2517
    %v2519 = vmul.f32 %v2517, %v2518
    %v2520 = vsub.f32 1.0, %v2519
    %v2521 = vmul.f32 %v2518, %v2520
    %v2522 = vadd.f32 %v2518, %v2521
    %vm2523 = vweird.f32 %v2517
    %vm2524 = vweird.f32 %v2518
    %vm2525 = vmor %vm2523, %vm2524
    %v2526 = vsel %vm2525, %v2518, %v2522
    %v2527 = vand.u32 2147483647, %v2517
    %vm2528 = vcmp.eq.f32.partialorder %v2527, 8.507059e+37
    %v2529 = vand.u32 %v2517, 2147483648
    %v2530 = vor.u32 1.1754944e-38, %v2529
    %v2531 = vsel %vm2528, %v2530, %v2526
    %v2532 = vmul.f32 1.0, %v2531
    %v2533 = vxor.u32 %v2459, 2147483648
    %v2534 = vmul.f32 %v2533, 1.442695
    %v2535 = vpow.pop %v2534
    %v2536 = vadd.f32 %v2535, 1.0
    %v2537 = vrcp.pop %v2536
    %v2538 = vmul.f32 %v2536, %v2537
    %v2539 = vsub.f32 1.0, %v2538
    %v2540 = vmul.f32 %v2537, %v2539
    %v2541 = vadd.f32 %v2537, %v2540
    %vm2542 = vweird.f32 %v2536
    %vm2543 = vweird.f32 %v2537
    %vm2544 = vmor %vm2542, %vm2543
    %v2545 = vsel %vm2544, %v2537, %v2541
    %v2546 = vand.u32 2147483647, %v2536
    %vm2547 = vcmp.eq.f32.partialorder %v2546, 8.507059e+37
    %v2548 = vand.u32 %v2536, 2147483648
    %v2549 = vor.u32 1.1754944e-38, %v2548
    %v2550 = vsel %vm2547, %v2549, %v2545
    %v2551 = vmul.f32 1.0, %v2550
    %v2552 = vtanh.pop %v2485
    %v2553 = vxor.u32 %v2511, 2147483648
    %v2554 = vmul.f32 %v2553, 1.442695
    %v2555 = vpow.pop %v2554
    %v2556 = vadd.f32 %v2555, 1.0
    %v2557 = vrcp.pop %v2556
    %v2558 = vmul.f32 %v2556, %v2557
    %v2559 = vsub.f32 1.0, %v2558
    %v2560 = vmul.f32 %v2557, %v2559
    %v2561 = vadd.f32 %v2557, %v2560
    %vm2562 = vweird.f32 %v2556
    %vm2563 = vweird.f32 %v2557
    %vm2564 = vmor %vm2562, %vm2563
    %v2565 = vsel %vm2564, %v2557, %v2561
    %v2566 = vand.u32 2147483647, %v2556
    %vm2567 = vcmp.eq.f32.partialorder %v2566, 8.507059e+37
    %v2568 = vand.u32 %v2556, 2147483648
    %v2569 = vor.u32 1.1754944e-38, %v2568
    %v2570 = vsel %vm2567, %v2569, %v2565
    %v2571 = vmul.f32 1.0, %v2570
    %v2572 = vmul.f32 %v2551, %v2286
    %v2573 = vmul.f32 %v2532, %v2552
    %v2574 = vadd.f32 %v2572, %v2573
    %v2575 = vtanh.pop %v2574
    %v2576 = vmul.f32 %v2571, %v2575
    %2577 = vmatpush.bf16.msra.mxu0 %v493
    %2578 = vmatpush.bf16.msra.mxu0 %v489
    %2579 = vmatpush.bf16.msra.mxu0 %v485
    %2580 = vmatpush.bf16.msra.mxu0 %v481
    %2581 = vmatpush.bf16.msra.mxu0 %v477
    %2582 = vmatpush.bf16.msra.mxu0 %v473
    %2583 = vmatpush.bf16.msra.mxu0 %v469
    %2584 = vmatpush.bf16.msra.mxu0 %v465
    %2585 = vmatmul.bf16.gmra.mxu0 %v2408
    %v2586 = vpop.f32.mrf.mxu0
    %v2587 = vadd.f32 0.0, %v2586
    %v2588 = vpop.f32.mrf.mxu0
    %2589 = vdwg.mxu0
    %2590 = vmatpush.bf16.msra.mxu0 %v494
    %2591 = vmatpush.bf16.msra.mxu0 %v490
    %2592 = vmatpush.bf16.msra.mxu0 %v486
    %2593 = vmatpush.bf16.msra.mxu0 %v482
    %2594 = vmatpush.bf16.msra.mxu0 %v478
    %2595 = vmatpush.bf16.msra.mxu0 %v474
    %2596 = vmatpush.bf16.msra.mxu0 %v470
    %2597 = vmatpush.bf16.msra.mxu0 %v466
    %2598 = vmatmul.bf16.gmra.mxu0 %v2408
    %v2599 = vpop.f32.mrf.mxu0
    %v2600 = vadd.f32 0.0, %v2599
    %v2601 = vpop.f32.mrf.mxu0
    %2602 = vdwg.mxu0
    %2603 = vmatpush.bf16.msra.mxu0 %v495
    %2604 = vmatpush.bf16.msra.mxu0 %v491
    %2605 = vmatpush.bf16.msra.mxu0 %v487
    %2606 = vmatpush.bf16.msra.mxu0 %v483
    %2607 = vmatpush.bf16.msra.mxu0 %v479
    %2608 = vmatpush.bf16.msra.mxu0 %v475
    %2609 = vmatpush.bf16.msra.mxu0 %v471
    %2610 = vmatpush.bf16.msra.mxu0 %v467
    %2611 = vmatmul.bf16.gmra.mxu0 %v2408
    %v2612 = vpop.f32.mrf.mxu0
    %v2613 = vadd.f32 0.0, %v2612
    %v2614 = vpop.f32.mrf.mxu0
    %2615 = vdwg.mxu0
    %2616 = vmatpush.bf16.msra.mxu0 %v496
    %2617 = vmatpush.bf16.msra.mxu0 %v492
    %2618 = vmatpush.bf16.msra.mxu0 %v488
    %2619 = vmatpush.bf16.msra.mxu0 %v484
    %2620 = vmatpush.bf16.msra.mxu0 %v480
    %2621 = vmatpush.bf16.msra.mxu0 %v476
    %2622 = vmatpush.bf16.msra.mxu0 %v472
    %2623 = vmatpush.bf16.msra.mxu0 %v468
    %2624 = vmatmul.bf16.gmra.mxu0 %v2408
    %v2625 = vpop.f32.mrf.mxu0
    %v2626 = vadd.f32 0.0, %v2625
    %v2627 = vpop.f32.mrf.mxu0
    %2628 = vdwg.mxu0
    %v2629 = vadd.f32 %v172, %v2587
    %v2630 = vadd.f32 %v201, %v2600
    %v2631 = vadd.f32 %v230, %v2613
    %v2632 = vadd.f32 %v259, %v2626
    %v2633 = vxor.u32 %v2629, 2147483648
    %v2634 = vmul.f32 %v2633, 1.442695
    %v2635 = vpow.pop %v2634
    %v2636 = vadd.f32 %v2635, 1.0
    %v2637 = vrcp.pop %v2636
    %v2638 = vmul.f32 %v2636, %v2637
    %v2639 = vsub.f32 1.0, %v2638
    %v2640 = vmul.f32 %v2637, %v2639
    %v2641 = vadd.f32 %v2637, %v2640
    %vm2642 = vweird.f32 %v2636
    %vm2643 = vweird.f32 %v2637
    %vm2644 = vmor %vm2642, %vm2643
    %v2645 = vsel %vm2644, %v2637, %v2641
    %v2646 = vand.u32 2147483647, %v2636
    %vm2647 = vcmp.eq.f32.partialorder %v2646, 8.507059e+37
    %v2648 = vand.u32 %v2636, 2147483648
    %v2649 = vor.u32 1.1754944e-38, %v2648
    %v2650 = vsel %vm2647, %v2649, %v2645
    %v2651 = vmul.f32 1.0, %v2650
    %v2652 = vxor.u32 %v2630, 2147483648
    %v2653 = vmul.f32 %v2652, 1.442695
    %v2654 = vpow.pop %v2653
    %v2655 = vadd.f32 %v2654, 1.0
    %v2656 = vrcp.pop %v2655
    %v2657 = vmul.f32 %v2655, %v2656
    %v2658 = vsub.f32 1.0, %v2657
    %v2659 = vmul.f32 %v2656, %v2658
    %v2660 = vadd.f32 %v2656, %v2659
    %vm2661 = vweird.f32 %v2655
    %vm2662 = vweird.f32 %v2656
    %vm2663 = vmor %vm2661, %vm2662
    %v2664 = vsel %vm2663, %v2656, %v2660
    %v2665 = vand.u32 2147483647, %v2655
    %vm2666 = vcmp.eq.f32.partialorder %v2665, 8.507059e+37
    %v2667 = vand.u32 %v2655, 2147483648
    %v2668 = vor.u32 1.1754944e-38, %v2667
    %v2669 = vsel %vm2666, %v2668, %v2664
    %v2670 = vmul.f32 1.0, %v2669
    %v2671 = vtanh.pop %v2631
    %v2672 = vxor.u32 %v2632, 2147483648
    %v2673 = vmul.f32 %v2672, 1.442695
    %v2674 = vpow.pop %v2673
    %v2675 = vadd.f32 %v2674, 1.0
    %v2676 = vrcp.pop %v2675
    %v2677 = vmul.f32 %v2675, %v2676
    %v2678 = vsub.f32 1.0, %v2677
    %v2679 = vmul.f32 %v2676, %v2678
    %v2680 = vadd.f32 %v2676, %v2679
    %vm2681 = vweird.f32 %v2675
    %vm2682 = vweird.f32 %v2676
    %vm2683 = vmor %vm2681, %vm2682
    %v2684 = vsel %vm2683, %v2676, %v2680
    %v2685 = vand.u32 2147483647, %v2675
    %vm2686 = vcmp.eq.f32.partialorder %v2685, 8.507059e+37
    %v2687 = vand.u32 %v2675, 2147483648
    %v2688 = vor.u32 1.1754944e-38, %v2687
    %v2689 = vsel %vm2686, %v2688, %v2684
    %v2690 = vmul.f32 1.0, %v2689
    %v2691 = vmul.f32 %v2670, %v2405
    %v2692 = vmul.f32 %v2651, %v2671
    %v2693 = vadd.f32 %v2691, %v2692
    %v2694 = vtanh.pop %v2693
    %v2695 = vmul.f32 %v2690, %v2694
    %v2696 = vpack.c.bf16 %v2695, %v2695
    %v2697 = vpack.c.bf16 %v2576, %v2576
    %2698 = vmatpush.bf16.msra.mxu0 %v870
    %2699 = vmatpush.bf16.msra.mxu0 %v866
    %2700 = vmatpush.bf16.msra.mxu0 %v862
    %2701 = vmatpush.bf16.msra.mxu0 %v858
    %2702 = vmatpush.bf16.msra.mxu0 %v854
    %2703 = vmatpush.bf16.msra.mxu0 %v850
    %2704 = vmatpush.bf16.msra.mxu0 %v846
    %2705 = vmatpush.bf16.msra.mxu0 %v842
    %2706 = vmatmul.bf16.gmra.mxu0 %v2696
    %v2707 = vpop.f32.mrf.mxu0
    %v2708 = vadd.f32 %v361, %v2707
    %v2709 = vpop.f32.mrf.mxu0
    %2710 = vdwg.mxu0
    %2711 = vmatpush.bf16.msra.mxu0 %v902
    %2712 = vmatpush.bf16.msra.mxu0 %v898
    %2713 = vmatpush.bf16.msra.mxu0 %v894
    %2714 = vmatpush.bf16.msra.mxu0 %v890
    %2715 = vmatpush.bf16.msra.mxu0 %v886
    %2716 = vmatpush.bf16.msra.mxu0 %v882
    %2717 = vmatpush.bf16.msra.mxu0 %v878
    %2718 = vmatpush.bf16.msra.mxu0 %v874
    %2719 = vmatmul.bf16.gmra.mxu0 %v2697
    %v2720 = vpop.f32.mrf.mxu0
    %v2721 = vadd.f32 %v2708, %v2720
    %v2722 = vpop.f32.mrf.mxu0
    %2723 = vdwg.mxu0
    %2724 = vmatpush.bf16.msra.mxu0 %v871
    %2725 = vmatpush.bf16.msra.mxu0 %v867
    %2726 = vmatpush.bf16.msra.mxu0 %v863
    %2727 = vmatpush.bf16.msra.mxu0 %v859
    %2728 = vmatpush.bf16.msra.mxu0 %v855
    %2729 = vmatpush.bf16.msra.mxu0 %v851
    %2730 = vmatpush.bf16.msra.mxu0 %v847
    %2731 = vmatpush.bf16.msra.mxu0 %v843
    %2732 = vmatmul.bf16.gmra.mxu0 %v2696
    %v2733 = vpop.f32.mrf.mxu0
    %v2734 = vadd.f32 %v362, %v2733
    %v2735 = vpop.f32.mrf.mxu0
    %2736 = vdwg.mxu0
    %2737 = vmatpush.bf16.msra.mxu0 %v903
    %2738 = vmatpush.bf16.msra.mxu0 %v899
    %2739 = vmatpush.bf16.msra.mxu0 %v895
    %2740 = vmatpush.bf16.msra.mxu0 %v891
    %2741 = vmatpush.bf16.msra.mxu0 %v887
    %2742 = vmatpush.bf16.msra.mxu0 %v883
    %2743 = vmatpush.bf16.msra.mxu0 %v879
    %2744 = vmatpush.bf16.msra.mxu0 %v875
    %2745 = vmatmul.bf16.gmra.mxu0 %v2697
    %v2746 = vpop.f32.mrf.mxu0
    %v2747 = vadd.f32 %v2734, %v2746
    %v2748 = vpop.f32.mrf.mxu0
    %2749 = vdwg.mxu0
    %2750 = vmatpush.bf16.msra.mxu0 %v872
    %2751 = vmatpush.bf16.msra.mxu0 %v868
    %2752 = vmatpush.bf16.msra.mxu0 %v864
    %2753 = vmatpush.bf16.msra.mxu0 %v860
    %2754 = vmatpush.bf16.msra.mxu0 %v856
    %2755 = vmatpush.bf16.msra.mxu0 %v852
    %2756 = vmatpush.bf16.msra.mxu0 %v848
    %2757 = vmatpush.bf16.msra.mxu0 %v844
    %2758 = vmatmul.bf16.gmra.mxu0 %v2696
    %v2759 = vpop.f32.mrf.mxu0
    %v2760 = vadd.f32 %v363, %v2759
    %v2761 = vpop.f32.mrf.mxu0
    %2762 = vdwg.mxu0
    %2763 = vmatpush.bf16.msra.mxu0 %v904
    %2764 = vmatpush.bf16.msra.mxu0 %v900
    %2765 = vmatpush.bf16.msra.mxu0 %v896
    %2766 = vmatpush.bf16.msra.mxu0 %v892
    %2767 = vmatpush.bf16.msra.mxu0 %v888
    %2768 = vmatpush.bf16.msra.mxu0 %v884
    %2769 = vmatpush.bf16.msra.mxu0 %v880
    %2770 = vmatpush.bf16.msra.mxu0 %v876
    %2771 = vmatmul.bf16.gmra.mxu0 %v2697
    %v2772 = vpop.f32.mrf.mxu0
    %v2773 = vadd.f32 %v2760, %v2772
    %v2774 = vpop.f32.mrf.mxu0
    %2775 = vdwg.mxu0
    %2776 = vmatpush.bf16.msra.mxu0 %v873
    %2777 = vmatpush.bf16.msra.mxu0 %v869
    %2778 = vmatpush.bf16.msra.mxu0 %v865
    %2779 = vmatpush.bf16.msra.mxu0 %v861
    %2780 = vmatpush.bf16.msra.mxu0 %v857
    %2781 = vmatpush.bf16.msra.mxu0 %v853
    %2782 = vmatpush.bf16.msra.mxu0 %v849
    %2783 = vmatpush.bf16.msra.mxu0 %v845
    %2784 = vmatmul.bf16.gmra.mxu0 %v2696
    %v2785 = vpop.f32.mrf.mxu0
    %v2786 = vadd.f32 %v364, %v2785
    %v2787 = vpop.f32.mrf.mxu0
    %2788 = vdwg.mxu0
    %2789 = vmatpush.bf16.msra.mxu0 %v905
    %2790 = vmatpush.bf16.msra.mxu0 %v901
    %2791 = vmatpush.bf16.msra.mxu0 %v897
    %2792 = vmatpush.bf16.msra.mxu0 %v893
    %2793 = vmatpush.bf16.msra.mxu0 %v889
    %2794 = vmatpush.bf16.msra.mxu0 %v885
    %2795 = vmatpush.bf16.msra.mxu0 %v881
    %2796 = vmatpush.bf16.msra.mxu0 %v877
    %2797 = vmatmul.bf16.gmra.mxu0 %v2697
    %v2798 = vpop.f32.mrf.mxu0
    %v2799 = vadd.f32 %v2786, %v2798
    %v2800 = vpop.f32.mrf.mxu0
    %2801 = vdwg.mxu0
    %v2802 = vxor.u32 %v2721, 2147483648
    %v2803 = vmul.f32 %v2802, 1.442695
    %v2804 = vpow.pop %v2803
    %v2805 = vadd.f32 %v2804, 1.0
    %v2806 = vrcp.pop %v2805
    %v2807 = vmul.f32 %v2805, %v2806
    %v2808 = vsub.f32 1.0, %v2807
    %v2809 = vmul.f32 %v2806, %v2808
    %v2810 = vadd.f32 %v2806, %v2809
    %vm2811 = vweird.f32 %v2805
    %vm2812 = vweird.f32 %v2806
    %vm2813 = vmor %vm2811, %vm2812
    %v2814 = vsel %vm2813, %v2806, %v2810
    %v2815 = vand.u32 2147483647, %v2805
    %vm2816 = vcmp.eq.f32.partialorder %v2815, 8.507059e+37
    %v2817 = vand.u32 %v2805, 2147483648
    %v2818 = vor.u32 1.1754944e-38, %v2817
    %v2819 = vsel %vm2816, %v2818, %v2814
    %v2820 = vmul.f32 1.0, %v2819
    %v2821 = vxor.u32 %v2747, 2147483648
    %v2822 = vmul.f32 %v2821, 1.442695
    %v2823 = vpow.pop %v2822
    %v2824 = vadd.f32 %v2823, 1.0
    %v2825 = vrcp.pop %v2824
    %v2826 = vmul.f32 %v2824, %v2825
    %v2827 = vsub.f32 1.0, %v2826
    %v2828 = vmul.f32 %v2825, %v2827
    %v2829 = vadd.f32 %v2825, %v2828
    %vm2830 = vweird.f32 %v2824
    %vm2831 = vweird.f32 %v2825
    %vm2832 = vmor %vm2830, %vm2831
    %v2833 = vsel %vm2832, %v2825, %v2829
    %v2834 = vand.u32 2147483647, %v2824
    %vm2835 = vcmp.eq.f32.partialorder %v2834, 8.507059e+37
    %v2836 = vand.u32 %v2824, 2147483648
    %v2837 = vor.u32 1.1754944e-38, %v2836
    %v2838 = vsel %vm2835, %v2837, %v2833
    %v2839 = vmul.f32 1.0, %v2838
    %v2840 = vtanh.pop %v2773
    %v2841 = vxor.u32 %v2799, 2147483648
    %v2842 = vmul.f32 %v2841, 1.442695
    %v2843 = vpow.pop %v2842
    %v2844 = vadd.f32 %v2843, 1.0
    %v2845 = vrcp.pop %v2844
    %v2846 = vmul.f32 %v2844, %v2845
    %v2847 = vsub.f32 1.0, %v2846
    %v2848 = vmul.f32 %v2845, %v2847
    %v2849 = vadd.f32 %v2845, %v2848
    %vm2850 = vweird.f32 %v2844
    %vm2851 = vweird.f32 %v2845
    %vm2852 = vmor %vm2850, %vm2851
    %v2853 = vsel %vm2852, %v2845, %v2849
    %v2854 = vand.u32 2147483647, %v2844
    %vm2855 = vcmp.eq.f32.partialorder %v2854, 8.507059e+37
    %v2856 = vand.u32 %v2844, 2147483648
    %v2857 = vor.u32 1.1754944e-38, %v2856
    %v2858 = vsel %vm2855, %v2857, %v2853
    %v2859 = vmul.f32 1.0, %v2858
    %v2860 = vmul.f32 %v2839, %v2574
    %v2861 = vmul.f32 %v2820, %v2840
    %v2862 = vadd.f32 %v2860, %v2861
    %v2863 = vtanh.pop %v2862
    %v2864 = vmul.f32 %v2859, %v2863
    %2865 = vmatpush.bf16.msra.mxu0 %v493
    %2866 = vmatpush.bf16.msra.mxu0 %v489
    %2867 = vmatpush.bf16.msra.mxu0 %v485
    %2868 = vmatpush.bf16.msra.mxu0 %v481
    %2869 = vmatpush.bf16.msra.mxu0 %v477
    %2870 = vmatpush.bf16.msra.mxu0 %v473
    %2871 = vmatpush.bf16.msra.mxu0 %v469
    %2872 = vmatpush.bf16.msra.mxu0 %v465
    %2873 = vmatmul.bf16.gmra.mxu0 %v2696
    %v2874 = vpop.f32.mrf.mxu0
    %v2875 = vadd.f32 0.0, %v2874
    %v2876 = vpop.f32.mrf.mxu0
    %2877 = vdwg.mxu0
    %2878 = vmatpush.bf16.msra.mxu0 %v494
    %2879 = vmatpush.bf16.msra.mxu0 %v490
    %2880 = vmatpush.bf16.msra.mxu0 %v486
    %2881 = vmatpush.bf16.msra.mxu0 %v482
    %2882 = vmatpush.bf16.msra.mxu0 %v478
    %2883 = vmatpush.bf16.msra.mxu0 %v474
    %2884 = vmatpush.bf16.msra.mxu0 %v470
    %2885 = vmatpush.bf16.msra.mxu0 %v466
    %2886 = vmatmul.bf16.gmra.mxu0 %v2696
    %v2887 = vpop.f32.mrf.mxu0
    %v2888 = vadd.f32 0.0, %v2887
    %v2889 = vpop.f32.mrf.mxu0
    %2890 = vdwg.mxu0
    %2891 = vmatpush.bf16.msra.mxu0 %v495
    %2892 = vmatpush.bf16.msra.mxu0 %v491
    %2893 = vmatpush.bf16.msra.mxu0 %v487
    %2894 = vmatpush.bf16.msra.mxu0 %v483
    %2895 = vmatpush.bf16.msra.mxu0 %v479
    %2896 = vmatpush.bf16.msra.mxu0 %v475
    %2897 = vmatpush.bf16.msra.mxu0 %v471
    %2898 = vmatpush.bf16.msra.mxu0 %v467
    %2899 = vmatmul.bf16.gmra.mxu0 %v2696
    %v2900 = vpop.f32.mrf.mxu0
    %v2901 = vadd.f32 0.0, %v2900
    %v2902 = vpop.f32.mrf.mxu0
    %2903 = vdwg.mxu0
    %2904 = vmatpush.bf16.msra.mxu0 %v496
    %2905 = vmatpush.bf16.msra.mxu0 %v492
    %2906 = vmatpush.bf16.msra.mxu0 %v488
    %2907 = vmatpush.bf16.msra.mxu0 %v484
    %2908 = vmatpush.bf16.msra.mxu0 %v480
    %2909 = vmatpush.bf16.msra.mxu0 %v476
    %2910 = vmatpush.bf16.msra.mxu0 %v472
    %2911 = vmatpush.bf16.msra.mxu0 %v468
    %2912 = vmatmul.bf16.gmra.mxu0 %v2696
    %v2913 = vpop.f32.mrf.mxu0
    %v2914 = vadd.f32 0.0, %v2913
    %v2915 = vpop.f32.mrf.mxu0
    %2916 = vdwg.mxu0
    %v2917 = vadd.f32 %v174, %v2875
    %v2918 = vadd.f32 %v203, %v2888
    %v2919 = vadd.f32 %v232, %v2901
    %v2920 = vadd.f32 %v261, %v2914
    %v2921 = vxor.u32 %v2917, 2147483648
    %v2922 = vmul.f32 %v2921, 1.442695
    %v2923 = vpow.pop %v2922
    %v2924 = vadd.f32 %v2923, 1.0
    %v2925 = vrcp.pop %v2924
    %v2926 = vmul.f32 %v2924, %v2925
    %v2927 = vsub.f32 1.0, %v2926
    %v2928 = vmul.f32 %v2925, %v2927
    %v2929 = vadd.f32 %v2925, %v2928
    %vm2930 = vweird.f32 %v2924
    %vm2931 = vweird.f32 %v2925
    %vm2932 = vmor %vm2930, %vm2931
    %v2933 = vsel %vm2932, %v2925, %v2929
    %v2934 = vand.u32 2147483647, %v2924
    %vm2935 = vcmp.eq.f32.partialorder %v2934, 8.507059e+37
    %v2936 = vand.u32 %v2924, 2147483648
    %v2937 = vor.u32 1.1754944e-38, %v2936
    %v2938 = vsel %vm2935, %v2937, %v2933
    %v2939 = vmul.f32 1.0, %v2938
    %v2940 = vxor.u32 %v2918, 2147483648
    %v2941 = vmul.f32 %v2940, 1.442695
    %v2942 = vpow.pop %v2941
    %v2943 = vadd.f32 %v2942, 1.0
    %v2944 = vrcp.pop %v2943
    %v2945 = vmul.f32 %v2943, %v2944
    %v2946 = vsub.f32 1.0, %v2945
    %v2947 = vmul.f32 %v2944, %v2946
    %v2948 = vadd.f32 %v2944, %v2947
    %vm2949 = vweird.f32 %v2943
    %vm2950 = vweird.f32 %v2944
    %vm2951 = vmor %vm2949, %vm2950
    %v2952 = vsel %vm2951, %v2944, %v2948
    %v2953 = vand.u32 2147483647, %v2943
    %vm2954 = vcmp.eq.f32.partialorder %v2953, 8.507059e+37
    %v2955 = vand.u32 %v2943, 2147483648
    %v2956 = vor.u32 1.1754944e-38, %v2955
    %v2957 = vsel %vm2954, %v2956, %v2952
    %v2958 = vmul.f32 1.0, %v2957
    %v2959 = vtanh.pop %v2919
    %v2960 = vxor.u32 %v2920, 2147483648
    %v2961 = vmul.f32 %v2960, 1.442695
    %v2962 = vpow.pop %v2961
    %v2963 = vadd.f32 %v2962, 1.0
    %v2964 = vrcp.pop %v2963
    %v2965 = vmul.f32 %v2963, %v2964
    %v2966 = vsub.f32 1.0, %v2965
    %v2967 = vmul.f32 %v2964, %v2966
    %v2968 = vadd.f32 %v2964, %v2967
    %vm2969 = vweird.f32 %v2963
    %vm2970 = vweird.f32 %v2964
    %vm2971 = vmor %vm2969, %vm2970
    %v2972 = vsel %vm2971, %v2964, %v2968
    %v2973 = vand.u32 2147483647, %v2963
    %vm2974 = vcmp.eq.f32.partialorder %v2973, 8.507059e+37
    %v2975 = vand.u32 %v2963, 2147483648
    %v2976 = vor.u32 1.1754944e-38, %v2975
    %v2977 = vsel %vm2974, %v2976, %v2972
    %v2978 = vmul.f32 1.0, %v2977
    %v2979 = vmul.f32 %v2958, %v2693
    %v2980 = vmul.f32 %v2939, %v2959
    %v2981 = vadd.f32 %v2979, %v2980
    %v2982 = vtanh.pop %v2981
    %v2983 = vmul.f32 %v2978, %v2982
    %v2984 = vpack.c.bf16 %v2983, %v2983
    %v2985 = vpack.c.bf16 %v2864, %v2864
    %2986 = vmatpush.bf16.msra.mxu0 %v870
    %2987 = vmatpush.bf16.msra.mxu0 %v866
    %2988 = vmatpush.bf16.msra.mxu0 %v862
    %2989 = vmatpush.bf16.msra.mxu0 %v858
    %2990 = vmatpush.bf16.msra.mxu0 %v854
    %2991 = vmatpush.bf16.msra.mxu0 %v850
    %2992 = vmatpush.bf16.msra.mxu0 %v846
    %2993 = vmatpush.bf16.msra.mxu0 %v842
    %2994 = vmatmul.bf16.gmra.mxu0 %v2984
    %v2995 = vpop.f32.mrf.mxu0
    %v2996 = vadd.f32 %v361, %v2995
    %v2997 = vpop.f32.mrf.mxu0
    %2998 = vdwg.mxu0
    %2999 = vmatpush.bf16.msra.mxu0 %v902
    %3000 = vmatpush.bf16.msra.mxu0 %v898
    %3001 = vmatpush.bf16.msra.mxu0 %v894
    %3002 = vmatpush.bf16.msra.mxu0 %v890
    %3003 = vmatpush.bf16.msra.mxu0 %v886
    %3004 = vmatpush.bf16.msra.mxu0 %v882
    %3005 = vmatpush.bf16.msra.mxu0 %v878
    %3006 = vmatpush.bf16.msra.mxu0 %v874
    %3007 = vmatmul.bf16.gmra.mxu0 %v2985
    %v3008 = vpop.f32.mrf.mxu0
    %v3009 = vadd.f32 %v2996, %v3008
    %v3010 = vpop.f32.mrf.mxu0
    %3011 = vdwg.mxu0
    %3012 = vmatpush.bf16.msra.mxu0 %v871
    %3013 = vmatpush.bf16.msra.mxu0 %v867
    %3014 = vmatpush.bf16.msra.mxu0 %v863
    %3015 = vmatpush.bf16.msra.mxu0 %v859
    %3016 = vmatpush.bf16.msra.mxu0 %v855
    %3017 = vmatpush.bf16.msra.mxu0 %v851
    %3018 = vmatpush.bf16.msra.mxu0 %v847
    %3019 = vmatpush.bf16.msra.mxu0 %v843
    %3020 = vmatmul.bf16.gmra.mxu0 %v2984
    %v3021 = vpop.f32.mrf.mxu0
    %v3022 = vadd.f32 %v362, %v3021
    %v3023 = vpop.f32.mrf.mxu0
    %3024 = vdwg.mxu0
    %3025 = vmatpush.bf16.msra.mxu0 %v903
    %3026 = vmatpush.bf16.msra.mxu0 %v899
    %3027 = vmatpush.bf16.msra.mxu0 %v895
    %3028 = vmatpush.bf16.msra.mxu0 %v891
    %3029 = vmatpush.bf16.msra.mxu0 %v887
    %3030 = vmatpush.bf16.msra.mxu0 %v883
    %3031 = vmatpush.bf16.msra.mxu0 %v879
    %3032 = vmatpush.bf16.msra.mxu0 %v875
    %3033 = vmatmul.bf16.gmra.mxu0 %v2985
    %v3034 = vpop.f32.mrf.mxu0
    %v3035 = vadd.f32 %v3022, %v3034
    %v3036 = vpop.f32.mrf.mxu0
    %3037 = vdwg.mxu0
    %3038 = vmatpush.bf16.msra.mxu0 %v872
    %3039 = vmatpush.bf16.msra.mxu0 %v868
    %3040 = vmatpush.bf16.msra.mxu0 %v864
    %3041 = vmatpush.bf16.msra.mxu0 %v860
    %3042 = vmatpush.bf16.msra.mxu0 %v856
    %3043 = vmatpush.bf16.msra.mxu0 %v852
    %3044 = vmatpush.bf16.msra.mxu0 %v848
    %3045 = vmatpush.bf16.msra.mxu0 %v844
    %3046 = vmatmul.bf16.gmra.mxu0 %v2984
    %v3047 = vpop.f32.mrf.mxu0
    %v3048 = vadd.f32 %v363, %v3047
    %v3049 = vpop.f32.mrf.mxu0
    %3050 = vdwg.mxu0
    %3051 = vmatpush.bf16.msra.mxu0 %v904
    %3052 = vmatpush.bf16.msra.mxu0 %v900
    %3053 = vmatpush.bf16.msra.mxu0 %v896
    %3054 = vmatpush.bf16.msra.mxu0 %v892
    %3055 = vmatpush.bf16.msra.mxu0 %v888
    %3056 = vmatpush.bf16.msra.mxu0 %v884
    %3057 = vmatpush.bf16.msra.mxu0 %v880
    %3058 = vmatpush.bf16.msra.mxu0 %v876
    %3059 = vmatmul.bf16.gmra.mxu0 %v2985
    %v3060 = vpop.f32.mrf.mxu0
    %v3061 = vadd.f32 %v3048, %v3060
    %v3062 = vpop.f32.mrf.mxu0
    %3063 = vdwg.mxu0
    %3064 = vmatpush.bf16.msra.mxu0 %v873
    %3065 = vmatpush.bf16.msra.mxu0 %v869
    %3066 = vmatpush.bf16.msra.mxu0 %v865
    %3067 = vmatpush.bf16.msra.mxu0 %v861
    %3068 = vmatpush.bf16.msra.mxu0 %v857
    %3069 = vmatpush.bf16.msra.mxu0 %v853
    %3070 = vmatpush.bf16.msra.mxu0 %v849
    %3071 = vmatpush.bf16.msra.mxu0 %v845
    %3072 = vmatmul.bf16.gmra.mxu0 %v2984
    %v3073 = vpop.f32.mrf.mxu0
    %v3074 = vadd.f32 %v364, %v3073
    %v3075 = vpop.f32.mrf.mxu0
    %3076 = vdwg.mxu0
    %3077 = vmatpush.bf16.msra.mxu0 %v905
    %3078 = vmatpush.bf16.msra.mxu0 %v901
    %3079 = vmatpush.bf16.msra.mxu0 %v897
    %3080 = vmatpush.bf16.msra.mxu0 %v893
    %3081 = vmatpush.bf16.msra.mxu0 %v889
    %3082 = vmatpush.bf16.msra.mxu0 %v885
    %3083 = vmatpush.bf16.msra.mxu0 %v881
    %3084 = vmatpush.bf16.msra.mxu0 %v877
    %3085 = vmatmul.bf16.gmra.mxu0 %v2985
    %v3086 = vpop.f32.mrf.mxu0
    %v3087 = vadd.f32 %v3074, %v3086
    %v3088 = vpop.f32.mrf.mxu0
    %3089 = vdwg.mxu0
    %v3090 = vxor.u32 %v3009, 2147483648
    %v3091 = vmul.f32 %v3090, 1.442695
    %v3092 = vpow.pop %v3091
    %v3093 = vadd.f32 %v3092, 1.0
    %v3094 = vrcp.pop %v3093
    %v3095 = vmul.f32 %v3093, %v3094
    %v3096 = vsub.f32 1.0, %v3095
    %v3097 = vmul.f32 %v3094, %v3096
    %v3098 = vadd.f32 %v3094, %v3097
    %vm3099 = vweird.f32 %v3093
    %vm3100 = vweird.f32 %v3094
    %vm3101 = vmor %vm3099, %vm3100
    %v3102 = vsel %vm3101, %v3094, %v3098
    %v3103 = vand.u32 2147483647, %v3093
    %vm3104 = vcmp.eq.f32.partialorder %v3103, 8.507059e+37
    %v3105 = vand.u32 %v3093, 2147483648
    %v3106 = vor.u32 1.1754944e-38, %v3105
    %v3107 = vsel %vm3104, %v3106, %v3102
    %v3108 = vmul.f32 1.0, %v3107
    %v3109 = vxor.u32 %v3035, 2147483648
    %v3110 = vmul.f32 %v3109, 1.442695
    %v3111 = vpow.pop %v3110
    %v3112 = vadd.f32 %v3111, 1.0
    %v3113 = vrcp.pop %v3112
    %v3114 = vmul.f32 %v3112, %v3113
    %v3115 = vsub.f32 1.0, %v3114
    %v3116 = vmul.f32 %v3113, %v3115
    %v3117 = vadd.f32 %v3113, %v3116
    %vm3118 = vweird.f32 %v3112
    %vm3119 = vweird.f32 %v3113
    %vm3120 = vmor %vm3118, %vm3119
    %v3121 = vsel %vm3120, %v3113, %v3117
    %v3122 = vand.u32 2147483647, %v3112
    %vm3123 = vcmp.eq.f32.partialorder %v3122, 8.507059e+37
    %v3124 = vand.u32 %v3112, 2147483648
    %v3125 = vor.u32 1.1754944e-38, %v3124
    %v3126 = vsel %vm3123, %v3125, %v3121
    %v3127 = vmul.f32 1.0, %v3126
    %v3128 = vtanh.pop %v3061
    %v3129 = vxor.u32 %v3087, 2147483648
    %v3130 = vmul.f32 %v3129, 1.442695
    %v3131 = vpow.pop %v3130
    %v3132 = vadd.f32 %v3131, 1.0
    %v3133 = vrcp.pop %v3132
    %v3134 = vmul.f32 %v3132, %v3133
    %v3135 = vsub.f32 1.0, %v3134
    %v3136 = vmul.f32 %v3133, %v3135
    %v3137 = vadd.f32 %v3133, %v3136
    %vm3138 = vweird.f32 %v3132
    %vm3139 = vweird.f32 %v3133
    %vm3140 = vmor %vm3138, %vm3139
    %v3141 = vsel %vm3140, %v3133, %v3137
    %v3142 = vand.u32 2147483647, %v3132
    %vm3143 = vcmp.eq.f32.partialorder %v3142, 8.507059e+37
    %v3144 = vand.u32 %v3132, 2147483648
    %v3145 = vor.u32 1.1754944e-38, %v3144
    %v3146 = vsel %vm3143, %v3145, %v3141
    %v3147 = vmul.f32 1.0, %v3146
    %v3148 = vmul.f32 %v3127, %v2862
    %v3149 = vmul.f32 %v3108, %v3128
    %v3150 = vadd.f32 %v3148, %v3149
    %v3151 = vtanh.pop %v3150
    %v3152 = vmul.f32 %v3147, %v3151
    %v3153 = vpack.c.bf16 %v3152, %v3152
    %v3154 = vld [vmem:[%s6] sm:$0xf]
    %v3155 = vld [vmem:[%s6 + $0x4] sm:$0xf]
    %v3156 = vld [vmem:[%s6 + $0x8] sm:$0xf]
    %v3157 = vld [vmem:[%s6 + $0xc] sm:$0xf]
    %v3158 = vld [vmem:[%s6 + $0x10] sm:$0xf]
    %v3159 = vld [vmem:[%s6 + $0x14] sm:$0xf]
    %v3160 = vld [vmem:[%s6 + $0x18] sm:$0xf]
    %v3161 = vld [vmem:[%s6 + $0x1c] sm:$0xf]
    %v3162 = vld [vmem:[%s6 + $0x20] sm:$0xf]
    %v3163 = vld [vmem:[%s6 + $0x24] sm:$0xf]
    %v3164 = vld [vmem:[%s6 + $0x28] sm:$0xf]
    %v3165 = vld [vmem:[%s6 + $0x2c] sm:$0xf]
    %v3166 = vld [vmem:[%s6 + $0x30] sm:$0xf]
    %v3167 = vld [vmem:[%s6 + $0x34] sm:$0xf]
    %v3168 = vld [vmem:[%s6 + $0x38] sm:$0xf]
    %v3169 = vld [vmem:[%s6 + $0x3c] sm:$0xf]
    %v3170 = vld [vmem:[%s7] sm:$0x1]
    %v3172 = vperm.slane %v3170, 0
    %v3190 = vunpack.c.l.b16 %v3154
    %v3191 = vunpack.c.l.b16 %v3155
    %v3192 = vunpack.c.l.b16 %v3156
    %v3193 = vunpack.c.l.b16 %v3157
    %v3194 = vunpack.c.l.b16 %v3158
    %v3195 = vunpack.c.l.b16 %v3159
    %v3196 = vunpack.c.l.b16 %v3160
    %v3197 = vunpack.c.l.b16 %v3161
    %v3198 = vunpack.c.l.b16 %v3162
    %v3199 = vunpack.c.l.b16 %v3163
    %v3200 = vunpack.c.l.b16 %v3164
    %v3201 = vunpack.c.l.b16 %v3165
    %v3202 = vunpack.c.l.b16 %v3166
    %v3203 = vunpack.c.l.b16 %v3167
    %v3204 = vunpack.c.l.b16 %v3168
    %v3205 = vunpack.c.l.b16 %v3169
    %v3206 = vpack.c.b16 %v3191, %v3190
    %v3207 = vpack.c.b16 %v3193, %v3192
    %v3208 = vpack.c.b16 %v3195, %v3194
    %v3209 = vpack.c.b16 %v3197, %v3196
    %v3210 = vpack.c.b16 %v3199, %v3198
    %v3211 = vpack.c.b16 %v3201, %v3200
    %v3212 = vpack.c.b16 %v3203, %v3202
    %v3213 = vpack.c.b16 %v3205, %v3204
    %3222 = vmatpush.bf16.msra.mxu0 %v3213
    %3223 = vmatpush.bf16.msra.mxu0 %v3212
    %3224 = vmatpush.bf16.msra.mxu0 %v3211
    %3225 = vmatpush.bf16.msra.mxu0 %v3210
    %3226 = vmatpush.bf16.msra.mxu0 %v3209
    %3227 = vmatpush.bf16.msra.mxu0 %v3208
    %3228 = vmatpush.bf16.msra.mxu0 %v3207
    %3229 = vmatpush.bf16.msra.mxu0 %v3206
    %3230 = vmatmul.bf16.gmra.mxu0 %v3153
    %v3231 = vpop.f32.mrf.mxu0
    %v3232 = vadd.f32 %v3172, %v3231
    %v3233 = vpop.f32.mrf.mxu0
    %3234 = vdwg.mxu0
    %vm3235 = vcmask 80896
    %3236 = vst.msk [vmem:[#allocation7] sm:$0xff] %vm3235, %v3232
    // Predicated region
    $region42: #{tpu_custom_call.1} parent=1 // pred_check
      _
    $region43: #{tpu_custom_call.1} parent=1 // pred_check_branch
      %3238 = sbr.rel (0) target = $region45
    $region44: #{tpu_custom_call.1} parent=1 // pred_region
      %3240 = vsyncadd [#allocation4], 0
      %s3242 = sshll.u32 [#allocation7], 4
      %s3243 = int_to_ptr.vmem [resolvable:$true] %s3242
      %s3244 = sshll.u32 %s8, 4
      %s3245 = int_to_ptr.hbm [resolvable:$true] %s3244
      %3247 = dma.vmem_to_hbm [thread:$0]  %s3243, 128, %s3245, [#allocation4]
    $region45: #{tpu_custom_call.1} parent=1 // pred_fallthru
      _
    // Predicated region
    $region46: #{tpu_custom_call.1} parent=1 // pred_check
      _
    $region47: #{tpu_custom_call.1} parent=1 // pred_check_branch
      %3249 = sbr.rel (0) target = $region49
    $region48: #{tpu_custom_call.1} parent=1 // pred_region
      %3251 = dma.done [#allocation4], 128
    $region49: #{tpu_custom_call.1} parent=1 // pred_fallthru
      _
    %3252 = vsyncpa [#allocation3], 1
    %3253 = vsyncpa [#allocation6], 1
    %3254 = vsyncpa [#allocation4], 1

</llo_original>
